<compile_context>
chip_gen: v5e
topology: v5e:2x2
jax: 0.10.0
libtpu: 0.0.40
codegen_flags: <defaults>
</compile_context>

<pallas_src>
import functools

import jax
import jax.numpy as jnp
import numpy as np
from jax.experimental import pallas as pl
from jax.experimental.pallas import tpu as pltpu

EPS = 1e-5
LANES = 128  # TPU lane width; output channels padded to a multiple of this.


def _round_up(x, m):
    return (x + m - 1) // m * m


def _pick_batch_block(n):
    """Images folded into one grid step (bigger matmul M), keeping >= 2 steps."""
    b = min(8, max(1, n // 2))
    while n % b:
        b -= 1
    return b


# ----------------------------- Pallas kernel ------------------------------- #
def _residual_block_kernel(*refs, stride, ho, wo, has_skip_conv):
    """Fused residual block for a block of b_blk images (grid axis = batch blocks).

    x_ref   : (b, s*s, Hq, Wq, cin_p) bf16  phase-decomposed, padded input
    w1_ref  : (9, cin_p, cp)          bf16  conv1 weights, BN1 scale folded in
    sh1_ref : (1, cp)                 f32   BN1 shift
    w2_ref  : (9, cp, cp)             bf16  conv2 weights, BN2 scale folded in
    sh2_ref : (1, cp)                 f32   BN2 shift
    [ws_ref : (cin_p, cp)             bf16  1x1 skip conv weights, BN folded]
    [shs_ref: (1, cp)                 f32   skip BN shift]
    o_ref   : (b, ho, wo, cp)         bf16  output tile (NHWC, channel-padded)
    scr     : (b, ho+2, wo2p, cp)     bf16  out1 staging with conv2's zero border
    """
    if has_skip_conv:
        (x_ref, w1_ref, sh1_ref, w2_ref, sh2_ref, ws_ref, shs_ref,
         o_ref, scr) = refs
    else:
        (x_ref, w1_ref, sh1_ref, w2_ref, sh2_ref, o_ref, scr) = refs

    s = stride
    b_blk, _, _, cp = o_ref.shape
    cin_p = x_ref.shape[-1]
    m = b_blk * ho * wo

    # ---------------- conv1 + bn1 + relu (implicit im2col, 9 MXU matmuls) ----
    # bf16 taps go straight into the MXU: no f32 round-trip, no per-tap casts.
    # TODO(synk): on v6e/v7x, lane-concatenating the 9 taps into one (m, 9*cin_p)
    # tile (single long-K matmul per conv) would raise MXU occupancy further.
    acc1 = None
    centre = None
    for kh in range(3):
        for kw in range(3):
            ph = (kh % s) * s + (kw % s)          # phase index
            qa, qb = kh // s, kw // s             # block offset inside phase grid
            tap = x_ref[:, ph, pl.ds(qa, ho), pl.ds(qb, wo), :].reshape(m, cin_p)
            if kh == 1 and kw == 1:
                centre = tap                      # reused by the skip path
            d = jnp.dot(tap, w1_ref[kh * 3 + kw],
                        preferred_element_type=jnp.float32)
            acc1 = d if acc1 is None else acc1 + d
    out1 = jnp.maximum(acc1 + sh1_ref[...], 0.0)
    # TODO(synk): training-mode Dropout2d (per-(N,C) channel zeroing with PyTorch
    # RNG) is not reproduced; inference identity is used instead.

    # ---------------- stage out1 (bf16) with conv2's zero border -------------
    # Only the 4 border strips are (re)initialised each step (the interior is
    # fully overwritten), instead of a full-scratch zero pass.
    zrow = jnp.zeros((b_blk, scr.shape[2], cp), scr.dtype)
    zcol = jnp.zeros((b_blk, scr.shape[1], cp), scr.dtype)
    scr[:, 0, :, :] = zrow
    scr[:, ho + 1, :, :] = zrow
    scr[:, :, 0, :] = zcol
    scr[:, :, wo + 1, :] = zcol
    scr[:, pl.ds(1, ho), pl.ds(1, wo), :] = (
        out1.reshape(b_blk, ho, wo, cp).astype(scr.dtype))

    # ---------------- conv2 + bn2: 9 back-to-back accumulating matmuls -------
    # Taps come straight from the bf16 scratch (no casts); the chained acc += dot
    # statements stay adjacent so v7x can accumulate in the MRB.
    acc2 = None
    for kh in range(3):
        for kw in range(3):
            tap = scr[:, pl.ds(kh, ho), pl.ds(kw, wo), :].reshape(m, cp)
            d = jnp.dot(tap, w2_ref[kh * 3 + kw],
                        preferred_element_type=jnp.float32)
            acc2 = d if acc2 is None else acc2 + d
    y = acc2 + sh2_ref[...]

    # ---------------- skip path + residual add + relu ------------------------
    if has_skip_conv:
        y = y + jnp.dot(centre, ws_ref[...],
                        preferred_element_type=jnp.float32) + shs_ref[...]
    else:
        # TODO(synk): identity skip adds x after its bf16 HBM round-trip, whereas
        # the PyTorch reference adds x in f32 (difference ~2^-8 relative).
        y = y + centre.astype(jnp.float32)

    o_ref[...] = jnp.maximum(y, 0.0).reshape(b_blk, ho, wo, cp).astype(o_ref.dtype)


# ------------------------------- host-side prep ----------------------------- #
def _fold_bn(gamma, beta, mean, var):
    scale = gamma / jnp.sqrt(var + EPS)
    shift = beta - mean * scale
    return scale, shift


def _prep_conv(w_oihw, gamma, beta, mean, var, cin_p, cout_p):
    """(Cout,Cin,kh,kw) -> ((kh*kw, cin_p, cout_p) bf16 with BN scale folded,
                            (1, cout_p) f32 BN shift)."""
    cout, cin, kh, kw = w_oihw.shape
    scale, shift = _fold_bn(gamma, beta, mean, var)
    w = jnp.transpose(w_oihw, (2, 3, 1, 0))                    # (kh, kw, cin, cout)
    w = w * scale[None, None, None, :]
    w = jnp.pad(w, ((0, 0), (0, 0), (0, cin_p - cin), (0, cout_p - cout)))
    w = w.reshape(kh * kw, cin_p, cout_p).astype(jnp.bfloat16)
    sh = jnp.pad(shift, (0, cout_p - cout)).reshape(1, cout_p).astype(jnp.float32)
    return w, sh


def _phase_decompose(x_nchw, stride, cin_p):
    """NCHW -> (N, s*s, Hq, Wq, cin_p) bf16 with spatial pad 1 and channel pad to
    cin_p, such that out[n, ra*s+rb, a, b, c] == x_nhwc_pad1[n, a*s+ra, b*s+rb, c]."""
    n, c, h, w = x_nchw.shape
    s = stride
    hp = _round_up(h + 2, s)
    wp = _round_up(w + 2, s)
    x = jnp.transpose(x_nchw, (0, 2, 3, 1))                    # NHWC
    x = jnp.pad(x, ((0, 0), (1, hp - h - 1), (1, wp - w - 1), (0, cin_p - c)))
    x = x.reshape(n, hp // s, s, wp // s, s, cin_p)
    x = jnp.transpose(x, (0, 2, 4, 1, 3, 5))                   # (N, s, s, Hq, Wq, c)
    return x.reshape(n, s * s, hp // s, wp // s, cin_p).astype(jnp.bfloat16)


def residual_block_forward(x, params, stride):
    """Inference-mode ResidualBlock.forward; NCHW in, NCHW (bf16) out."""
    n, cin, h, w = x.shape
    cout = params["w1"].shape[0]
    cp = _round_up(max(cout, LANES), LANES)        # lane-dense output channels
    ho = (h - 1) // stride + 1
    wo = (w - 1) // stride + 1
    has_skip_conv = (stride != 1) or (cin != cout)
    # Small-channel activations stay small in HBM when a 1x1 skip conv exists
    # (big DMA saving); the identity skip keeps cp lanes so the f32 residual add
    # needs no lane re-padding in-kernel.
    cin_p = cp if not has_skip_conv else _round_up(cin, 8)
    b_blk = _pick_batch_block(n)
    wo2p = _round_up(wo + 2, 8)                    # sublane-aligned scratch width

    x_ph = _phase_decompose(x, stride, cin_p)
    w1, sh1 = _prep_conv(params["w1"], params["g1"], params["b1"],
                         params["m1"], params["v1"], cin_p, cp)
    w2, sh2 = _prep_conv(params["w2"], params["g2"], params["b2"],
                         params["m2"], params["v2"], cp, cp)

    inputs = [x_ph, w1, sh1, w2, sh2]
    in_specs = [
        pl.BlockSpec((b_blk,) + x_ph.shape[1:], lambda i: (i, 0, 0, 0, 0)),
        pl.BlockSpec(w1.shape, lambda i: (0, 0, 0)),     # weights stay resident
        pl.BlockSpec(sh1.shape, lambda i: (0, 0)),
        pl.BlockSpec(w2.shape, lambda i: (0, 0, 0)),
        pl.BlockSpec(sh2.shape, lambda i: (0, 0)),
    ]
    flops = 2 * n * ho * wo * cp * (9 * cin_p + 9 * cp)
    if has_skip_conv:
        ws, shs = _prep_conv(params["ws"], params["gs"], params["bs"],
                             params["ms"], params["vs"], cin_p, cp)
        ws = ws.reshape(cin_p, cp)
        inputs += [ws, shs]
        in_specs += [pl.BlockSpec(ws.shape, lambda i: (0, 0)),
                     pl.BlockSpec(shs.shape, lambda i: (0, 0))]
        flops += 2 * n * ho * wo * cin_p * cp

    bytes_accessed = sum(int(a.size) * a.dtype.itemsize for a in inputs)
    bytes_accessed += n * ho * wo * cp * 2         # bf16 output writeback

    # Size the VMEM window from the hardware (128 MiB on v5e/v6e, 64 MiB on v7x).
    try:
        cap = pltpu.get_tpu_info().vmem_capacity_bytes
        vmem_limit = min(int(cap) * 3 // 4, 100 * 1024 * 1024)
    except Exception:
        vmem_limit = 32 * 1024 * 1024

    kernel = functools.partial(_residual_block_kernel, stride=stride,
                               ho=ho, wo=wo, has_skip_conv=has_skip_conv)

    y = pl.pallas_call(
        kernel,
        out_shape=jax.ShapeDtypeStruct((n, ho, wo, cp), jnp.bfloat16),
        grid=(n // b_blk,),
        in_specs=in_specs,
        out_specs=pl.BlockSpec((b_blk, ho, wo, cp), lambda i: (i, 0, 0, 0)),
        scratch_shapes=[pltpu.VMEM((b_blk, ho + 2, wo2p, cp), jnp.bfloat16)],
        compiler_params=pltpu.CompilerParams(
            dimension_semantics=("parallel",),     # megacore: both TCs on v7x
            vmem_limit_bytes=vmem_limit,
        ),
        cost_estimate=pl.CostEstimate(flops=flops, transcendentals=0,
                                      bytes_accessed=bytes_accessed),
    )(*inputs)

    # TODO(synk): when stacking blocks, keep the bf16 channel-padded NHWC layout
    # between blocks instead of slicing/transposing back to NCHW per block.
    return jnp.transpose(y[..., :cout], (0, 3, 1, 2))


# --------------------------- pure-JAX reference ----------------------------- #
def _ref_forward(x, params, stride):
    def conv(x, w, s, p):
        return jax.lax.conv_general_dilated(
            x, w, (s, s), ((p, p), (p, p)),
            dimension_numbers=("NCHW", "OIHW", "NCHW"))

    def bn(x, g, b, m, v):
        sc = g / jnp.sqrt(v + EPS)
        sh = b - m * sc
        return x * sc[None, :, None, None] + sh[None, :, None, None]

    cin, cout = x.shape[1], params["w1"].shape[0]
    out = jax.nn.relu(bn(conv(x, params["w1"], stride, 1),
                         params["g1"], params["b1"], params["m1"], params["v1"]))
    out = bn(conv(out, params["w2"], 1, 1),
             params["g2"], params["b2"], params["m2"], params["v2"])
    if stride != 1 or cin != cout:
        skip = bn(conv(x, params["ws"], stride, 0),
                  params["gs"], params["bs"], params["ms"], params["vs"])
    else:
        skip = x
    return jax.nn.relu(out + skip)


# ---------------------------------- main ------------------------------------ #
if __name__ == "__main__":
    N, Cin, Cout, H, W, stride = 2, 4, 8, 16, 16, 2

    key = jax.random.PRNGKey(0)
    ks = jax.random.split(key, 16)

    def normal(k, shape, s=0.1):
        return (s * jax.random.normal(k, shape)).astype(jnp.float32)

    def positive(k, shape):
        return jax.random.uniform(k, shape, minval=0.5, maxval=1.5).astype(jnp.float32)

    params = dict(
        w1=normal(ks[0], (Cout, Cin, 3, 3)),
        g1=positive(ks[1], (Cout,)), b1=normal(ks[2], (Cout,)),
        m1=normal(ks[3], (Cout,)), v1=positive(ks[4], (Cout,)),
        w2=normal(ks[5], (Cout, Cout, 3, 3)),
        g2=positive(ks[6], (Cout,)), b2=normal(ks[7], (Cout,)),
        m2=normal(ks[8], (Cout,)), v2=positive(ks[9], (Cout,)),
        ws=normal(ks[10], (Cout, Cin, 1, 1)),
        gs=positive(ks[11], (Cout,)), bs=normal(ks[12], (Cout,)),
        ms=normal(ks[13], (Cout,)), vs=positive(ks[14], (Cout,)),
    )

    x = normal(ks[15], (N, Cin, H, W), s=1.0)

    fwd = jax.jit(functools.partial(residual_block_forward, stride=stride))
    out = jax.block_until_ready(fwd(x, params))

    ref = jax.block_until_ready(_ref_forward(x, params, stride))
    # bf16 matmul inputs + bf16 output (f32 accumulation) -> loose tolerance.
    np.testing.assert_allclose(np.asarray(out).astype(np.float32),
                               np.asarray(ref), rtol=2.5e-2, atol=2.5e-2)

    print("KERNEL_OK")
</pallas_src>

<mosaic_0001>
module attributes {stable_mosaic.version = 11 : i64} {
  func.func @_residual_block_kernel(%arg0: i32, %arg1: memref<1x4x9x9x8xbf16, #tpu.memory_space<vmem>>, %arg2: memref<9x8x128xbf16, #tpu.memory_space<vmem>>, %arg3: memref<1x128xf32, #tpu.memory_space<vmem>>, %arg4: memref<9x128x128xbf16, #tpu.memory_space<vmem>>, %arg5: memref<1x128xf32, #tpu.memory_space<vmem>>, %arg6: memref<8x128xbf16, #tpu.memory_space<vmem>>, %arg7: memref<1x128xf32, #tpu.memory_space<vmem>>, %arg8: memref<1x8x8x128xbf16, #tpu.memory_space<vmem>>, %arg9: memref<1x10x16x128xbf16, #tpu.memory_space<vmem>>) attributes {dimension_semantics = [#tpu.dimension_semantics<parallel>], iteration_bounds = array<i64: 2>, scalar_prefetch = 0 : i64, scratch_operands = 1 : i64, tpu.core_type = #tpu.core_type<tc>, window_params = [{transform_indices = @transform_0, window_bounds = array<i64: 1, 4, 9, 9, 8>}, {pipeline_mode = #tpu.pipeline_mode<synchronous>, transform_indices = @transform_1, window_bounds = array<i64: 9, 8, 128>}, {pipeline_mode = #tpu.pipeline_mode<synchronous>, transform_indices = @transform_2, window_bounds = array<i64: 1, 128>}, {pipeline_mode = #tpu.pipeline_mode<synchronous>, transform_indices = @transform_3, window_bounds = array<i64: 9, 128, 128>}, {pipeline_mode = #tpu.pipeline_mode<synchronous>, transform_indices = @transform_4, window_bounds = array<i64: 1, 128>}, {pipeline_mode = #tpu.pipeline_mode<synchronous>, transform_indices = @transform_5, window_bounds = array<i64: 8, 128>}, {pipeline_mode = #tpu.pipeline_mode<synchronous>, transform_indices = @transform_6, window_bounds = array<i64: 1, 128>}, {transform_indices = @transform_7, window_bounds = array<i64: 1, 8, 8, 128>}]} {
    %c0 = arith.constant 0 : index
    %c0_0 = arith.constant 0 : index
    %c0_1 = arith.constant 0 : index
    %c0_2 = arith.constant 0 : index
    %c0_3 = arith.constant 0 : index
    %0 = vector.load %arg1[%c0, %c0_0, %c0_1, %c0_2, %c0_3] : memref<1x4x9x9x8xbf16, #tpu.memory_space<vmem>>, vector<1x1x8x8x8xbf16>
    %1 = vector.shape_cast %0 : vector<1x1x8x8x8xbf16> to vector<1x8x8x8xbf16>
    %2 = vector.shape_cast %1 : vector<1x8x8x8xbf16> to vector<64x8xbf16>
    %c0_4 = arith.constant 0 : index
    %c0_5 = arith.constant 0 : index
    %c0_6 = arith.constant 0 : index
    %3 = vector.load %arg2[%c0_4, %c0_5, %c0_6] : memref<9x8x128xbf16, #tpu.memory_space<vmem>>, vector<1x8x128xbf16>
    %4 = vector.shape_cast %3 : vector<1x8x128xbf16> to vector<8x128xbf16>
    %cst = arith.constant dense<0.000000e+00> : vector<64x128xf32>
    %5 = tpu.matmul %2, %4, %cst {dimension_numbers = #tpu.dot_dimension_numbers<[1], [0], [0], [1], [0, 0, 1, 1], [], []>} : vector<64x8xbf16>, vector<8x128xbf16>, vector<64x128xf32> -> vector<64x128xf32>
    %c0_7 = arith.constant 0 : index
    %c1 = arith.constant 1 : index
    %c0_8 = arith.constant 0 : index
    %c0_9 = arith.constant 0 : index
    %c0_10 = arith.constant 0 : index
    %6 = vector.load %arg1[%c0_7, %c1, %c0_8, %c0_9, %c0_10] : memref<1x4x9x9x8xbf16, #tpu.memory_space<vmem>>, vector<1x1x8x8x8xbf16>
    %7 = vector.shape_cast %6 : vector<1x1x8x8x8xbf16> to vector<1x8x8x8xbf16>
    %8 = vector.shape_cast %7 : vector<1x8x8x8xbf16> to vector<64x8xbf16>
    %c1_11 = arith.constant 1 : index
    %c0_12 = arith.constant 0 : index
    %c0_13 = arith.constant 0 : index
    %9 = vector.load %arg2[%c1_11, %c0_12, %c0_13] : memref<9x8x128xbf16, #tpu.memory_space<vmem>>, vector<1x8x128xbf16>
    %10 = vector.shape_cast %9 : vector<1x8x128xbf16> to vector<8x128xbf16>
    %cst_14 = arith.constant dense<0.000000e+00> : vector<64x128xf32>
    %11 = tpu.matmul %8, %10, %cst_14 {dimension_numbers = #tpu.dot_dimension_numbers<[1], [0], [0], [1], [0, 0, 1, 1], [], []>} : vector<64x8xbf16>, vector<8x128xbf16>, vector<64x128xf32> -> vector<64x128xf32>
    %12 = arith.addf %5, %11 : vector<64x128xf32>
    %c0_15 = arith.constant 0 : index
    %c0_16 = arith.constant 0 : index
    %c0_17 = arith.constant 0 : index
    %c1_18 = arith.constant 1 : index
    %c0_19 = arith.constant 0 : index
    %13 = vector.load %arg1[%c0_15, %c0_16, %c0_17, %c1_18, %c0_19] : memref<1x4x9x9x8xbf16, #tpu.memory_space<vmem>>, vector<1x1x8x8x8xbf16>
    %14 = vector.shape_cast %13 : vector<1x1x8x8x8xbf16> to vector<1x8x8x8xbf16>
    %15 = vector.shape_cast %14 : vector<1x8x8x8xbf16> to vector<64x8xbf16>
    %c2 = arith.constant 2 : index
    %c0_20 = arith.constant 0 : index
    %c0_21 = arith.constant 0 : index
    %16 = vector.load %arg2[%c2, %c0_20, %c0_21] : memref<9x8x128xbf16, #tpu.memory_space<vmem>>, vector<1x8x128xbf16>
    %17 = vector.shape_cast %16 : vector<1x8x128xbf16> to vector<8x128xbf16>
    %cst_22 = arith.constant dense<0.000000e+00> : vector<64x128xf32>
    %18 = tpu.matmul %15, %17, %cst_22 {dimension_numbers = #tpu.dot_dimension_numbers<[1], [0], [0], [1], [0, 0, 1, 1], [], []>} : vector<64x8xbf16>, vector<8x128xbf16>, vector<64x128xf32> -> vector<64x128xf32>
    %19 = arith.addf %12, %18 : vector<64x128xf32>
    %c0_23 = arith.constant 0 : index
    %c2_24 = arith.constant 2 : index
    %c0_25 = arith.constant 0 : index
    %c0_26 = arith.constant 0 : index
    %c0_27 = arith.constant 0 : index
    %20 = vector.load %arg1[%c0_23, %c2_24, %c0_25, %c0_26, %c0_27] : memref<1x4x9x9x8xbf16, #tpu.memory_space<vmem>>, vector<1x1x8x8x8xbf16>
    %21 = vector.shape_cast %20 : vector<1x1x8x8x8xbf16> to vector<1x8x8x8xbf16>
    %22 = vector.shape_cast %21 : vector<1x8x8x8xbf16> to vector<64x8xbf16>
    %c3 = arith.constant 3 : index
    %c0_28 = arith.constant 0 : index
    %c0_29 = arith.constant 0 : index
    %23 = vector.load %arg2[%c3, %c0_28, %c0_29] : memref<9x8x128xbf16, #tpu.memory_space<vmem>>, vector<1x8x128xbf16>
    %24 = vector.shape_cast %23 : vector<1x8x128xbf16> to vector<8x128xbf16>
    %cst_30 = arith.constant dense<0.000000e+00> : vector<64x128xf32>
    %25 = tpu.matmul %22, %24, %cst_30 {dimension_numbers = #tpu.dot_dimension_numbers<[1], [0], [0], [1], [0, 0, 1, 1], [], []>} : vector<64x8xbf16>, vector<8x128xbf16>, vector<64x128xf32> -> vector<64x128xf32>
    %26 = arith.addf %19, %25 : vector<64x128xf32>
    %c0_31 = arith.constant 0 : index
    %c3_32 = arith.constant 3 : index
    %c0_33 = arith.constant 0 : index
    %c0_34 = arith.constant 0 : index
    %c0_35 = arith.constant 0 : index
    %27 = vector.load %arg1[%c0_31, %c3_32, %c0_33, %c0_34, %c0_35] : memref<1x4x9x9x8xbf16, #tpu.memory_space<vmem>>, vector<1x1x8x8x8xbf16>
    %28 = vector.shape_cast %27 : vector<1x1x8x8x8xbf16> to vector<1x8x8x8xbf16>
    %29 = vector.shape_cast %28 : vector<1x8x8x8xbf16> to vector<64x8xbf16>
    %c4 = arith.constant 4 : index
    %c0_36 = arith.constant 0 : index
    %c0_37 = arith.constant 0 : index
    %30 = vector.load %arg2[%c4, %c0_36, %c0_37] : memref<9x8x128xbf16, #tpu.memory_space<vmem>>, vector<1x8x128xbf16>
    %31 = vector.shape_cast %30 : vector<1x8x128xbf16> to vector<8x128xbf16>
    %cst_38 = arith.constant dense<0.000000e+00> : vector<64x128xf32>
    %32 = tpu.matmul %29, %31, %cst_38 {dimension_numbers = #tpu.dot_dimension_numbers<[1], [0], [0], [1], [0, 0, 1, 1], [], []>} : vector<64x8xbf16>, vector<8x128xbf16>, vector<64x128xf32> -> vector<64x128xf32>
    %33 = arith.addf %26, %32 : vector<64x128xf32>
    %c0_39 = arith.constant 0 : index
    %c2_40 = arith.constant 2 : index
    %c0_41 = arith.constant 0 : index
    %c1_42 = arith.constant 1 : index
    %c0_43 = arith.constant 0 : index
    %34 = vector.load %arg1[%c0_39, %c2_40, %c0_41, %c1_42, %c0_43] : memref<1x4x9x9x8xbf16, #tpu.memory_space<vmem>>, vector<1x1x8x8x8xbf16>
    %35 = vector.shape_cast %34 : vector<1x1x8x8x8xbf16> to vector<1x8x8x8xbf16>
    %36 = vector.shape_cast %35 : vector<1x8x8x8xbf16> to vector<64x8xbf16>
    %c5 = arith.constant 5 : index
    %c0_44 = arith.constant 0 : index
    %c0_45 = arith.constant 0 : index
    %37 = vector.load %arg2[%c5, %c0_44, %c0_45] : memref<9x8x128xbf16, #tpu.memory_space<vmem>>, vector<1x8x128xbf16>
    %38 = vector.shape_cast %37 : vector<1x8x128xbf16> to vector<8x128xbf16>
    %cst_46 = arith.constant dense<0.000000e+00> : vector<64x128xf32>
    %39 = tpu.matmul %36, %38, %cst_46 {dimension_numbers = #tpu.dot_dimension_numbers<[1], [0], [0], [1], [0, 0, 1, 1], [], []>} : vector<64x8xbf16>, vector<8x128xbf16>, vector<64x128xf32> -> vector<64x128xf32>
    %40 = arith.addf %33, %39 : vector<64x128xf32>
    %c0_47 = arith.constant 0 : index
    %c0_48 = arith.constant 0 : index
    %c1_49 = arith.constant 1 : index
    %c0_50 = arith.constant 0 : index
    %c0_51 = arith.constant 0 : index
    %41 = vector.load %arg1[%c0_47, %c0_48, %c1_49, %c0_50, %c0_51] : memref<1x4x9x9x8xbf16, #tpu.memory_space<vmem>>, vector<1x1x8x8x8xbf16>
    %42 = vector.shape_cast %41 : vector<1x1x8x8x8xbf16> to vector<1x8x8x8xbf16>
    %43 = vector.shape_cast %42 : vector<1x8x8x8xbf16> to vector<64x8xbf16>
    %c6 = arith.constant 6 : index
    %c0_52 = arith.constant 0 : index
    %c0_53 = arith.constant 0 : index
    %44 = vector.load %arg2[%c6, %c0_52, %c0_53] : memref<9x8x128xbf16, #tpu.memory_space<vmem>>, vector<1x8x128xbf16>
    %45 = vector.shape_cast %44 : vector<1x8x128xbf16> to vector<8x128xbf16>
    %cst_54 = arith.constant dense<0.000000e+00> : vector<64x128xf32>
    %46 = tpu.matmul %43, %45, %cst_54 {dimension_numbers = #tpu.dot_dimension_numbers<[1], [0], [0], [1], [0, 0, 1, 1], [], []>} : vector<64x8xbf16>, vector<8x128xbf16>, vector<64x128xf32> -> vector<64x128xf32>
    %47 = arith.addf %40, %46 : vector<64x128xf32>
    %c0_55 = arith.constant 0 : index
    %c1_56 = arith.constant 1 : index
    %c1_57 = arith.constant 1 : index
    %c0_58 = arith.constant 0 : index
    %c0_59 = arith.constant 0 : index
    %48 = vector.load %arg1[%c0_55, %c1_56, %c1_57, %c0_58, %c0_59] : memref<1x4x9x9x8xbf16, #tpu.memory_space<vmem>>, vector<1x1x8x8x8xbf16>
    %49 = vector.shape_cast %48 : vector<1x1x8x8x8xbf16> to vector<1x8x8x8xbf16>
    %50 = vector.shape_cast %49 : vector<1x8x8x8xbf16> to vector<64x8xbf16>
    %c7 = arith.constant 7 : index
    %c0_60 = arith.constant 0 : index
    %c0_61 = arith.constant 0 : index
    %51 = vector.load %arg2[%c7, %c0_60, %c0_61] : memref<9x8x128xbf16, #tpu.memory_space<vmem>>, vector<1x8x128xbf16>
    %52 = vector.shape_cast %51 : vector<1x8x128xbf16> to vector<8x128xbf16>
    %cst_62 = arith.constant dense<0.000000e+00> : vector<64x128xf32>
    %53 = tpu.matmul %50, %52, %cst_62 {dimension_numbers = #tpu.dot_dimension_numbers<[1], [0], [0], [1], [0, 0, 1, 1], [], []>} : vector<64x8xbf16>, vector<8x128xbf16>, vector<64x128xf32> -> vector<64x128xf32>
    %54 = arith.addf %47, %53 : vector<64x128xf32>
    %c0_63 = arith.constant 0 : index
    %c0_64 = arith.constant 0 : index
    %c1_65 = arith.constant 1 : index
    %c1_66 = arith.constant 1 : index
    %c0_67 = arith.constant 0 : index
    %55 = vector.load %arg1[%c0_63, %c0_64, %c1_65, %c1_66, %c0_67] : memref<1x4x9x9x8xbf16, #tpu.memory_space<vmem>>, vector<1x1x8x8x8xbf16>
    %56 = vector.shape_cast %55 : vector<1x1x8x8x8xbf16> to vector<1x8x8x8xbf16>
    %57 = vector.shape_cast %56 : vector<1x8x8x8xbf16> to vector<64x8xbf16>
    %c8 = arith.constant 8 : index
    %c0_68 = arith.constant 0 : index
    %c0_69 = arith.constant 0 : index
    %58 = vector.load %arg2[%c8, %c0_68, %c0_69] : memref<9x8x128xbf16, #tpu.memory_space<vmem>>, vector<1x8x128xbf16>
    %59 = vector.shape_cast %58 : vector<1x8x128xbf16> to vector<8x128xbf16>
    %cst_70 = arith.constant dense<0.000000e+00> : vector<64x128xf32>
    %60 = tpu.matmul %57, %59, %cst_70 {dimension_numbers = #tpu.dot_dimension_numbers<[1], [0], [0], [1], [0, 0, 1, 1], [], []>} : vector<64x8xbf16>, vector<8x128xbf16>, vector<64x128xf32> -> vector<64x128xf32>
    %61 = arith.addf %54, %60 : vector<64x128xf32>
    %c0_71 = arith.constant 0 : index
    %c0_72 = arith.constant 0 : index
    %62 = vector.load %arg3[%c0_71, %c0_72] : memref<1x128xf32, #tpu.memory_space<vmem>>, vector<1x128xf32>
    %63 = vector.broadcast %62 : vector<1x128xf32> to vector<64x128xf32>
    %64 = arith.addf %61, %63 : vector<64x128xf32>
    %cst_73 = arith.constant 0.000000e+00 : f32
    %65 = vector.broadcast %cst_73 : f32 to vector<64x128xf32>
    %66 = arith.maximumf %64, %65 : vector<64x128xf32>
    %cst_74 = arith.constant 0.000000e+00 : bf16
    %67 = vector.broadcast %cst_74 : bf16 to vector<1x16x128xbf16>
    %cst_75 = arith.constant 0.000000e+00 : bf16
    %68 = vector.broadcast %cst_75 : bf16 to vector<1x10x128xbf16>
    %c0_76 = arith.constant 0 : index
    %c0_77 = arith.constant 0 : index
    %c0_78 = arith.constant 0 : index
    %c0_79 = arith.constant 0 : index
    %69 = vector.load %arg9[%c0_76, %c0_77, %c0_78, %c0_79] : memref<1x10x16x128xbf16, #tpu.memory_space<vmem>>, vector<1x1x16x128xbf16>
    %70 = vector.shape_cast %69 : vector<1x1x16x128xbf16> to vector<1x16x128xbf16>
    %71 = vector.shape_cast %67 : vector<1x16x128xbf16> to vector<1x1x16x128xbf16>
    tpu.vector_store %arg9[%c0_76, %c0_77, %c0_78, %c0_79], %71 {strides = array<i32>} : memref<1x10x16x128xbf16, #tpu.memory_space<vmem>>, vector<1x1x16x128xbf16>,
    %c0_80 = arith.constant 0 : index
    %c9 = arith.constant 9 : index
    %c0_81 = arith.constant 0 : index
    %c0_82 = arith.constant 0 : index
    %72 = vector.load %arg9[%c0_80, %c9, %c0_81, %c0_82] : memref<1x10x16x128xbf16, #tpu.memory_space<vmem>>, vector<1x1x16x128xbf16>
    %73 = vector.shape_cast %72 : vector<1x1x16x128xbf16> to vector<1x16x128xbf16>
    %74 = vector.shape_cast %67 : vector<1x16x128xbf16> to vector<1x1x16x128xbf16>
    tpu.vector_store %arg9[%c0_80, %c9, %c0_81, %c0_82], %74 {strides = array<i32>} : memref<1x10x16x128xbf16, #tpu.memory_space<vmem>>, vector<1x1x16x128xbf16>,
    %c0_83 = arith.constant 0 : index
    %c0_84 = arith.constant 0 : index
    %c0_85 = arith.constant 0 : index
    %c0_86 = arith.constant 0 : index
    %75 = vector.load %arg9[%c0_83, %c0_84, %c0_85, %c0_86] : memref<1x10x16x128xbf16, #tpu.memory_space<vmem>>, vector<1x10x1x128xbf16>
    %76 = vector.shape_cast %75 : vector<1x10x1x128xbf16> to vector<1x10x128xbf16>
    %77 = vector.shape_cast %68 : vector<1x10x128xbf16> to vector<1x10x1x128xbf16>
    tpu.vector_store %arg9[%c0_83, %c0_84, %c0_85, %c0_86], %77 {strides = array<i32>} : memref<1x10x16x128xbf16, #tpu.memory_space<vmem>>, vector<1x10x1x128xbf16>,
    %c0_87 = arith.constant 0 : index
    %c0_88 = arith.constant 0 : index
    %c9_89 = arith.constant 9 : index
    %c0_90 = arith.constant 0 : index
    %78 = vector.load %arg9[%c0_87, %c0_88, %c9_89, %c0_90] : memref<1x10x16x128xbf16, #tpu.memory_space<vmem>>, vector<1x10x1x128xbf16>
    %79 = vector.shape_cast %78 : vector<1x10x1x128xbf16> to vector<1x10x128xbf16>
    %80 = vector.shape_cast %68 : vector<1x10x128xbf16> to vector<1x10x1x128xbf16>
    tpu.vector_store %arg9[%c0_87, %c0_88, %c9_89, %c0_90], %80 {strides = array<i32>} : memref<1x10x16x128xbf16, #tpu.memory_space<vmem>>, vector<1x10x1x128xbf16>,
    %81 = vector.shape_cast %66 : vector<64x128xf32> to vector<1x8x8x128xf32>
    %82 = arith.truncf %81 : vector<1x8x8x128xf32> to vector<1x8x8x128xbf16>
    %c0_91 = arith.constant 0 : index
    %c1_92 = arith.constant 1 : index
    %c1_93 = arith.constant 1 : index
    %c0_94 = arith.constant 0 : index
    %83 = vector.load %arg9[%c0_91, %c1_92, %c1_93, %c0_94] : memref<1x10x16x128xbf16, #tpu.memory_space<vmem>>, vector<1x8x8x128xbf16>
    tpu.vector_store %arg9[%c0_91, %c1_92, %c1_93, %c0_94], %82 {strides = array<i32>} : memref<1x10x16x128xbf16, #tpu.memory_space<vmem>>, vector<1x8x8x128xbf16>,
    %c0_95 = arith.constant 0 : index
    %c0_96 = arith.constant 0 : index
    %c0_97 = arith.constant 0 : index
    %c0_98 = arith.constant 0 : index
    %84 = vector.load %arg9[%c0_95, %c0_96, %c0_97, %c0_98] : memref<1x10x16x128xbf16, #tpu.memory_space<vmem>>, vector<1x8x8x128xbf16>
    %85 = vector.shape_cast %84 : vector<1x8x8x128xbf16> to vector<64x128xbf16>
    %c0_99 = arith.constant 0 : index
    %c0_100 = arith.constant 0 : index
    %c0_101 = arith.constant 0 : index
    %86 = vector.load %arg4[%c0_99, %c0_100, %c0_101] : memref<9x128x128xbf16, #tpu.memory_space<vmem>>, vector<1x128x128xbf16>
    %87 = vector.shape_cast %86 : vector<1x128x128xbf16> to vector<128x128xbf16>
    %cst_102 = arith.constant dense<0.000000e+00> : vector<64x128xf32>
    %88 = tpu.matmul %85, %87, %cst_102 {dimension_numbers = #tpu.dot_dimension_numbers<[1], [0], [0], [1], [0, 0, 1, 1], [], []>} : vector<64x128xbf16>, vector<128x128xbf16>, vector<64x128xf32> -> vector<64x128xf32>
    %c0_103 = arith.constant 0 : index
    %c0_104 = arith.constant 0 : index
    %c1_105 = arith.constant 1 : index
    %c0_106 = arith.constant 0 : index
    %89 = vector.load %arg9[%c0_103, %c0_104, %c1_105, %c0_106] : memref<1x10x16x128xbf16, #tpu.memory_space<vmem>>, vector<1x8x8x128xbf16>
    %90 = vector.shape_cast %89 : vector<1x8x8x128xbf16> to vector<64x128xbf16>
    %c1_107 = arith.constant 1 : index
    %c0_108 = arith.constant 0 : index
    %c0_109 = arith.constant 0 : index
    %91 = vector.load %arg4[%c1_107, %c0_108, %c0_109] : memref<9x128x128xbf16, #tpu.memory_space<vmem>>, vector<1x128x128xbf16>
    %92 = vector.shape_cast %91 : vector<1x128x128xbf16> to vector<128x128xbf16>
    %cst_110 = arith.constant dense<0.000000e+00> : vector<64x128xf32>
    %93 = tpu.matmul %90, %92, %cst_110 {dimension_numbers = #tpu.dot_dimension_numbers<[1], [0], [0], [1], [0, 0, 1, 1], [], []>} : vector<64x128xbf16>, vector<128x128xbf16>, vector<64x128xf32> -> vector<64x128xf32>
    %94 = arith.addf %88, %93 : vector<64x128xf32>
    %c0_111 = arith.constant 0 : index
    %c0_112 = arith.constant 0 : index
    %c2_113 = arith.constant 2 : index
    %c0_114 = arith.constant 0 : index
    %95 = vector.load %arg9[%c0_111, %c0_112, %c2_113, %c0_114] : memref<1x10x16x128xbf16, #tpu.memory_space<vmem>>, vector<1x8x8x128xbf16>
    %96 = vector.shape_cast %95 : vector<1x8x8x128xbf16> to vector<64x128xbf16>
    %c2_115 = arith.constant 2 : index
    %c0_116 = arith.constant 0 : index
    %c0_117 = arith.constant 0 : index
    %97 = vector.load %arg4[%c2_115, %c0_116, %c0_117] : memref<9x128x128xbf16, #tpu.memory_space<vmem>>, vector<1x128x128xbf16>
    %98 = vector.shape_cast %97 : vector<1x128x128xbf16> to vector<128x128xbf16>
    %cst_118 = arith.constant dense<0.000000e+00> : vector<64x128xf32>
    %99 = tpu.matmul %96, %98, %cst_118 {dimension_numbers = #tpu.dot_dimension_numbers<[1], [0], [0], [1], [0, 0, 1, 1], [], []>} : vector<64x128xbf16>, vector<128x128xbf16>, vector<64x128xf32> -> vector<64x128xf32>
    %100 = arith.addf %94, %99 : vector<64x128xf32>
    %c0_119 = arith.constant 0 : index
    %c1_120 = arith.constant 1 : index
    %c0_121 = arith.constant 0 : index
    %c0_122 = arith.constant 0 : index
    %101 = vector.load %arg9[%c0_119, %c1_120, %c0_121, %c0_122] : memref<1x10x16x128xbf16, #tpu.memory_space<vmem>>, vector<1x8x8x128xbf16>
    %102 = vector.shape_cast %101 : vector<1x8x8x128xbf16> to vector<64x128xbf16>
    %c3_123 = arith.constant 3 : index
    %c0_124 = arith.constant 0 : index
    %c0_125 = arith.constant 0 : index
    %103 = vector.load %arg4[%c3_123, %c0_124, %c0_125] : memref<9x128x128xbf16, #tpu.memory_space<vmem>>, vector<1x128x128xbf16>
    %104 = vector.shape_cast %103 : vector<1x128x128xbf16> to vector<128x128xbf16>
    %cst_126 = arith.constant dense<0.000000e+00> : vector<64x128xf32>
    %105 = tpu.matmul %102, %104, %cst_126 {dimension_numbers = #tpu.dot_dimension_numbers<[1], [0], [0], [1], [0, 0, 1, 1], [], []>} : vector<64x128xbf16>, vector<128x128xbf16>, vector<64x128xf32> -> vector<64x128xf32>
    %106 = arith.addf %100, %105 : vector<64x128xf32>
    %c0_127 = arith.constant 0 : index
    %c1_128 = arith.constant 1 : index
    %c1_129 = arith.constant 1 : index
    %c0_130 = arith.constant 0 : index
    %107 = vector.load %arg9[%c0_127, %c1_128, %c1_129, %c0_130] : memref<1x10x16x128xbf16, #tpu.memory_space<vmem>>, vector<1x8x8x128xbf16>
    %108 = vector.shape_cast %107 : vector<1x8x8x128xbf16> to vector<64x128xbf16>
    %c4_131 = arith.constant 4 : index
    %c0_132 = arith.constant 0 : index
    %c0_133 = arith.constant 0 : index
    %109 = vector.load %arg4[%c4_131, %c0_132, %c0_133] : memref<9x128x128xbf16, #tpu.memory_space<vmem>>, vector<1x128x128xbf16>
    %110 = vector.shape_cast %109 : vector<1x128x128xbf16> to vector<128x128xbf16>
    %cst_134 = arith.constant dense<0.000000e+00> : vector<64x128xf32>
    %111 = tpu.matmul %108, %110, %cst_134 {dimension_numbers = #tpu.dot_dimension_numbers<[1], [0], [0], [1], [0, 0, 1, 1], [], []>} : vector<64x128xbf16>, vector<128x128xbf16>, vector<64x128xf32> -> vector<64x128xf32>
    %112 = arith.addf %106, %111 : vector<64x128xf32>
    %c0_135 = arith.constant 0 : index
    %c1_136 = arith.constant 1 : index
    %c2_137 = arith.constant 2 : index
    %c0_138 = arith.constant 0 : index
    %113 = vector.load %arg9[%c0_135, %c1_136, %c2_137, %c0_138] : memref<1x10x16x128xbf16, #tpu.memory_space<vmem>>, vector<1x8x8x128xbf16>
    %114 = vector.shape_cast %113 : vector<1x8x8x128xbf16> to vector<64x128xbf16>
    %c5_139 = arith.constant 5 : index
    %c0_140 = arith.constant 0 : index
    %c0_141 = arith.constant 0 : index
    %115 = vector.load %arg4[%c5_139, %c0_140, %c0_141] : memref<9x128x128xbf16, #tpu.memory_space<vmem>>, vector<1x128x128xbf16>
    %116 = vector.shape_cast %115 : vector<1x128x128xbf16> to vector<128x128xbf16>
    %cst_142 = arith.constant dense<0.000000e+00> : vector<64x128xf32>
    %117 = tpu.matmul %114, %116, %cst_142 {dimension_numbers = #tpu.dot_dimension_numbers<[1], [0], [0], [1], [0, 0, 1, 1], [], []>} : vector<64x128xbf16>, vector<128x128xbf16>, vector<64x128xf32> -> vector<64x128xf32>
    %118 = arith.addf %112, %117 : vector<64x128xf32>
    %c0_143 = arith.constant 0 : index
    %c2_144 = arith.constant 2 : index
    %c0_145 = arith.constant 0 : index
    %c0_146 = arith.constant 0 : index
    %119 = vector.load %arg9[%c0_143, %c2_144, %c0_145, %c0_146] : memref<1x10x16x128xbf16, #tpu.memory_space<vmem>>, vector<1x8x8x128xbf16>
    %120 = vector.shape_cast %119 : vector<1x8x8x128xbf16> to vector<64x128xbf16>
    %c6_147 = arith.constant 6 : index
    %c0_148 = arith.constant 0 : index
    %c0_149 = arith.constant 0 : index
    %121 = vector.load %arg4[%c6_147, %c0_148, %c0_149] : memref<9x128x128xbf16, #tpu.memory_space<vmem>>, vector<1x128x128xbf16>
    %122 = vector.shape_cast %121 : vector<1x128x128xbf16> to vector<128x128xbf16>
    %cst_150 = arith.constant dense<0.000000e+00> : vector<64x128xf32>
    %123 = tpu.matmul %120, %122, %cst_150 {dimension_numbers = #tpu.dot_dimension_numbers<[1], [0], [0], [1], [0, 0, 1, 1], [], []>} : vector<64x128xbf16>, vector<128x128xbf16>, vector<64x128xf32> -> vector<64x128xf32>
    %124 = arith.addf %118, %123 : vector<64x128xf32>
    %c0_151 = arith.constant 0 : index
    %c2_152 = arith.constant 2 : index
    %c1_153 = arith.constant 1 : index
    %c0_154 = arith.constant 0 : index
    %125 = vector.load %arg9[%c0_151, %c2_152, %c1_153, %c0_154] : memref<1x10x16x128xbf16, #tpu.memory_space<vmem>>, vector<1x8x8x128xbf16>
    %126 = vector.shape_cast %125 : vector<1x8x8x128xbf16> to vector<64x128xbf16>
    %c7_155 = arith.constant 7 : index
    %c0_156 = arith.constant 0 : index
    %c0_157 = arith.constant 0 : index
    %127 = vector.load %arg4[%c7_155, %c0_156, %c0_157] : memref<9x128x128xbf16, #tpu.memory_space<vmem>>, vector<1x128x128xbf16>
    %128 = vector.shape_cast %127 : vector<1x128x128xbf16> to vector<128x128xbf16>
    %cst_158 = arith.constant dense<0.000000e+00> : vector<64x128xf32>
    %129 = tpu.matmul %126, %128, %cst_158 {dimension_numbers = #tpu.dot_dimension_numbers<[1], [0], [0], [1], [0, 0, 1, 1], [], []>} : vector<64x128xbf16>, vector<128x128xbf16>, vector<64x128xf32> -> vector<64x128xf32>
    %130 = arith.addf %124, %129 : vector<64x128xf32>
    %c0_159 = arith.constant 0 : index
    %c2_160 = arith.constant 2 : index
    %c2_161 = arith.constant 2 : index
    %c0_162 = arith.constant 0 : index
    %131 = vector.load %arg9[%c0_159, %c2_160, %c2_161, %c0_162] : memref<1x10x16x128xbf16, #tpu.memory_space<vmem>>, vector<1x8x8x128xbf16>
    %132 = vector.shape_cast %131 : vector<1x8x8x128xbf16> to vector<64x128xbf16>
    %c8_163 = arith.constant 8 : index
    %c0_164 = arith.constant 0 : index
    %c0_165 = arith.constant 0 : index
    %133 = vector.load %arg4[%c8_163, %c0_164, %c0_165] : memref<9x128x128xbf16, #tpu.memory_space<vmem>>, vector<1x128x128xbf16>
    %134 = vector.shape_cast %133 : vector<1x128x128xbf16> to vector<128x128xbf16>
    %cst_166 = arith.constant dense<0.000000e+00> : vector<64x128xf32>
    %135 = tpu.matmul %132, %134, %cst_166 {dimension_numbers = #tpu.dot_dimension_numbers<[1], [0], [0], [1], [0, 0, 1, 1], [], []>} : vector<64x128xbf16>, vector<128x128xbf16>, vector<64x128xf32> -> vector<64x128xf32>
    %136 = arith.addf %130, %135 : vector<64x128xf32>
    %c0_167 = arith.constant 0 : index
    %c0_168 = arith.constant 0 : index
    %137 = vector.load %arg5[%c0_167, %c0_168] : memref<1x128xf32, #tpu.memory_space<vmem>>, vector<1x128xf32>
    %138 = vector.broadcast %137 : vector<1x128xf32> to vector<64x128xf32>
    %139 = arith.addf %136, %138 : vector<64x128xf32>
    %c0_169 = arith.constant 0 : index
    %c0_170 = arith.constant 0 : index
    %140 = vector.load %arg6[%c0_169, %c0_170] : memref<8x128xbf16, #tpu.memory_space<vmem>>, vector<8x128xbf16>
    %cst_171 = arith.constant dense<0.000000e+00> : vector<64x128xf32>
    %141 = tpu.matmul %29, %140, %cst_171 {dimension_numbers = #tpu.dot_dimension_numbers<[1], [0], [0], [1], [0, 0, 1, 1], [], []>} : vector<64x8xbf16>, vector<8x128xbf16>, vector<64x128xf32> -> vector<64x128xf32>
    %142 = arith.addf %139, %141 : vector<64x128xf32>
    %c0_172 = arith.constant 0 : index
    %c0_173 = arith.constant 0 : index
    %143 = vector.load %arg7[%c0_172, %c0_173] : memref<1x128xf32, #tpu.memory_space<vmem>>, vector<1x128xf32>
    %144 = vector.broadcast %143 : vector<1x128xf32> to vector<64x128xf32>
    %145 = arith.addf %142, %144 : vector<64x128xf32>
    %cst_174 = arith.constant 0.000000e+00 : f32
    %146 = vector.broadcast %cst_174 : f32 to vector<64x128xf32>
    %147 = arith.maximumf %145, %146 : vector<64x128xf32>
    %148 = vector.shape_cast %147 : vector<64x128xf32> to vector<1x8x8x128xf32>
    %149 = arith.truncf %148 : vector<1x8x8x128xf32> to vector<1x8x8x128xbf16>
    %c0_175 = arith.constant 0 : index
    %c0_176 = arith.constant 0 : index
    %c0_177 = arith.constant 0 : index
    %c0_178 = arith.constant 0 : index
    %150 = vector.load %arg8[%c0_175, %c0_176, %c0_177, %c0_178] : memref<1x8x8x128xbf16, #tpu.memory_space<vmem>>, vector<1x8x8x128xbf16>
    tpu.vector_store %arg8[%c0_175, %c0_176, %c0_177, %c0_178], %149 {strides = array<i32>} : memref<1x8x8x128xbf16, #tpu.memory_space<vmem>>, vector<1x8x8x128xbf16>,
    return
  }
  func.func @transform_0(%arg0: i32) -> (i32, i32, i32, i32, i32) {
    %c0_i32 = arith.constant 0 : i32
    %c0_i32_0 = arith.constant 0 : i32
    %c0_i32_1 = arith.constant 0 : i32
    %c0_i32_2 = arith.constant 0 : i32
    %c0_i32_3 = arith.constant 0 : i32
    return %arg0, %c0_i32, %c0_i32_0, %c0_i32_1, %c0_i32_2 : i32, i32, i32, i32, i32
  }
  func.func @transform_1(%arg0: i32) -> (i32, i32, i32) {
    %c0_i32 = arith.constant 0 : i32
    %c0_i32_0 = arith.constant 0 : i32
    %c0_i32_1 = arith.constant 0 : i32
    %c0_i32_2 = arith.constant 0 : i32
    return %c0_i32, %c0_i32_0, %c0_i32_1 : i32, i32, i32
  }
  func.func @transform_2(%arg0: i32) -> (i32, i32) {
    %c0_i32 = arith.constant 0 : i32
    %c0_i32_0 = arith.constant 0 : i32
    %c0_i32_1 = arith.constant 0 : i32
    return %c0_i32, %c0_i32_0 : i32, i32
  }
  func.func @transform_3(%arg0: i32) -> (i32, i32, i32) {
    %c0_i32 = arith.constant 0 : i32
    %c0_i32_0 = arith.constant 0 : i32
    %c0_i32_1 = arith.constant 0 : i32
    %c0_i32_2 = arith.constant 0 : i32
    return %c0_i32, %c0_i32_0, %c0_i32_1 : i32, i32, i32
  }
  func.func @transform_4(%arg0: i32) -> (i32, i32) {
    %c0_i32 = arith.constant 0 : i32
    %c0_i32_0 = arith.constant 0 : i32
    %c0_i32_1 = arith.constant 0 : i32
    return %c0_i32, %c0_i32_0 : i32, i32
  }
  func.func @transform_5(%arg0: i32) -> (i32, i32) {
    %c0_i32 = arith.constant 0 : i32
    %c0_i32_0 = arith.constant 0 : i32
    %c0_i32_1 = arith.constant 0 : i32
    return %c0_i32, %c0_i32_0 : i32, i32
  }
  func.func @transform_6(%arg0: i32) -> (i32, i32) {
    %c0_i32 = arith.constant 0 : i32
    %c0_i32_0 = arith.constant 0 : i32
    %c0_i32_1 = arith.constant 0 : i32
    return %c0_i32, %c0_i32_0 : i32, i32
  }
  func.func @transform_7(%arg0: i32) -> (i32, i32, i32, i32) {
    %c0_i32 = arith.constant 0 : i32
    %c0_i32_0 = arith.constant 0 : i32
    %c0_i32_1 = arith.constant 0 : i32
    %c0_i32_2 = arith.constant 0 : i32
    return %arg0, %c0_i32, %c0_i32_0, %c0_i32_1 : i32, i32, i32, i32
  }
}

</mosaic_0001>

<llo_original>
// kernel: residual_block_forward.1
$region0: #{residual_block_forward.1}
  #allocation0 [shape = 'u32[]', space=smem, size = 0x4, offset = 0x4, fixed_abs, tag = 'smem constant byte address 0x4 - core index']
  #allocation1 [shape = 'u32[72,128]{1,0:T(1,128)}', space=vmem, size = 0x9000, scoped, tag = 'internal scratch']
  #allocation2 [shape = 'bf16[1,10,16,128]{3,2,1,0:T(8,128)(2,1)}', space=vmem, size = 0xa000, scoped, tag = 'scratch operand']
  %s0 = inlined_call_operand.vmem [shape: bf16[2,4,9,9,8], index: 0, kind: input, shape index: {}]
  %s1 = inlined_call_operand.vmem [shape: bf16[9,8,128], index: 1, kind: input, shape index: {}]
  %s2 = inlined_call_operand.vmem [shape: f32[1,128], index: 2, kind: input, shape index: {}]
  %s3 = inlined_call_operand.vmem [shape: bf16[9,128,128], index: 3, kind: input, shape index: {}]
  %s4 = inlined_call_operand.vmem [shape: f32[1,128], index: 4, kind: input, shape index: {}]
  %s5 = inlined_call_operand.vmem [shape: bf16[8,128], index: 5, kind: input, shape index: {}]
  %s6 = inlined_call_operand.vmem [shape: f32[1,128], index: 6, kind: input, shape index: {}]
  %s7 = inlined_call_operand.vmem [shape: bf16[2,8,8,128], index: 7, kind: output, shape index: {}]
  %s8 = sld [smem:[#allocation0]]
  $region61: #{residual_block_forward.1} parent=0
    _
  %s10 = ssub.s32 1, %s8
  %s11 = scalar_select 0, %s10, %s8
  loop: start=0, step=1, limit=4
  $region2: #{residual_block_forward.1} parent=0 // loop_pre_header
    _
  $region3: #{residual_block_forward.1} parent=0 // loop_header
    %s13 = sphi 0, %s17
    %p14 = scmp.ge.s32.totalorder %s13, 4
    %s23 = sphi 0, %s25
    %s26 = sphi 0, %s23
    %s27 = sphi 0, %s26
    %s43 = sphi 0, %s27
    %s47 = sphi 0, %s47
    %s49 = sphi 0, %s47
    %s50 = sphi 0, %s49
    %s64 = sphi 0, %s50
    %s68 = sphi 0, %s68
    %s70 = sphi 0, %s68
    %s71 = sphi 0, %s70
    %s85 = sphi 0, %s71
    %s89 = sphi 0, %s89
    %s91 = sphi 0, %s89
    %s92 = sphi 0, %s91
    %s106 = sphi 0, %s92
    %s110 = sphi 0, %s110
    %s112 = sphi 0, %s110
    %s113 = sphi 0, %s112
    %s127 = sphi 0, %s113
    %s131 = sphi 0, %s131
    %s133 = sphi 0, %s131
    %s134 = sphi 0, %s133
    %s148 = sphi 0, %s134
    %s152 = sphi 0, %s152
    %s154 = sphi 0, %s152
    %s155 = sphi 0, %s154
    %s169 = sphi 0, %s155
    %s175 = sphi 0, %s177
    %s178 = sphi 0, %s175
    %s179 = sphi 0, %s178
    %s195 = sphi 0, %s179
  $region4: #{residual_block_forward.1} parent=0 // loop_header_branch
    %16 = sbr.rel (%p14) target = $region8
  $region5: #{residual_block_forward.1} parent=0 // loop_body
    %s18 = ssub.s32 %s13, 1
    %s19 = ssub.s32 %s13, 2
    %s20 = sadd.s32 %s13, 1
    %s21 = ssub.s32 %s13, %s20
    %p22 = scmp.eq.s32.totalorder %s21, 0
    %s24 = sadd.s32 %s23, 1
    %s25 = scalar_select %p22, %s23, %s24
    %p28 = pneg %p22
    %p29 = scmp.eq.s32.totalorder %s13, 1
    %p30 = por %p28, %p29
    %p31 = scmp.ne.s32.totalorder %s23, %s26
    %p32 = scmp.eq.s32.totalorder %s13, 0
    %p33 = por %p31, %p32
    %p34 = scmp.ne.s32.totalorder %s23, %s26
    %p35 = scmp.eq.s32.totalorder %s18, 1
    %p36 = por %p34, %p35
    %p37 = scmp.ne.s32.totalorder %s26, %s27
    %p38 = scmp.eq.s32.totalorder %s18, 0
    %p39 = por %p37, %p38
    %p40 = scmp.ne.s32.totalorder %s26, %s27
    %p41 = scmp.eq.s32.totalorder %s19, 1
    %p42 = por %p40, %p41
    %p44 = scmp.ne.s32.totalorder %s27, %s43
    %p45 = scmp.eq.s32.totalorder %s19, 0
    %p46 = por %p44, %p45
    %s48 = sadd.s32 %s47, 1
    %p51 = scmp.eq.s32.totalorder %s13, 1
    %p52 = scmp.ne.s32.totalorder %s47, %s49
    %p53 = scmp.eq.s32.totalorder %s13, 0
    %p54 = por %p52, %p53
    %p55 = scmp.ne.s32.totalorder %s47, %s49
    %p56 = scmp.eq.s32.totalorder %s18, 1
    %p57 = por %p55, %p56
    %p58 = scmp.ne.s32.totalorder %s49, %s50
    %p59 = scmp.eq.s32.totalorder %s18, 0
    %p60 = por %p58, %p59
    %p61 = scmp.ne.s32.totalorder %s49, %s50
    %p62 = scmp.eq.s32.totalorder %s19, 1
    %p63 = por %p61, %p62
    %p65 = scmp.ne.s32.totalorder %s50, %s64
    %p66 = scmp.eq.s32.totalorder %s19, 0
    %p67 = por %p65, %p66
    %s69 = sadd.s32 %s68, 1
    %p72 = scmp.eq.s32.totalorder %s13, 1
    %p73 = scmp.ne.s32.totalorder %s68, %s70
    %p74 = scmp.eq.s32.totalorder %s13, 0
    %p75 = por %p73, %p74
    %p76 = scmp.ne.s32.totalorder %s68, %s70
    %p77 = scmp.eq.s32.totalorder %s18, 1
    %p78 = por %p76, %p77
    %p79 = scmp.ne.s32.totalorder %s70, %s71
    %p80 = scmp.eq.s32.totalorder %s18, 0
    %p81 = por %p79, %p80
    %p82 = scmp.ne.s32.totalorder %s70, %s71
    %p83 = scmp.eq.s32.totalorder %s19, 1
    %p84 = por %p82, %p83
    %p86 = scmp.ne.s32.totalorder %s71, %s85
    %p87 = scmp.eq.s32.totalorder %s19, 0
    %p88 = por %p86, %p87
    %s90 = sadd.s32 %s89, 1
    %p93 = scmp.eq.s32.totalorder %s13, 1
    %p94 = scmp.ne.s32.totalorder %s89, %s91
    %p95 = scmp.eq.s32.totalorder %s13, 0
    %p96 = por %p94, %p95
    %p97 = scmp.ne.s32.totalorder %s89, %s91
    %p98 = scmp.eq.s32.totalorder %s18, 1
    %p99 = por %p97, %p98
    %p100 = scmp.ne.s32.totalorder %s91, %s92
    %p101 = scmp.eq.s32.totalorder %s18, 0
    %p102 = por %p100, %p101
    %p103 = scmp.ne.s32.totalorder %s91, %s92
    %p104 = scmp.eq.s32.totalorder %s19, 1
    %p105 = por %p103, %p104
    %p107 = scmp.ne.s32.totalorder %s92, %s106
    %p108 = scmp.eq.s32.totalorder %s19, 0
    %p109 = por %p107, %p108
    %s111 = sadd.s32 %s110, 1
    %p114 = scmp.eq.s32.totalorder %s13, 1
    %p115 = scmp.ne.s32.totalorder %s110, %s112
    %p116 = scmp.eq.s32.totalorder %s13, 0
    %p117 = por %p115, %p116
    %p118 = scmp.ne.s32.totalorder %s110, %s112
    %p119 = scmp.eq.s32.totalorder %s18, 1
    %p120 = por %p118, %p119
    %p121 = scmp.ne.s32.totalorder %s112, %s113
    %p122 = scmp.eq.s32.totalorder %s18, 0
    %p123 = por %p121, %p122
    %p124 = scmp.ne.s32.totalorder %s112, %s113
    %p125 = scmp.eq.s32.totalorder %s19, 1
    %p126 = por %p124, %p125
    %p128 = scmp.ne.s32.totalorder %s113, %s127
    %p129 = scmp.eq.s32.totalorder %s19, 0
    %p130 = por %p128, %p129
    %s132 = sadd.s32 %s131, 1
    %p135 = scmp.eq.s32.totalorder %s13, 1
    %p136 = scmp.ne.s32.totalorder %s131, %s133
    %p137 = scmp.eq.s32.totalorder %s13, 0
    %p138 = por %p136, %p137
    %p139 = scmp.ne.s32.totalorder %s131, %s133
    %p140 = scmp.eq.s32.totalorder %s18, 1
    %p141 = por %p139, %p140
    %p142 = scmp.ne.s32.totalorder %s133, %s134
    %p143 = scmp.eq.s32.totalorder %s18, 0
    %p144 = por %p142, %p143
    %p145 = scmp.ne.s32.totalorder %s133, %s134
    %p146 = scmp.eq.s32.totalorder %s19, 1
    %p147 = por %p145, %p146
    %p149 = scmp.ne.s32.totalorder %s134, %s148
    %p150 = scmp.eq.s32.totalorder %s19, 0
    %p151 = por %p149, %p150
    %s153 = sadd.s32 %s152, 1
    %p156 = scmp.eq.s32.totalorder %s13, 1
    %p157 = scmp.ne.s32.totalorder %s152, %s154
    %p158 = scmp.eq.s32.totalorder %s13, 0
    %p159 = por %p157, %p158
    %p160 = scmp.ne.s32.totalorder %s152, %s154
    %p161 = scmp.eq.s32.totalorder %s18, 1
    %p162 = por %p160, %p161
    %p163 = scmp.ne.s32.totalorder %s154, %s155
    %p164 = scmp.eq.s32.totalorder %s18, 0
    %p165 = por %p163, %p164
    %p166 = scmp.ne.s32.totalorder %s154, %s155
    %p167 = scmp.eq.s32.totalorder %s19, 1
    %p168 = por %p166, %p167
    %p170 = scmp.ne.s32.totalorder %s155, %s169
    %p171 = scmp.eq.s32.totalorder %s19, 0
    %p172 = por %p170, %p171
    %s173 = ssub.s32 %s13, %s20
    %p174 = scmp.eq.s32.totalorder %s173, 0
    %s176 = sadd.s32 %s175, 1
    %s177 = scalar_select %p174, %s175, %s176
    %p180 = pneg %p174
    %p181 = scmp.eq.s32.totalorder %s13, 1
    %p182 = por %p180, %p181
    %p183 = scmp.ne.s32.totalorder %s175, %s178
    %p184 = scmp.eq.s32.totalorder %s13, 0
    %p185 = por %p183, %p184
    %p186 = scmp.ne.s32.totalorder %s175, %s178
    %p187 = scmp.eq.s32.totalorder %s18, 1
    %p188 = por %p186, %p187
    %p189 = scmp.ne.s32.totalorder %s178, %s179
    %p190 = scmp.eq.s32.totalorder %s18, 0
    %p191 = por %p189, %p190
    %p192 = scmp.ne.s32.totalorder %s178, %s179
    %p193 = scmp.eq.s32.totalorder %s19, 1
    %p194 = por %p192, %p193
    %p196 = scmp.ne.s32.totalorder %s179, %s195
    %p197 = scmp.eq.s32.totalorder %s19, 0
    %p198 = por %p196, %p197
    %p199 = scmp.le.s32.totalorder 1, %s13
    %p200 = scmp.lt.s32.totalorder %s13, 3
    %p201 = pnand %p199, %p200
    %p202 = pneg %p201
    // Predicated region
    $region9: #{residual_block_forward.1} parent=5 // pred_check
      _
    $region10: #{residual_block_forward.1} parent=5 // pred_check_branch
      %204 = sbr.rel (%p201) target = $region12
    $region11: #{residual_block_forward.1} parent=5 // pred_region
      %s205 = ssub.s32 %s13, 1
      // Predicated region
      $region13: #{residual_block_forward.1} parent=11 // pred_check
        %p206 = pneg %p60
      $region14: #{residual_block_forward.1} parent=11 // pred_check_branch
        %208 = sbr.rel (%p206) target = $region16
      $region15: #{residual_block_forward.1} parent=11 // pred_region
        _
      $region16: #{residual_block_forward.1} parent=11 // pred_fallthru
        _
      // Predicated region
      $region17: #{residual_block_forward.1} parent=11 // pred_check
        %p209 = pneg %p81
      $region18: #{residual_block_forward.1} parent=11 // pred_check_branch
        %211 = sbr.rel (%p209) target = $region20
      $region19: #{residual_block_forward.1} parent=11 // pred_region
        _
      $region20: #{residual_block_forward.1} parent=11 // pred_fallthru
        _
      // Predicated region
      $region21: #{residual_block_forward.1} parent=11 // pred_check
        %p212 = pneg %p102
      $region22: #{residual_block_forward.1} parent=11 // pred_check_branch
        %214 = sbr.rel (%p212) target = $region24
      $region23: #{residual_block_forward.1} parent=11 // pred_region
        _
      $region24: #{residual_block_forward.1} parent=11 // pred_fallthru
        _
      // Predicated region
      $region25: #{residual_block_forward.1} parent=11 // pred_check
        %p215 = pneg %p123
      $region26: #{residual_block_forward.1} parent=11 // pred_check_branch
        %217 = sbr.rel (%p215) target = $region28
      $region27: #{residual_block_forward.1} parent=11 // pred_region
        _
      $region28: #{residual_block_forward.1} parent=11 // pred_fallthru
        _
      // Predicated region
      $region29: #{residual_block_forward.1} parent=11 // pred_check
        %p218 = pneg %p144
      $region30: #{residual_block_forward.1} parent=11 // pred_check_branch
        %220 = sbr.rel (%p218) target = $region32
      $region31: #{residual_block_forward.1} parent=11 // pred_region
        _
      $region32: #{residual_block_forward.1} parent=11 // pred_fallthru
        _
      // Predicated region
      $region33: #{residual_block_forward.1} parent=11 // pred_check
        %p221 = pneg %p165
      $region34: #{residual_block_forward.1} parent=11 // pred_check_branch
        %223 = sbr.rel (%p221) target = $region36
      $region35: #{residual_block_forward.1} parent=11 // pred_region
        _
      $region36: #{residual_block_forward.1} parent=11 // pred_fallthru
        _
    $region12: #{residual_block_forward.1} parent=5 // pred_fallthru
      _
    %p224 = scmp.lt.s32.totalorder %s13, 2
    // Predicated region
    $region37: #{residual_block_forward.1} parent=5 // pred_check
      %p225 = pneg %p224
    $region38: #{residual_block_forward.1} parent=5 // pred_check_branch
      %227 = sbr.rel (%p225) target = $region40
    $region39: #{residual_block_forward.1} parent=5 // pred_region
      // Predicated region
      $region41: #{residual_block_forward.1} parent=39 // pred_check
        %p228 = pneg %p33
      $region42: #{residual_block_forward.1} parent=39 // pred_check_branch
        %230 = sbr.rel (%p228) target = $region44
      $region43: #{residual_block_forward.1} parent=39 // pred_region
        %p231 = scmp.lt.s32.totalorder %s13, 1
        %s232 = scalar_select %p231, %s13, 1
        %s233 = smul.addr %s232, 72
        %s234 = smul.addr %s233, 4
        %s235 = scalar_lea.vmem %s0, %s234
      $region44: #{residual_block_forward.1} parent=39 // pred_fallthru
        _
    $region40: #{residual_block_forward.1} parent=5 // pred_fallthru
      _
    %p236 = scmp.le.s32.totalorder 1, %s13
    %p237 = scmp.lt.s32.totalorder %s13, 3
    %p238 = pnand %p236, %p237
    %p239 = pneg %p238
    // Predicated region
    $region45: #{residual_block_forward.1} parent=5 // pred_check
      _
    $region46: #{residual_block_forward.1} parent=5 // pred_check_branch
      %241 = sbr.rel (%p238) target = $region48
    $region47: #{residual_block_forward.1} parent=5 // pred_region
      %s242 = ssub.s32 %s13, 1
      %p243 = scmp.lt.s32.totalorder %s18, 1
      %s244 = scalar_select %p243, %s18, 1
      %s245 = smul.addr %s244, 72
      %s246 = smul.addr %s245, 4
      %s247 = scalar_lea.vmem %s0, %s246
      %p248 = pneg %p39
      %p249 = pneg %p36
      %p250 = pneg %p60
      %p251 = pneg %p57
      %p252 = pneg %p81
      %p253 = pneg %p78
      %p254 = pneg %p102
      %p255 = pneg %p99
      %p256 = pneg %p123
      %p257 = pneg %p120
      %p258 = pneg %p144
      %p259 = pneg %p141
      %p260 = pneg %p165
      %p261 = pneg %p162
      %p262 = pneg %p191
      %p263 = pneg %p188
      %p264 = scmp.lt.s32.totalorder %s18, 1
      %s265 = scalar_select %p264, %s18, 1
      %s266 = smul.addr %s265, 8
      %s267 = smul.addr %s266, 4
      %s268 = scalar_lea.vmem %s7, %s267
      %p269 = scmp.lt.s32.totalorder %s18, 1
      %s270 = scalar_select %p269, %s18, 1
      %s271 = smul.addr %s270, 72
      %s272 = smul.addr %s271, 4
      %s273 = scalar_lea.vmem %s0, %s272
      %p274 = scmp.lt.s32.totalorder %s18, 1
      %s275 = scalar_select %p274, %s18, 1
      %s276 = smul.addr %s275, 8
      %s277 = smul.addr %s276, 4
      %s278 = scalar_lea.vmem %s7, %s277
      %v280 = vld [vmem:[%s273] sm:$0xf]
      %v281 = vld [vmem:[%s273 + $0x8] sm:$0xf]
      %v282 = vld [vmem:[%s273 + $0x10] sm:$0xf]
      %v283 = vld [vmem:[%s273 + $0x18] sm:$0xf]
      %v284 = vld [vmem:[%s273 + $0x20] sm:$0xf]
      %v285 = vld [vmem:[%s273 + $0x28] sm:$0xf]
      %v286 = vld [vmem:[%s273 + $0x30] sm:$0xf]
      %v287 = vld [vmem:[%s273 + $0x38] sm:$0xf]
      %v288 = vld [vmem:[%s1] sm:$0xf]
      %s289 = scalar_lea.vmem %s273, 72
      %v290 = vld [vmem:[%s289] sm:$0xf]
      %v291 = vld [vmem:[%s289 + $0x8] sm:$0xf]
      %v292 = vld [vmem:[%s289 + $0x10] sm:$0xf]
      %v293 = vld [vmem:[%s289 + $0x18] sm:$0xf]
      %v294 = vld [vmem:[%s289 + $0x20] sm:$0xf]
      %v295 = vld [vmem:[%s289 + $0x28] sm:$0xf]
      %v296 = vld [vmem:[%s289 + $0x30] sm:$0xf]
      %v297 = vld [vmem:[%s289 + $0x38] sm:$0xf]
      %s298 = scalar_lea.vmem %s1, 4
      %v299 = vld [vmem:[%s298] sm:$0xf]
      %v308 = vunpack.c.l.b16 %v290
      %v309 = vunpack.c.l.b16 %v291
      %v310 = vunpack.c.l.b16 %v292
      %v311 = vunpack.c.l.b16 %v293
      %v312 = vunpack.c.l.b16 %v294
      %v313 = vunpack.c.l.b16 %v295
      %v314 = vunpack.c.l.b16 %v296
      %v315 = vunpack.c.l.b16 %v297
      %v316 = vpack.c.b16 %v309, %v308
      %v317 = vpack.c.b16 %v311, %v310
      %v318 = vpack.c.b16 %v313, %v312
      %v319 = vpack.c.b16 %v315, %v314
      %vm320 = vcmask 64512
      %v322 = vsel %vm320, %v316, 0
      %v325 = vsel %vm320, %v317, 0
      %v328 = vsel %vm320, %v318, 0
      %v331 = vsel %vm320, %v319, 0
      %vm333 = vcmask 1043456
      %v335 = vsel %vm333, %v299, 0
      %337 = vmatpush.bf16.msra.mxu0 0
      %338 = vmatpush.bf16.msra.mxu0 0
      %339 = vmatpush.bf16.msra.mxu0 0
      %340 = vmatpush.bf16.msra.mxu0 0
      %341 = vmatpush.bf16.msra.mxu0 0
      %342 = vmatpush.bf16.msra.mxu0 0
      %343 = vmatpush.bf16.msra.mxu0 0
      %344 = vmatpush.bf16.msra.mxu0 %v335
      %345 = vmatmul.bf16.gmra.mxu0 %v322
      %v346 = vpop.f32.mrf.mxu0
      %v347 = vadd.f32 0.0, %v346
      %v348 = vpop.f32.mrf.mxu0
      %v349 = vadd.f32 0.0, %v348
      %350 = vmatmul.bf16.gmra.mxu0 %v325
      %v351 = vpop.f32.mrf.mxu0
      %v352 = vadd.f32 0.0, %v351
      %v353 = vpop.f32.mrf.mxu0
      %v354 = vadd.f32 0.0, %v353
      %355 = vmatmul.bf16.gmra.mxu0 %v328
      %v356 = vpop.f32.mrf.mxu0
      %v357 = vadd.f32 0.0, %v356
      %v358 = vpop.f32.mrf.mxu0
      %v359 = vadd.f32 0.0, %v358
      %360 = vmatmul.bf16.gmra.mxu0 %v331
      %v361 = vpop.f32.mrf.mxu0
      %v362 = vadd.f32 0.0, %v361
      %v363 = vpop.f32.mrf.mxu0
      %v364 = vadd.f32 0.0, %v363
      %365 = vdwg.mxu0
      %v374 = vunpack.c.l.b16 %v280
      %v375 = vunpack.c.l.b16 %v281
      %v376 = vunpack.c.l.b16 %v282
      %v377 = vunpack.c.l.b16 %v283
      %v378 = vunpack.c.l.b16 %v284
      %v379 = vunpack.c.l.b16 %v285
      %v380 = vunpack.c.l.b16 %v286
      %v381 = vunpack.c.l.b16 %v287
      %v382 = vpack.c.b16 %v375, %v374
      %v383 = vpack.c.b16 %v377, %v376
      %v384 = vpack.c.b16 %v379, %v378
      %v385 = vpack.c.b16 %v381, %v380
      %v387 = vsel %vm320, %v382, 0
      %v390 = vsel %vm320, %v383, 0
      %v393 = vsel %vm320, %v384, 0
      %v396 = vsel %vm320, %v385, 0
      %v399 = vsel %vm333, %v288, 0
      %401 = vmatpush.bf16.msra.mxu0 0
      %402 = vmatpush.bf16.msra.mxu0 0
      %403 = vmatpush.bf16.msra.mxu0 0
      %404 = vmatpush.bf16.msra.mxu0 0
      %405 = vmatpush.bf16.msra.mxu0 0
      %406 = vmatpush.bf16.msra.mxu0 0
      %407 = vmatpush.bf16.msra.mxu0 0
      %408 = vmatpush.bf16.msra.mxu0 %v399
      %409 = vmatmul.bf16.gmra.mxu0 %v387
      %v410 = vpop.f32.mrf.mxu0
      %v411 = vadd.f32 %v347, %v410
      %v412 = vpop.f32.mrf.mxu0
      %v413 = vadd.f32 %v349, %v412
      %414 = vmatmul.bf16.gmra.mxu0 %v390
      %v415 = vpop.f32.mrf.mxu0
      %v416 = vadd.f32 %v352, %v415
      %v417 = vpop.f32.mrf.mxu0
      %v418 = vadd.f32 %v354, %v417
      %419 = vmatmul.bf16.gmra.mxu0 %v393
      %v420 = vpop.f32.mrf.mxu0
      %v421 = vadd.f32 %v357, %v420
      %v422 = vpop.f32.mrf.mxu0
      %v423 = vadd.f32 %v359, %v422
      %424 = vmatmul.bf16.gmra.mxu0 %v396
      %v425 = vpop.f32.mrf.mxu0
      %v426 = vadd.f32 %v362, %v425
      %v427 = vpop.f32.mrf.mxu0
      %v428 = vadd.f32 %v364, %v427
      %429 = vdwg.mxu0
      %v430 = vld [vmem:[%s273] sm:$0xf]
      %v431 = vld [vmem:[%s273 + $0x4] sm:$0x1]
      %v432 = vld [vmem:[%s273 + $0x8] sm:$0xf]
      %v433 = vld [vmem:[%s273 + $0xc] sm:$0x1]
      %v434 = vld [vmem:[%s273 + $0x10] sm:$0xf]
      %v435 = vld [vmem:[%s273 + $0x14] sm:$0x1]
      %v436 = vld [vmem:[%s273 + $0x18] sm:$0xf]
      %v437 = vld [vmem:[%s273 + $0x1c] sm:$0x1]
      %v438 = vld [vmem:[%s273 + $0x20] sm:$0xf]
      %v439 = vld [vmem:[%s273 + $0x24] sm:$0x1]
      %v440 = vld [vmem:[%s273 + $0x28] sm:$0xf]
      %v441 = vld [vmem:[%s273 + $0x2c] sm:$0x1]
      %v442 = vld [vmem:[%s273 + $0x30] sm:$0xf]
      %v443 = vld [vmem:[%s273 + $0x34] sm:$0x1]
      %v444 = vld [vmem:[%s273 + $0x38] sm:$0xf]
      %v445 = vld [vmem:[%s273 + $0x3c] sm:$0x1]
      %vm446 = vsmask.f32 3328
      %vm447 = vsmask.f32 7440
      %vm448 = vmor %vm446, %vm447
      %v450 = vshrl.u32 %v430, 16
      %v452 = vrot.slane %v450, 4
      %v453 = vshll.u32 %v430, 16
      %v455 = vrot.slane %v453, 5
      %v456 = vor.u32 %v452, %v455
      %v457 = vrot.slane %v456, 4
      %v459 = vshll.u32 %v431, 16
      %v461 = vrot.slane %v459, 5
      %v462 = vsel %vm448, %v457, %v461
      %v464 = vshrl.u32 %v432, 16
      %v466 = vrot.slane %v464, 4
      %v467 = vshll.u32 %v432, 16
      %v469 = vrot.slane %v467, 5
      %v470 = vor.u32 %v466, %v469
      %v471 = vrot.slane %v470, 4
      %v473 = vshll.u32 %v433, 16
      %v475 = vrot.slane %v473, 5
      %v476 = vsel %vm448, %v471, %v475
      %v478 = vshrl.u32 %v434, 16
      %v480 = vrot.slane %v478, 4
      %v481 = vshll.u32 %v434, 16
      %v483 = vrot.slane %v481, 5
      %v484 = vor.u32 %v480, %v483
      %v485 = vrot.slane %v484, 4
      %v487 = vshll.u32 %v435, 16
      %v489 = vrot.slane %v487, 5
      %v490 = vsel %vm448, %v485, %v489
      %v492 = vshrl.u32 %v436, 16
      %v494 = vrot.slane %v492, 4
      %v495 = vshll.u32 %v436, 16
      %v497 = vrot.slane %v495, 5
      %v498 = vor.u32 %v494, %v497
      %v499 = vrot.slane %v498, 4
      %v501 = vshll.u32 %v437, 16
      %v503 = vrot.slane %v501, 5
      %v504 = vsel %vm448, %v499, %v503
      %v506 = vshrl.u32 %v438, 16
      %v508 = vrot.slane %v506, 4
      %v509 = vshll.u32 %v438, 16
      %v511 = vrot.slane %v509, 5
      %v512 = vor.u32 %v508, %v511
      %v513 = vrot.slane %v512, 4
      %v515 = vshll.u32 %v439, 16
      %v517 = vrot.slane %v515, 5
      %v518 = vsel %vm448, %v513, %v517
      %v520 = vshrl.u32 %v440, 16
      %v522 = vrot.slane %v520, 4
      %v523 = vshll.u32 %v440, 16
      %v525 = vrot.slane %v523, 5
      %v526 = vor.u32 %v522, %v525
      %v527 = vrot.slane %v526, 4
      %v529 = vshll.u32 %v441, 16
      %v531 = vrot.slane %v529, 5
      %v532 = vsel %vm448, %v527, %v531
      %v534 = vshrl.u32 %v442, 16
      %v536 = vrot.slane %v534, 4
      %v537 = vshll.u32 %v442, 16
      %v539 = vrot.slane %v537, 5
      %v540 = vor.u32 %v536, %v539
      %v541 = vrot.slane %v540, 4
      %v543 = vshll.u32 %v443, 16
      %v545 = vrot.slane %v543, 5
      %v546 = vsel %vm448, %v541, %v545
      %v548 = vshrl.u32 %v444, 16
      %v550 = vrot.slane %v548, 4
      %v551 = vshll.u32 %v444, 16
      %v553 = vrot.slane %v551, 5
      %v554 = vor.u32 %v550, %v553
      %v555 = vrot.slane %v554, 4
      %v557 = vshll.u32 %v445, 16
      %v559 = vrot.slane %v557, 5
      %v560 = vsel %vm448, %v555, %v559
      %s561 = scalar_lea.vmem %s1, 8
      %v562 = vld [vmem:[%s561] sm:$0xf]
      %v563 = vunpack.c.l.b16 %v462
      %v564 = vunpack.c.l.b16 %v476
      %v565 = vunpack.c.l.b16 %v490
      %v566 = vunpack.c.l.b16 %v504
      %v567 = vunpack.c.l.b16 %v518
      %v568 = vunpack.c.l.b16 %v532
      %v569 = vunpack.c.l.b16 %v546
      %v570 = vunpack.c.l.b16 %v560
      %v571 = vpack.c.b16 %v564, %v563
      %v572 = vpack.c.b16 %v566, %v565
      %v573 = vpack.c.b16 %v568, %v567
      %v574 = vpack.c.b16 %v570, %v569
      %v576 = vsel %vm320, %v571, 0
      %v579 = vsel %vm320, %v572, 0
      %v582 = vsel %vm320, %v573, 0
      %v585 = vsel %vm320, %v574, 0
      %v588 = vsel %vm333, %v562, 0
      %590 = vmatpush.bf16.msra.mxu0 0
      %591 = vmatpush.bf16.msra.mxu0 0
      %592 = vmatpush.bf16.msra.mxu0 0
      %593 = vmatpush.bf16.msra.mxu0 0
      %594 = vmatpush.bf16.msra.mxu0 0
      %595 = vmatpush.bf16.msra.mxu0 0
      %596 = vmatpush.bf16.msra.mxu0 0
      %597 = vmatpush.bf16.msra.mxu0 %v588
      %598 = vmatmul.bf16.gmra.mxu0 %v576
      %v599 = vpop.f32.mrf.mxu0
      %v600 = vadd.f32 0.0, %v599
      %v601 = vpop.f32.mrf.mxu0
      %v602 = vadd.f32 0.0, %v601
      %603 = vmatmul.bf16.gmra.mxu0 %v579
      %v604 = vpop.f32.mrf.mxu0
      %v605 = vadd.f32 0.0, %v604
      %v606 = vpop.f32.mrf.mxu0
      %v607 = vadd.f32 0.0, %v606
      %608 = vmatmul.bf16.gmra.mxu0 %v582
      %v609 = vpop.f32.mrf.mxu0
      %v610 = vadd.f32 0.0, %v609
      %v611 = vpop.f32.mrf.mxu0
      %v612 = vadd.f32 0.0, %v611
      %613 = vmatmul.bf16.gmra.mxu0 %v585
      %v614 = vpop.f32.mrf.mxu0
      %v615 = vadd.f32 0.0, %v614
      %v616 = vpop.f32.mrf.mxu0
      %v617 = vadd.f32 0.0, %v616
      %618 = vdwg.mxu0
      %v619 = vadd.f32 %v411, %v600
      %v620 = vadd.f32 %v413, %v602
      %v621 = vadd.f32 %v416, %v605
      %v622 = vadd.f32 %v418, %v607
      %v623 = vadd.f32 %v421, %v610
      %v624 = vadd.f32 %v423, %v612
      %v625 = vadd.f32 %v426, %v615
      %v626 = vadd.f32 %v428, %v617
      %s627 = scalar_lea.vmem %s273, 144
      %v628 = vld [vmem:[%s627] sm:$0xf]
      %v629 = vld [vmem:[%s627 + $0x8] sm:$0xf]
      %v630 = vld [vmem:[%s627 + $0x10] sm:$0xf]
      %v631 = vld [vmem:[%s627 + $0x18] sm:$0xf]
      %v632 = vld [vmem:[%s627 + $0x20] sm:$0xf]
      %v633 = vld [vmem:[%s627 + $0x28] sm:$0xf]
      %v634 = vld [vmem:[%s627 + $0x30] sm:$0xf]
      %v635 = vld [vmem:[%s627 + $0x38] sm:$0xf]
      %s636 = scalar_lea.vmem %s1, 12
      %v637 = vld [vmem:[%s636] sm:$0xf]
      %v646 = vunpack.c.l.b16 %v628
      %v647 = vunpack.c.l.b16 %v629
      %v648 = vunpack.c.l.b16 %v630
      %v649 = vunpack.c.l.b16 %v631
      %v650 = vunpack.c.l.b16 %v632
      %v651 = vunpack.c.l.b16 %v633
      %v652 = vunpack.c.l.b16 %v634
      %v653 = vunpack.c.l.b16 %v635
      %v654 = vpack.c.b16 %v647, %v646
      %v655 = vpack.c.b16 %v649, %v648
      %v656 = vpack.c.b16 %v651, %v650
      %v657 = vpack.c.b16 %v653, %v652
      %v659 = vsel %vm320, %v654, 0
      %v662 = vsel %vm320, %v655, 0
      %v665 = vsel %vm320, %v656, 0
      %v668 = vsel %vm320, %v657, 0
      %v671 = vsel %vm333, %v637, 0
      %673 = vmatpush.bf16.msra.mxu0 0
      %674 = vmatpush.bf16.msra.mxu0 0
      %675 = vmatpush.bf16.msra.mxu0 0
      %676 = vmatpush.bf16.msra.mxu0 0
      %677 = vmatpush.bf16.msra.mxu0 0
      %678 = vmatpush.bf16.msra.mxu0 0
      %679 = vmatpush.bf16.msra.mxu0 0
      %680 = vmatpush.bf16.msra.mxu0 %v671
      %681 = vmatmul.bf16.gmra.mxu0 %v659
      %v682 = vpop.f32.mrf.mxu0
      %v683 = vadd.f32 0.0, %v682
      %v684 = vpop.f32.mrf.mxu0
      %v685 = vadd.f32 0.0, %v684
      %686 = vmatmul.bf16.gmra.mxu0 %v662
      %v687 = vpop.f32.mrf.mxu0
      %v688 = vadd.f32 0.0, %v687
      %v689 = vpop.f32.mrf.mxu0
      %v690 = vadd.f32 0.0, %v689
      %691 = vmatmul.bf16.gmra.mxu0 %v665
      %v692 = vpop.f32.mrf.mxu0
      %v693 = vadd.f32 0.0, %v692
      %v694 = vpop.f32.mrf.mxu0
      %v695 = vadd.f32 0.0, %v694
      %696 = vmatmul.bf16.gmra.mxu0 %v668
      %v697 = vpop.f32.mrf.mxu0
      %v698 = vadd.f32 0.0, %v697
      %v699 = vpop.f32.mrf.mxu0
      %v700 = vadd.f32 0.0, %v699
      %701 = vdwg.mxu0
      %v702 = vadd.f32 %v619, %v683
      %v703 = vadd.f32 %v620, %v685
      %v704 = vadd.f32 %v621, %v688
      %v705 = vadd.f32 %v622, %v690
      %v706 = vadd.f32 %v623, %v693
      %v707 = vadd.f32 %v624, %v695
      %v708 = vadd.f32 %v625, %v698
      %v709 = vadd.f32 %v626, %v700
      %s710 = scalar_lea.vmem %s273, 216
      %v711 = vld [vmem:[%s710] sm:$0xf]
      %v712 = vld [vmem:[%s710 + $0x8] sm:$0xf]
      %v713 = vld [vmem:[%s710 + $0x10] sm:$0xf]
      %v714 = vld [vmem:[%s710 + $0x18] sm:$0xf]
      %v715 = vld [vmem:[%s710 + $0x20] sm:$0xf]
      %v716 = vld [vmem:[%s710 + $0x28] sm:$0xf]
      %v717 = vld [vmem:[%s710 + $0x30] sm:$0xf]
      %v718 = vld [vmem:[%s710 + $0x38] sm:$0xf]
      %s719 = scalar_lea.vmem %s1, 16
      %v720 = vld [vmem:[%s719] sm:$0xf]
      %v729 = vunpack.c.l.b16 %v711
      %v730 = vunpack.c.l.b16 %v712
      %v731 = vunpack.c.l.b16 %v713
      %v732 = vunpack.c.l.b16 %v714
      %v733 = vunpack.c.l.b16 %v715
      %v734 = vunpack.c.l.b16 %v716
      %v735 = vunpack.c.l.b16 %v717
      %v736 = vunpack.c.l.b16 %v718
      %v737 = vpack.c.b16 %v730, %v729
      %v738 = vpack.c.b16 %v732, %v731
      %v739 = vpack.c.b16 %v734, %v733
      %v740 = vpack.c.b16 %v736, %v735
      %v742 = vsel %vm320, %v737, 0
      %v745 = vsel %vm320, %v738, 0
      %v748 = vsel %vm320, %v739, 0
      %v751 = vsel %vm320, %v740, 0
      %v754 = vsel %vm333, %v720, 0
      %756 = vmatpush.bf16.msra.mxu0 0
      %757 = vmatpush.bf16.msra.mxu0 0
      %758 = vmatpush.bf16.msra.mxu0 0
      %759 = vmatpush.bf16.msra.mxu0 0
      %760 = vmatpush.bf16.msra.mxu0 0
      %761 = vmatpush.bf16.msra.mxu0 0
      %762 = vmatpush.bf16.msra.mxu0 0
      %763 = vmatpush.bf16.msra.mxu0 %v754
      %764 = vmatmul.bf16.gmra.mxu0 %v742
      %v765 = vpop.f32.mrf.mxu0
      %v766 = vadd.f32 0.0, %v765
      %v767 = vpop.f32.mrf.mxu0
      %v768 = vadd.f32 0.0, %v767
      %769 = vmatmul.bf16.gmra.mxu0 %v745
      %v770 = vpop.f32.mrf.mxu0
      %v771 = vadd.f32 0.0, %v770
      %v772 = vpop.f32.mrf.mxu0
      %v773 = vadd.f32 0.0, %v772
      %774 = vmatmul.bf16.gmra.mxu0 %v748
      %v775 = vpop.f32.mrf.mxu0
      %v776 = vadd.f32 0.0, %v775
      %v777 = vpop.f32.mrf.mxu0
      %v778 = vadd.f32 0.0, %v777
      %779 = vmatmul.bf16.gmra.mxu0 %v751
      %v780 = vpop.f32.mrf.mxu0
      %v781 = vadd.f32 0.0, %v780
      %v782 = vpop.f32.mrf.mxu0
      %v783 = vadd.f32 0.0, %v782
      %784 = vdwg.mxu0
      %v785 = vadd.f32 %v702, %v766
      %v786 = vadd.f32 %v703, %v768
      %v787 = vadd.f32 %v704, %v771
      %v788 = vadd.f32 %v705, %v773
      %v789 = vadd.f32 %v706, %v776
      %v790 = vadd.f32 %v707, %v778
      %v791 = vadd.f32 %v708, %v781
      %v792 = vadd.f32 %v709, %v783
      %v793 = vld [vmem:[%s627] sm:$0xf]
      %v794 = vld [vmem:[%s627 + $0x4] sm:$0x1]
      %v795 = vld [vmem:[%s627 + $0x8] sm:$0xf]
      %v796 = vld [vmem:[%s627 + $0xc] sm:$0x1]
      %v797 = vld [vmem:[%s627 + $0x10] sm:$0xf]
      %v798 = vld [vmem:[%s627 + $0x14] sm:$0x1]
      %v799 = vld [vmem:[%s627 + $0x18] sm:$0xf]
      %v800 = vld [vmem:[%s627 + $0x1c] sm:$0x1]
      %v801 = vld [vmem:[%s627 + $0x20] sm:$0xf]
      %v802 = vld [vmem:[%s627 + $0x24] sm:$0x1]
      %v803 = vld [vmem:[%s627 + $0x28] sm:$0xf]
      %v804 = vld [vmem:[%s627 + $0x2c] sm:$0x1]
      %v805 = vld [vmem:[%s627 + $0x30] sm:$0xf]
      %v806 = vld [vmem:[%s627 + $0x34] sm:$0x1]
      %v807 = vld [vmem:[%s627 + $0x38] sm:$0xf]
      %v808 = vld [vmem:[%s627 + $0x3c] sm:$0x1]
      %v810 = vshrl.u32 %v793, 16
      %v812 = vrot.slane %v810, 4
      %v813 = vshll.u32 %v793, 16
      %v815 = vrot.slane %v813, 5
      %v816 = vor.u32 %v812, %v815
      %v817 = vrot.slane %v816, 4
      %v819 = vshll.u32 %v794, 16
      %v821 = vrot.slane %v819, 5
      %v822 = vsel %vm448, %v817, %v821
      %v824 = vshrl.u32 %v795, 16
      %v826 = vrot.slane %v824, 4
      %v827 = vshll.u32 %v795, 16
      %v829 = vrot.slane %v827, 5
      %v830 = vor.u32 %v826, %v829
      %v831 = vrot.slane %v830, 4
      %v833 = vshll.u32 %v796, 16
      %v835 = vrot.slane %v833, 5
      %v836 = vsel %vm448, %v831, %v835
      %v838 = vshrl.u32 %v797, 16
      %v840 = vrot.slane %v838, 4
      %v841 = vshll.u32 %v797, 16
      %v843 = vrot.slane %v841, 5
      %v844 = vor.u32 %v840, %v843
      %v845 = vrot.slane %v844, 4
      %v847 = vshll.u32 %v798, 16
      %v849 = vrot.slane %v847, 5
      %v850 = vsel %vm448, %v845, %v849
      %v852 = vshrl.u32 %v799, 16
      %v854 = vrot.slane %v852, 4
      %v855 = vshll.u32 %v799, 16
      %v857 = vrot.slane %v855, 5
      %v858 = vor.u32 %v854, %v857
      %v859 = vrot.slane %v858, 4
      %v861 = vshll.u32 %v800, 16
      %v863 = vrot.slane %v861, 5
      %v864 = vsel %vm448, %v859, %v863
      %v866 = vshrl.u32 %v801, 16
      %v868 = vrot.slane %v866, 4
      %v869 = vshll.u32 %v801, 16
      %v871 = vrot.slane %v869, 5
      %v872 = vor.u32 %v868, %v871
      %v873 = vrot.slane %v872, 4
      %v875 = vshll.u32 %v802, 16
      %v877 = vrot.slane %v875, 5
      %v878 = vsel %vm448, %v873, %v877
      %v880 = vshrl.u32 %v803, 16
      %v882 = vrot.slane %v880, 4
      %v883 = vshll.u32 %v803, 16
      %v885 = vrot.slane %v883, 5
      %v886 = vor.u32 %v882, %v885
      %v887 = vrot.slane %v886, 4
      %v889 = vshll.u32 %v804, 16
      %v891 = vrot.slane %v889, 5
      %v892 = vsel %vm448, %v887, %v891
      %v894 = vshrl.u32 %v805, 16
      %v896 = vrot.slane %v894, 4
      %v897 = vshll.u32 %v805, 16
      %v899 = vrot.slane %v897, 5
      %v900 = vor.u32 %v896, %v899
      %v901 = vrot.slane %v900, 4
      %v903 = vshll.u32 %v806, 16
      %v905 = vrot.slane %v903, 5
      %v906 = vsel %vm448, %v901, %v905
      %v908 = vshrl.u32 %v807, 16
      %v910 = vrot.slane %v908, 4
      %v911 = vshll.u32 %v807, 16
      %v913 = vrot.slane %v911, 5
      %v914 = vor.u32 %v910, %v913
      %v915 = vrot.slane %v914, 4
      %v917 = vshll.u32 %v808, 16
      %v919 = vrot.slane %v917, 5
      %v920 = vsel %vm448, %v915, %v919
      %s921 = scalar_lea.vmem %s1, 20
      %v922 = vld [vmem:[%s921] sm:$0xf]
      %v923 = vunpack.c.l.b16 %v822
      %v924 = vunpack.c.l.b16 %v836
      %v925 = vunpack.c.l.b16 %v850
      %v926 = vunpack.c.l.b16 %v864
      %v927 = vunpack.c.l.b16 %v878
      %v928 = vunpack.c.l.b16 %v892
      %v929 = vunpack.c.l.b16 %v906
      %v930 = vunpack.c.l.b16 %v920
      %v931 = vpack.c.b16 %v924, %v923
      %v932 = vpack.c.b16 %v926, %v925
      %v933 = vpack.c.b16 %v928, %v927
      %v934 = vpack.c.b16 %v930, %v929
      %v936 = vsel %vm320, %v931, 0
      %v939 = vsel %vm320, %v932, 0
      %v942 = vsel %vm320, %v933, 0
      %v945 = vsel %vm320, %v934, 0
      %v948 = vsel %vm333, %v922, 0
      %950 = vmatpush.bf16.msra.mxu0 0
      %951 = vmatpush.bf16.msra.mxu0 0
      %952 = vmatpush.bf16.msra.mxu0 0
      %953 = vmatpush.bf16.msra.mxu0 0
      %954 = vmatpush.bf16.msra.mxu0 0
      %955 = vmatpush.bf16.msra.mxu0 0
      %956 = vmatpush.bf16.msra.mxu0 0
      %957 = vmatpush.bf16.msra.mxu0 %v948
      %958 = vmatmul.bf16.gmra.mxu0 %v936
      %v959 = vpop.f32.mrf.mxu0
      %v960 = vadd.f32 0.0, %v959
      %v961 = vpop.f32.mrf.mxu0
      %v962 = vadd.f32 0.0, %v961
      %963 = vmatmul.bf16.gmra.mxu0 %v939
      %v964 = vpop.f32.mrf.mxu0
      %v965 = vadd.f32 0.0, %v964
      %v966 = vpop.f32.mrf.mxu0
      %v967 = vadd.f32 0.0, %v966
      %968 = vmatmul.bf16.gmra.mxu0 %v942
      %v969 = vpop.f32.mrf.mxu0
      %v970 = vadd.f32 0.0, %v969
      %v971 = vpop.f32.mrf.mxu0
      %v972 = vadd.f32 0.0, %v971
      %973 = vmatmul.bf16.gmra.mxu0 %v945
      %v974 = vpop.f32.mrf.mxu0
      %v975 = vadd.f32 0.0, %v974
      %v976 = vpop.f32.mrf.mxu0
      %v977 = vadd.f32 0.0, %v976
      %978 = vdwg.mxu0
      %v979 = vadd.f32 %v785, %v960
      %v980 = vadd.f32 %v786, %v962
      %v981 = vadd.f32 %v787, %v965
      %v982 = vadd.f32 %v788, %v967
      %v983 = vadd.f32 %v789, %v970
      %v984 = vadd.f32 %v790, %v972
      %v985 = vadd.f32 %v791, %v975
      %v986 = vadd.f32 %v792, %v977
      %s987 = scalar_lea.vmem %s273, 8
      %v988 = vld [vmem:[%s987] sm:$0xf]
      %v989 = vld [vmem:[%s987 + $0x8] sm:$0xf]
      %v990 = vld [vmem:[%s987 + $0x10] sm:$0xf]
      %v991 = vld [vmem:[%s987 + $0x18] sm:$0xf]
      %v992 = vld [vmem:[%s987 + $0x20] sm:$0xf]
      %v993 = vld [vmem:[%s987 + $0x28] sm:$0xf]
      %v994 = vld [vmem:[%s987 + $0x30] sm:$0xf]
      %v995 = vld [vmem:[%s987 + $0x38] sm:$0xf]
      %s996 = scalar_lea.vmem %s1, 24
      %v997 = vld [vmem:[%s996] sm:$0xf]
      %v1006 = vunpack.c.l.b16 %v988
      %v1007 = vunpack.c.l.b16 %v989
      %v1008 = vunpack.c.l.b16 %v990
      %v1009 = vunpack.c.l.b16 %v991
      %v1010 = vunpack.c.l.b16 %v992
      %v1011 = vunpack.c.l.b16 %v993
      %v1012 = vunpack.c.l.b16 %v994
      %v1013 = vunpack.c.l.b16 %v995
      %v1014 = vpack.c.b16 %v1007, %v1006
      %v1015 = vpack.c.b16 %v1009, %v1008
      %v1016 = vpack.c.b16 %v1011, %v1010
      %v1017 = vpack.c.b16 %v1013, %v1012
      %v1019 = vsel %vm320, %v1014, 0
      %v1022 = vsel %vm320, %v1015, 0
      %v1025 = vsel %vm320, %v1016, 0
      %v1028 = vsel %vm320, %v1017, 0
      %v1031 = vsel %vm333, %v997, 0
      %1033 = vmatpush.bf16.msra.mxu0 0
      %1034 = vmatpush.bf16.msra.mxu0 0
      %1035 = vmatpush.bf16.msra.mxu0 0
      %1036 = vmatpush.bf16.msra.mxu0 0
      %1037 = vmatpush.bf16.msra.mxu0 0
      %1038 = vmatpush.bf16.msra.mxu0 0
      %1039 = vmatpush.bf16.msra.mxu0 0
      %1040 = vmatpush.bf16.msra.mxu0 %v1031
      %1041 = vmatmul.bf16.gmra.mxu0 %v1019
      %v1042 = vpop.f32.mrf.mxu0
      %v1043 = vadd.f32 0.0, %v1042
      %v1044 = vpop.f32.mrf.mxu0
      %v1045 = vadd.f32 0.0, %v1044
      %1046 = vmatmul.bf16.gmra.mxu0 %v1022
      %v1047 = vpop.f32.mrf.mxu0
      %v1048 = vadd.f32 0.0, %v1047
      %v1049 = vpop.f32.mrf.mxu0
      %v1050 = vadd.f32 0.0, %v1049
      %1051 = vmatmul.bf16.gmra.mxu0 %v1025
      %v1052 = vpop.f32.mrf.mxu0
      %v1053 = vadd.f32 0.0, %v1052
      %v1054 = vpop.f32.mrf.mxu0
      %v1055 = vadd.f32 0.0, %v1054
      %1056 = vmatmul.bf16.gmra.mxu0 %v1028
      %v1057 = vpop.f32.mrf.mxu0
      %v1058 = vadd.f32 0.0, %v1057
      %v1059 = vpop.f32.mrf.mxu0
      %v1060 = vadd.f32 0.0, %v1059
      %1061 = vdwg.mxu0
      %v1062 = vadd.f32 %v979, %v1043
      %v1063 = vadd.f32 %v980, %v1045
      %v1064 = vadd.f32 %v981, %v1048
      %v1065 = vadd.f32 %v982, %v1050
      %v1066 = vadd.f32 %v983, %v1053
      %v1067 = vadd.f32 %v984, %v1055
      %v1068 = vadd.f32 %v985, %v1058
      %v1069 = vadd.f32 %v986, %v1060
      %s1070 = scalar_lea.vmem %s273, 80
      %v1071 = vld [vmem:[%s1070] sm:$0xf]
      %v1072 = vld [vmem:[%s1070 + $0x8] sm:$0xf]
      %v1073 = vld [vmem:[%s1070 + $0x10] sm:$0xf]
      %v1074 = vld [vmem:[%s1070 + $0x18] sm:$0xf]
      %v1075 = vld [vmem:[%s1070 + $0x20] sm:$0xf]
      %v1076 = vld [vmem:[%s1070 + $0x28] sm:$0xf]
      %v1077 = vld [vmem:[%s1070 + $0x30] sm:$0xf]
      %v1078 = vld [vmem:[%s1070 + $0x38] sm:$0xf]
      %s1079 = scalar_lea.vmem %s1, 28
      %v1080 = vld [vmem:[%s1079] sm:$0xf]
      %v1089 = vunpack.c.l.b16 %v1071
      %v1090 = vunpack.c.l.b16 %v1072
      %v1091 = vunpack.c.l.b16 %v1073
      %v1092 = vunpack.c.l.b16 %v1074
      %v1093 = vunpack.c.l.b16 %v1075
      %v1094 = vunpack.c.l.b16 %v1076
      %v1095 = vunpack.c.l.b16 %v1077
      %v1096 = vunpack.c.l.b16 %v1078
      %v1097 = vpack.c.b16 %v1090, %v1089
      %v1098 = vpack.c.b16 %v1092, %v1091
      %v1099 = vpack.c.b16 %v1094, %v1093
      %v1100 = vpack.c.b16 %v1096, %v1095
      %v1102 = vsel %vm320, %v1097, 0
      %v1105 = vsel %vm320, %v1098, 0
      %v1108 = vsel %vm320, %v1099, 0
      %v1111 = vsel %vm320, %v1100, 0
      %v1114 = vsel %vm333, %v1080, 0
      %1116 = vmatpush.bf16.msra.mxu0 0
      %1117 = vmatpush.bf16.msra.mxu0 0
      %1118 = vmatpush.bf16.msra.mxu0 0
      %1119 = vmatpush.bf16.msra.mxu0 0
      %1120 = vmatpush.bf16.msra.mxu0 0
      %1121 = vmatpush.bf16.msra.mxu0 0
      %1122 = vmatpush.bf16.msra.mxu0 0
      %1123 = vmatpush.bf16.msra.mxu0 %v1114
      %1124 = vmatmul.bf16.gmra.mxu0 %v1102
      %v1125 = vpop.f32.mrf.mxu0
      %v1126 = vadd.f32 0.0, %v1125
      %v1127 = vpop.f32.mrf.mxu0
      %v1128 = vadd.f32 0.0, %v1127
      %1129 = vmatmul.bf16.gmra.mxu0 %v1105
      %v1130 = vpop.f32.mrf.mxu0
      %v1131 = vadd.f32 0.0, %v1130
      %v1132 = vpop.f32.mrf.mxu0
      %v1133 = vadd.f32 0.0, %v1132
      %1134 = vmatmul.bf16.gmra.mxu0 %v1108
      %v1135 = vpop.f32.mrf.mxu0
      %v1136 = vadd.f32 0.0, %v1135
      %v1137 = vpop.f32.mrf.mxu0
      %v1138 = vadd.f32 0.0, %v1137
      %1139 = vmatmul.bf16.gmra.mxu0 %v1111
      %v1140 = vpop.f32.mrf.mxu0
      %v1141 = vadd.f32 0.0, %v1140
      %v1142 = vpop.f32.mrf.mxu0
      %v1143 = vadd.f32 0.0, %v1142
      %1144 = vdwg.mxu0
      %v1145 = vadd.f32 %v1062, %v1126
      %v1146 = vadd.f32 %v1063, %v1128
      %v1147 = vadd.f32 %v1064, %v1131
      %v1148 = vadd.f32 %v1065, %v1133
      %v1149 = vadd.f32 %v1066, %v1136
      %v1150 = vadd.f32 %v1067, %v1138
      %v1151 = vadd.f32 %v1068, %v1141
      %v1152 = vadd.f32 %v1069, %v1143
      %v1153 = vld [vmem:[%s987] sm:$0xf]
      %v1154 = vld [vmem:[%s987 + $0x4] sm:$0x1]
      %v1155 = vld [vmem:[%s987 + $0x8] sm:$0xf]
      %v1156 = vld [vmem:[%s987 + $0xc] sm:$0x1]
      %v1157 = vld [vmem:[%s987 + $0x10] sm:$0xf]
      %v1158 = vld [vmem:[%s987 + $0x14] sm:$0x1]
      %v1159 = vld [vmem:[%s987 + $0x18] sm:$0xf]
      %v1160 = vld [vmem:[%s987 + $0x1c] sm:$0x1]
      %v1161 = vld [vmem:[%s987 + $0x20] sm:$0xf]
      %v1162 = vld [vmem:[%s987 + $0x24] sm:$0x1]
      %v1163 = vld [vmem:[%s987 + $0x28] sm:$0xf]
      %v1164 = vld [vmem:[%s987 + $0x2c] sm:$0x1]
      %v1165 = vld [vmem:[%s987 + $0x30] sm:$0xf]
      %v1166 = vld [vmem:[%s987 + $0x34] sm:$0x1]
      %v1167 = vld [vmem:[%s987 + $0x38] sm:$0xf]
      %v1168 = vld [vmem:[%s987 + $0x3c] sm:$0x1]
      %v1170 = vshrl.u32 %v1153, 16
      %v1172 = vrot.slane %v1170, 4
      %v1173 = vshll.u32 %v1153, 16
      %v1175 = vrot.slane %v1173, 5
      %v1176 = vor.u32 %v1172, %v1175
      %v1177 = vrot.slane %v1176, 4
      %v1179 = vshll.u32 %v1154, 16
      %v1181 = vrot.slane %v1179, 5
      %v1182 = vsel %vm448, %v1177, %v1181
      %v1184 = vshrl.u32 %v1155, 16
      %v1186 = vrot.slane %v1184, 4
      %v1187 = vshll.u32 %v1155, 16
      %v1189 = vrot.slane %v1187, 5
      %v1190 = vor.u32 %v1186, %v1189
      %v1191 = vrot.slane %v1190, 4
      %v1193 = vshll.u32 %v1156, 16
      %v1195 = vrot.slane %v1193, 5
      %v1196 = vsel %vm448, %v1191, %v1195
      %v1198 = vshrl.u32 %v1157, 16
      %v1200 = vrot.slane %v1198, 4
      %v1201 = vshll.u32 %v1157, 16
      %v1203 = vrot.slane %v1201, 5
      %v1204 = vor.u32 %v1200, %v1203
      %v1205 = vrot.slane %v1204, 4
      %v1207 = vshll.u32 %v1158, 16
      %v1209 = vrot.slane %v1207, 5
      %v1210 = vsel %vm448, %v1205, %v1209
      %v1212 = vshrl.u32 %v1159, 16
      %v1214 = vrot.slane %v1212, 4
      %v1215 = vshll.u32 %v1159, 16
      %v1217 = vrot.slane %v1215, 5
      %v1218 = vor.u32 %v1214, %v1217
      %v1219 = vrot.slane %v1218, 4
      %v1221 = vshll.u32 %v1160, 16
      %v1223 = vrot.slane %v1221, 5
      %v1224 = vsel %vm448, %v1219, %v1223
      %v1226 = vshrl.u32 %v1161, 16
      %v1228 = vrot.slane %v1226, 4
      %v1229 = vshll.u32 %v1161, 16
      %v1231 = vrot.slane %v1229, 5
      %v1232 = vor.u32 %v1228, %v1231
      %v1233 = vrot.slane %v1232, 4
      %v1235 = vshll.u32 %v1162, 16
      %v1237 = vrot.slane %v1235, 5
      %v1238 = vsel %vm448, %v1233, %v1237
      %v1240 = vshrl.u32 %v1163, 16
      %v1242 = vrot.slane %v1240, 4
      %v1243 = vshll.u32 %v1163, 16
      %v1245 = vrot.slane %v1243, 5
      %v1246 = vor.u32 %v1242, %v1245
      %v1247 = vrot.slane %v1246, 4
      %v1249 = vshll.u32 %v1164, 16
      %v1251 = vrot.slane %v1249, 5
      %v1252 = vsel %vm448, %v1247, %v1251
      %v1254 = vshrl.u32 %v1165, 16
      %v1256 = vrot.slane %v1254, 4
      %v1257 = vshll.u32 %v1165, 16
      %v1259 = vrot.slane %v1257, 5
      %v1260 = vor.u32 %v1256, %v1259
      %v1261 = vrot.slane %v1260, 4
      %v1263 = vshll.u32 %v1166, 16
      %v1265 = vrot.slane %v1263, 5
      %v1266 = vsel %vm448, %v1261, %v1265
      %v1268 = vshrl.u32 %v1167, 16
      %v1270 = vrot.slane %v1268, 4
      %v1271 = vshll.u32 %v1167, 16
      %v1273 = vrot.slane %v1271, 5
      %v1274 = vor.u32 %v1270, %v1273
      %v1275 = vrot.slane %v1274, 4
      %v1277 = vshll.u32 %v1168, 16
      %v1279 = vrot.slane %v1277, 5
      %v1280 = vsel %vm448, %v1275, %v1279
      %s1281 = scalar_lea.vmem %s1, 32
      %v1282 = vld [vmem:[%s1281] sm:$0xf]
      %v1283 = vunpack.c.l.b16 %v1182
      %v1284 = vunpack.c.l.b16 %v1196
      %v1285 = vunpack.c.l.b16 %v1210
      %v1286 = vunpack.c.l.b16 %v1224
      %v1287 = vunpack.c.l.b16 %v1238
      %v1288 = vunpack.c.l.b16 %v1252
      %v1289 = vunpack.c.l.b16 %v1266
      %v1290 = vunpack.c.l.b16 %v1280
      %v1291 = vpack.c.b16 %v1284, %v1283
      %v1292 = vpack.c.b16 %v1286, %v1285
      %v1293 = vpack.c.b16 %v1288, %v1287
      %v1294 = vpack.c.b16 %v1290, %v1289
      %v1296 = vsel %vm320, %v1291, 0
      %v1299 = vsel %vm320, %v1292, 0
      %v1302 = vsel %vm320, %v1293, 0
      %v1305 = vsel %vm320, %v1294, 0
      %v1308 = vsel %vm333, %v1282, 0
      %1310 = vmatpush.bf16.msra.mxu0 0
      %1311 = vmatpush.bf16.msra.mxu0 0
      %1312 = vmatpush.bf16.msra.mxu0 0
      %1313 = vmatpush.bf16.msra.mxu0 0
      %1314 = vmatpush.bf16.msra.mxu0 0
      %1315 = vmatpush.bf16.msra.mxu0 0
      %1316 = vmatpush.bf16.msra.mxu0 0
      %1317 = vmatpush.bf16.msra.mxu0 %v1308
      %1318 = vmatmul.bf16.gmra.mxu0 %v1296
      %v1319 = vpop.f32.mrf.mxu0
      %v1320 = vadd.f32 0.0, %v1319
      %v1321 = vpop.f32.mrf.mxu0
      %v1322 = vadd.f32 0.0, %v1321
      %1323 = vmatmul.bf16.gmra.mxu0 %v1299
      %v1324 = vpop.f32.mrf.mxu0
      %v1325 = vadd.f32 0.0, %v1324
      %v1326 = vpop.f32.mrf.mxu0
      %v1327 = vadd.f32 0.0, %v1326
      %1328 = vmatmul.bf16.gmra.mxu0 %v1302
      %v1329 = vpop.f32.mrf.mxu0
      %v1330 = vadd.f32 0.0, %v1329
      %v1331 = vpop.f32.mrf.mxu0
      %v1332 = vadd.f32 0.0, %v1331
      %1333 = vmatmul.bf16.gmra.mxu0 %v1305
      %v1334 = vpop.f32.mrf.mxu0
      %v1335 = vadd.f32 0.0, %v1334
      %v1336 = vpop.f32.mrf.mxu0
      %v1337 = vadd.f32 0.0, %v1336
      %1338 = vdwg.mxu0
      %v1339 = vadd.f32 %v1145, %v1320
      %v1340 = vadd.f32 %v1146, %v1322
      %v1341 = vadd.f32 %v1147, %v1325
      %v1342 = vadd.f32 %v1148, %v1327
      %v1343 = vadd.f32 %v1149, %v1330
      %v1344 = vadd.f32 %v1150, %v1332
      %v1345 = vadd.f32 %v1151, %v1335
      %v1346 = vadd.f32 %v1152, %v1337
      %v1347 = vld [vmem:[%s2] sm:$0x1]
      %v1349 = vperm.slane %v1347, 0
      %v1351 = vadd.f32 %v1339, %v1349
      %v1352 = vadd.f32 %v1340, %v1349
      %v1353 = vadd.f32 %v1341, %v1349
      %v1354 = vadd.f32 %v1342, %v1349
      %v1355 = vadd.f32 %v1343, %v1349
      %v1356 = vadd.f32 %v1344, %v1349
      %v1357 = vadd.f32 %v1345, %v1349
      %v1358 = vadd.f32 %v1346, %v1349
      %v1359 = vmax.f32 %v1351, 0.0
      %v1360 = vmax.f32 %v1352, 0.0
      %v1361 = vmax.f32 %v1353, 0.0
      %v1362 = vmax.f32 %v1354, 0.0
      %v1363 = vmax.f32 %v1355, 0.0
      %v1364 = vmax.f32 %v1356, 0.0
      %v1365 = vmax.f32 %v1357, 0.0
      %v1366 = vmax.f32 %v1358, 0.0
      %1367 = vst [vmem:[#allocation2] sm:$0xf] 0
      %1368 = vst [vmem:[#allocation2 + $0x4] sm:$0xf] 0
      %s1369 = scalar_lea.vmem [#allocation2], 72
      %1370 = vst [vmem:[%s1369] sm:$0xf] 0
      %1371 = vst [vmem:[%s1369 + $0x4] sm:$0xf] 0
      %vm1372 = vcmask 1040384
      %vm1373 = vsmask.f32 256
      %vm1374 = vmand %vm1372, %vm1373
      %v1375 = vld [vmem:[#allocation2] sm:$0x1]
      %v1376 = vsel %vm1374, 0, %v1375
      %1377 = vst [vmem:[#allocation2] sm:$0x1] %v1376
      %v1378 = vld [vmem:[#allocation2 + $0x8] sm:$0x1]
      %v1379 = vsel %vm1374, 0, %v1378
      %1380 = vst [vmem:[#allocation2 + $0x8] sm:$0x1] %v1379
      %v1381 = vld [vmem:[#allocation2 + $0x10] sm:$0x1]
      %v1382 = vsel %vm1374, 0, %v1381
      %1383 = vst [vmem:[#allocation2 + $0x10] sm:$0x1] %v1382
      %v1384 = vld [vmem:[#allocation2 + $0x18] sm:$0x1]
      %v1385 = vsel %vm1374, 0, %v1384
      %1386 = vst [vmem:[#allocation2 + $0x18] sm:$0x1] %v1385
      %v1387 = vld [vmem:[#allocation2 + $0x20] sm:$0x1]
      %v1388 = vsel %vm1374, 0, %v1387
      %1389 = vst [vmem:[#allocation2 + $0x20] sm:$0x1] %v1388
      %v1390 = vld [vmem:[#allocation2 + $0x28] sm:$0x1]
      %v1391 = vsel %vm1374, 0, %v1390
      %1392 = vst [vmem:[#allocation2 + $0x28] sm:$0x1] %v1391
      %v1393 = vld [vmem:[#allocation2 + $0x30] sm:$0x1]
      %v1394 = vsel %vm1374, 0, %v1393
      %1395 = vst [vmem:[#allocation2 + $0x30] sm:$0x1] %v1394
      %v1396 = vld [vmem:[#allocation2 + $0x38] sm:$0x1]
      %v1397 = vsel %vm1374, 0, %v1396
      %1398 = vst [vmem:[#allocation2 + $0x38] sm:$0x1] %v1397
      %v1399 = vld [vmem:[#allocation2 + $0x40] sm:$0x1]
      %v1400 = vsel %vm1374, 0, %v1399
      %1401 = vst [vmem:[#allocation2 + $0x40] sm:$0x1] %v1400
      %v1402 = vld [vmem:[#allocation2 + $0x48] sm:$0x1]
      %v1403 = vsel %vm1374, 0, %v1402
      %1404 = vst [vmem:[#allocation2 + $0x48] sm:$0x1] %v1403
      %vm1405 = vsmask.f32 7938
      %vm1406 = vmand %vm1372, %vm1405
      %v1407 = vld [vmem:[#allocation2 + $0x4] sm:$0x1]
      %v1408 = vsel %vm1406, 0, %v1407
      %1409 = vst [vmem:[#allocation2 + $0x4] sm:$0x1] %v1408
      %v1410 = vld [vmem:[#allocation2 + $0xc] sm:$0x1]
      %v1411 = vsel %vm1406, 0, %v1410
      %1412 = vst [vmem:[#allocation2 + $0xc] sm:$0x1] %v1411
      %v1413 = vld [vmem:[#allocation2 + $0x14] sm:$0x1]
      %v1414 = vsel %vm1406, 0, %v1413
      %1415 = vst [vmem:[#allocation2 + $0x14] sm:$0x1] %v1414
      %v1416 = vld [vmem:[#allocation2 + $0x1c] sm:$0x1]
      %v1417 = vsel %vm1406, 0, %v1416
      %1418 = vst [vmem:[#allocation2 + $0x1c] sm:$0x1] %v1417
      %v1419 = vld [vmem:[#allocation2 + $0x24] sm:$0x1]
      %v1420 = vsel %vm1406, 0, %v1419
      %1421 = vst [vmem:[#allocation2 + $0x24] sm:$0x1] %v1420
      %v1422 = vld [vmem:[#allocation2 + $0x2c] sm:$0x1]
      %v1423 = vsel %vm1406, 0, %v1422
      %1424 = vst [vmem:[#allocation2 + $0x2c] sm:$0x1] %v1423
      %v1425 = vld [vmem:[#allocation2 + $0x34] sm:$0x1]
      %v1426 = vsel %vm1406, 0, %v1425
      %1427 = vst [vmem:[#allocation2 + $0x34] sm:$0x1] %v1426
      %v1428 = vld [vmem:[#allocation2 + $0x3c] sm:$0x1]
      %v1429 = vsel %vm1406, 0, %v1428
      %1430 = vst [vmem:[#allocation2 + $0x3c] sm:$0x1] %v1429
      %v1431 = vld [vmem:[#allocation2 + $0x44] sm:$0x1]
      %v1432 = vsel %vm1406, 0, %v1431
      %1433 = vst [vmem:[#allocation2 + $0x44] sm:$0x1] %v1432
      %v1434 = vld [vmem:[#allocation2 + $0x4c] sm:$0x1]
      %v1435 = vsel %vm1406, 0, %v1434
      %1436 = vst [vmem:[#allocation2 + $0x4c] sm:$0x1] %v1435
      %v1437 = vpack.c.bf16 %v1359, %v1359
      %v1438 = vpack.c.bf16 %v1360, %v1360
      %v1439 = vpack.c.bf16 %v1361, %v1361
      %v1440 = vpack.c.bf16 %v1362, %v1362
      %v1441 = vpack.c.bf16 %v1363, %v1363
      %v1442 = vpack.c.bf16 %v1364, %v1364
      %v1443 = vpack.c.bf16 %v1365, %v1365
      %v1444 = vpack.c.bf16 %v1366, %v1366
      %v1446 = vshrl.u32 %v1437, 16
      %v1448 = vrot.slane %v1446, 7
      %v1449 = vshll.u32 %v1437, 16
      %v1451 = vor.u32 %v1448, %v1449
      %v1452 = vrot.slane %v1448, 4
      %v1454 = vshrl.u32 %v1438, 16
      %v1456 = vrot.slane %v1454, 7
      %v1457 = vshll.u32 %v1438, 16
      %v1459 = vor.u32 %v1456, %v1457
      %v1460 = vrot.slane %v1456, 4
      %v1462 = vshrl.u32 %v1439, 16
      %v1464 = vrot.slane %v1462, 7
      %v1465 = vshll.u32 %v1439, 16
      %v1467 = vor.u32 %v1464, %v1465
      %v1468 = vrot.slane %v1464, 4
      %v1470 = vshrl.u32 %v1440, 16
      %v1472 = vrot.slane %v1470, 7
      %v1473 = vshll.u32 %v1440, 16
      %v1475 = vor.u32 %v1472, %v1473
      %v1476 = vrot.slane %v1472, 4
      %v1478 = vshrl.u32 %v1441, 16
      %v1480 = vrot.slane %v1478, 7
      %v1481 = vshll.u32 %v1441, 16
      %v1483 = vor.u32 %v1480, %v1481
      %v1484 = vrot.slane %v1480, 4
      %v1486 = vshrl.u32 %v1442, 16
      %v1488 = vrot.slane %v1486, 7
      %v1489 = vshll.u32 %v1442, 16
      %v1491 = vor.u32 %v1488, %v1489
      %v1492 = vrot.slane %v1488, 4
      %v1494 = vshrl.u32 %v1443, 16
      %v1496 = vrot.slane %v1494, 7
      %v1497 = vshll.u32 %v1443, 16
      %v1499 = vor.u32 %v1496, %v1497
      %v1500 = vrot.slane %v1496, 4
      %v1502 = vshrl.u32 %v1444, 16
      %v1504 = vrot.slane %v1502, 7
      %v1505 = vshll.u32 %v1444, 16
      %v1507 = vor.u32 %v1504, %v1505
      %v1508 = vrot.slane %v1504, 4
      %s1525 = scalar_lea.vmem [#allocation2], 8
      %vm1526 = vcmask 1043456
      %vm1527 = vmand %vm1526, %vm1405
      %v1528 = vld [vmem:[%s1525] sm:$0xf]
      %v1529 = vsel %vm1527, %v1451, %v1528
      %1530 = vst [vmem:[%s1525] sm:$0xf] %v1529
      %v1531 = vld [vmem:[%s1525 + $0x4] sm:$0x1]
      %v1532 = vsel %vm1374, %v1452, %v1531
      %1533 = vst [vmem:[%s1525 + $0x4] sm:$0x1] %v1532
      %v1534 = vld [vmem:[%s1525 + $0x8] sm:$0xf]
      %v1535 = vsel %vm1527, %v1459, %v1534
      %1536 = vst [vmem:[%s1525 + $0x8] sm:$0xf] %v1535
      %v1537 = vld [vmem:[%s1525 + $0xc] sm:$0x1]
      %v1538 = vsel %vm1374, %v1460, %v1537
      %1539 = vst [vmem:[%s1525 + $0xc] sm:$0x1] %v1538
      %v1540 = vld [vmem:[%s1525 + $0x10] sm:$0xf]
      %v1541 = vsel %vm1527, %v1467, %v1540
      %1542 = vst [vmem:[%s1525 + $0x10] sm:$0xf] %v1541
      %v1543 = vld [vmem:[%s1525 + $0x14] sm:$0x1]
      %v1544 = vsel %vm1374, %v1468, %v1543
      %1545 = vst [vmem:[%s1525 + $0x14] sm:$0x1] %v1544
      %v1546 = vld [vmem:[%s1525 + $0x18] sm:$0xf]
      %v1547 = vsel %vm1527, %v1475, %v1546
      %1548 = vst [vmem:[%s1525 + $0x18] sm:$0xf] %v1547
      %v1549 = vld [vmem:[%s1525 + $0x1c] sm:$0x1]
      %v1550 = vsel %vm1374, %v1476, %v1549
      %1551 = vst [vmem:[%s1525 + $0x1c] sm:$0x1] %v1550
      %v1552 = vld [vmem:[%s1525 + $0x20] sm:$0xf]
      %v1553 = vsel %vm1527, %v1483, %v1552
      %1554 = vst [vmem:[%s1525 + $0x20] sm:$0xf] %v1553
      %v1555 = vld [vmem:[%s1525 + $0x24] sm:$0x1]
      %v1556 = vsel %vm1374, %v1484, %v1555
      %1557 = vst [vmem:[%s1525 + $0x24] sm:$0x1] %v1556
      %v1558 = vld [vmem:[%s1525 + $0x28] sm:$0xf]
      %v1559 = vsel %vm1527, %v1491, %v1558
      %1560 = vst [vmem:[%s1525 + $0x28] sm:$0xf] %v1559
      %v1561 = vld [vmem:[%s1525 + $0x2c] sm:$0x1]
      %v1562 = vsel %vm1374, %v1492, %v1561
      %1563 = vst [vmem:[%s1525 + $0x2c] sm:$0x1] %v1562
      %v1564 = vld [vmem:[%s1525 + $0x30] sm:$0xf]
      %v1565 = vsel %vm1527, %v1499, %v1564
      %1566 = vst [vmem:[%s1525 + $0x30] sm:$0xf] %v1565
      %v1567 = vld [vmem:[%s1525 + $0x34] sm:$0x1]
      %v1568 = vsel %vm1374, %v1500, %v1567
      %1569 = vst [vmem:[%s1525 + $0x34] sm:$0x1] %v1568
      %v1570 = vld [vmem:[%s1525 + $0x38] sm:$0xf]
      %v1571 = vsel %vm1527, %v1507, %v1570
      %1572 = vst [vmem:[%s1525 + $0x38] sm:$0xf] %v1571
      %v1573 = vld [vmem:[%s1525 + $0x3c] sm:$0x1]
      %v1574 = vsel %vm1374, %v1508, %v1573
      %1575 = vst [vmem:[%s1525 + $0x3c] sm:$0x1] %v1574
      %v1576 = vld [vmem:[#allocation2] sm:$0xf]
      %v1577 = vld [vmem:[#allocation2 + $0x8] sm:$0xf]
      %v1578 = vld [vmem:[#allocation2 + $0x10] sm:$0xf]
      %v1579 = vld [vmem:[#allocation2 + $0x18] sm:$0xf]
      %v1580 = vld [vmem:[#allocation2 + $0x20] sm:$0xf]
      %v1581 = vld [vmem:[#allocation2 + $0x28] sm:$0xf]
      %v1582 = vld [vmem:[#allocation2 + $0x30] sm:$0xf]
      %v1583 = vld [vmem:[#allocation2 + $0x38] sm:$0xf]
      %v1584 = vld [vmem:[%s3] sm:$0xf]
      %v1585 = vld [vmem:[%s3 + $0x4] sm:$0xf]
      %v1586 = vld [vmem:[%s3 + $0x8] sm:$0xf]
      %v1587 = vld [vmem:[%s3 + $0xc] sm:$0xf]
      %v1588 = vld [vmem:[%s3 + $0x10] sm:$0xf]
      %v1589 = vld [vmem:[%s3 + $0x14] sm:$0xf]
      %v1590 = vld [vmem:[%s3 + $0x18] sm:$0xf]
      %v1591 = vld [vmem:[%s3 + $0x1c] sm:$0xf]
      %v1592 = vld [vmem:[%s3 + $0x20] sm:$0xf]
      %v1593 = vld [vmem:[%s3 + $0x24] sm:$0xf]
      %v1594 = vld [vmem:[%s3 + $0x28] sm:$0xf]
      %v1595 = vld [vmem:[%s3 + $0x2c] sm:$0xf]
      %v1596 = vld [vmem:[%s3 + $0x30] sm:$0xf]
      %v1597 = vld [vmem:[%s3 + $0x34] sm:$0xf]
      %v1598 = vld [vmem:[%s3 + $0x38] sm:$0xf]
      %v1599 = vld [vmem:[%s3 + $0x3c] sm:$0xf]
      %v1600 = vld [vmem:[#allocation2 + $0x4] sm:$0x1]
      %v1601 = vld [vmem:[#allocation2 + $0xc] sm:$0x1]
      %v1602 = vld [vmem:[#allocation2 + $0x14] sm:$0x1]
      %v1603 = vld [vmem:[#allocation2 + $0x1c] sm:$0x1]
      %v1604 = vld [vmem:[#allocation2 + $0x24] sm:$0x1]
      %v1605 = vld [vmem:[#allocation2 + $0x2c] sm:$0x1]
      %v1606 = vld [vmem:[#allocation2 + $0x34] sm:$0x1]
      %v1607 = vld [vmem:[#allocation2 + $0x3c] sm:$0x1]
      %v1609 = vshrl.u32 %v1576, 16
      %v1611 = vrot.slane %v1609, 4
      %v1612 = vshll.u32 %v1576, 16
      %v1614 = vrot.slane %v1612, 5
      %v1615 = vor.u32 %v1611, %v1614
      %v1616 = vrot.slane %v1615, 4
      %v1618 = vshll.u32 %v1600, 16
      %v1620 = vrot.slane %v1618, 5
      %v1621 = vsel %vm448, %v1616, %v1620
      %v1623 = vshrl.u32 %v1577, 16
      %v1625 = vrot.slane %v1623, 4
      %v1626 = vshll.u32 %v1577, 16
      %v1628 = vrot.slane %v1626, 5
      %v1629 = vor.u32 %v1625, %v1628
      %v1630 = vrot.slane %v1629, 4
      %v1632 = vshll.u32 %v1601, 16
      %v1634 = vrot.slane %v1632, 5
      %v1635 = vsel %vm448, %v1630, %v1634
      %v1637 = vshrl.u32 %v1578, 16
      %v1639 = vrot.slane %v1637, 4
      %v1640 = vshll.u32 %v1578, 16
      %v1642 = vrot.slane %v1640, 5
      %v1643 = vor.u32 %v1639, %v1642
      %v1644 = vrot.slane %v1643, 4
      %v1646 = vshll.u32 %v1602, 16
      %v1648 = vrot.slane %v1646, 5
      %v1649 = vsel %vm448, %v1644, %v1648
      %v1651 = vshrl.u32 %v1579, 16
      %v1653 = vrot.slane %v1651, 4
      %v1654 = vshll.u32 %v1579, 16
      %v1656 = vrot.slane %v1654, 5
      %v1657 = vor.u32 %v1653, %v1656
      %v1658 = vrot.slane %v1657, 4
      %v1660 = vshll.u32 %v1603, 16
      %v1662 = vrot.slane %v1660, 5
      %v1663 = vsel %vm448, %v1658, %v1662
      %v1665 = vshrl.u32 %v1580, 16
      %v1667 = vrot.slane %v1665, 4
      %v1668 = vshll.u32 %v1580, 16
      %v1670 = vrot.slane %v1668, 5
      %v1671 = vor.u32 %v1667, %v1670
      %v1672 = vrot.slane %v1671, 4
      %v1674 = vshll.u32 %v1604, 16
      %v1676 = vrot.slane %v1674, 5
      %v1677 = vsel %vm448, %v1672, %v1676
      %v1679 = vshrl.u32 %v1581, 16
      %v1681 = vrot.slane %v1679, 4
      %v1682 = vshll.u32 %v1581, 16
      %v1684 = vrot.slane %v1682, 5
      %v1685 = vor.u32 %v1681, %v1684
      %v1686 = vrot.slane %v1685, 4
      %v1688 = vshll.u32 %v1605, 16
      %v1690 = vrot.slane %v1688, 5
      %v1691 = vsel %vm448, %v1686, %v1690
      %v1693 = vshrl.u32 %v1582, 16
      %v1695 = vrot.slane %v1693, 4
      %v1696 = vshll.u32 %v1582, 16
      %v1698 = vrot.slane %v1696, 5
      %v1699 = vor.u32 %v1695, %v1698
      %v1700 = vrot.slane %v1699, 4
      %v1702 = vshll.u32 %v1606, 16
      %v1704 = vrot.slane %v1702, 5
      %v1705 = vsel %vm448, %v1700, %v1704
      %v1707 = vshrl.u32 %v1583, 16
      %v1709 = vrot.slane %v1707, 4
      %v1710 = vshll.u32 %v1583, 16
      %v1712 = vrot.slane %v1710, 5
      %v1713 = vor.u32 %v1709, %v1712
      %v1714 = vrot.slane %v1713, 4
      %v1716 = vshll.u32 %v1607, 16
      %v1718 = vrot.slane %v1716, 5
      %v1719 = vsel %vm448, %v1714, %v1718
      %s1720 = scalar_lea.vmem %s3, 64
      %v1721 = vld [vmem:[%s1720] sm:$0xf]
      %v1722 = vld [vmem:[%s1720 + $0x4] sm:$0xf]
      %v1723 = vld [vmem:[%s1720 + $0x8] sm:$0xf]
      %v1724 = vld [vmem:[%s1720 + $0xc] sm:$0xf]
      %v1725 = vld [vmem:[%s1720 + $0x10] sm:$0xf]
      %v1726 = vld [vmem:[%s1720 + $0x14] sm:$0xf]
      %v1727 = vld [vmem:[%s1720 + $0x18] sm:$0xf]
      %v1728 = vld [vmem:[%s1720 + $0x1c] sm:$0xf]
      %v1729 = vld [vmem:[%s1720 + $0x20] sm:$0xf]
      %v1730 = vld [vmem:[%s1720 + $0x24] sm:$0xf]
      %v1731 = vld [vmem:[%s1720 + $0x28] sm:$0xf]
      %v1732 = vld [vmem:[%s1720 + $0x2c] sm:$0xf]
      %v1733 = vld [vmem:[%s1720 + $0x30] sm:$0xf]
      %v1734 = vld [vmem:[%s1720 + $0x34] sm:$0xf]
      %v1735 = vld [vmem:[%s1720 + $0x38] sm:$0xf]
      %v1736 = vld [vmem:[%s1720 + $0x3c] sm:$0xf]
      %v1737 = vunpack.c.l.b16 %v1621
      %v1738 = vunpack.c.l.b16 %v1635
      %v1739 = vunpack.c.l.b16 %v1649
      %v1740 = vunpack.c.l.b16 %v1663
      %v1741 = vunpack.c.l.b16 %v1677
      %v1742 = vunpack.c.l.b16 %v1691
      %v1743 = vunpack.c.l.b16 %v1705
      %v1744 = vunpack.c.l.b16 %v1719
      %v1745 = vpack.c.b16 %v1738, %v1737
      %v1746 = vpack.c.b16 %v1740, %v1739
      %v1747 = vpack.c.b16 %v1742, %v1741
      %v1748 = vpack.c.b16 %v1744, %v1743
      %v1769 = vunpack.c.l.b16 %v1721
      %v1770 = vunpack.c.l.b16 %v1722
      %v1771 = vunpack.c.l.b16 %v1723
      %v1772 = vunpack.c.l.b16 %v1724
      %v1773 = vunpack.c.l.b16 %v1725
      %v1774 = vunpack.c.l.b16 %v1726
      %v1775 = vunpack.c.l.b16 %v1727
      %v1776 = vunpack.c.l.b16 %v1728
      %v1777 = vunpack.c.l.b16 %v1729
      %v1778 = vunpack.c.l.b16 %v1730
      %v1779 = vunpack.c.l.b16 %v1731
      %v1780 = vunpack.c.l.b16 %v1732
      %v1781 = vunpack.c.l.b16 %v1733
      %v1782 = vunpack.c.l.b16 %v1734
      %v1783 = vunpack.c.l.b16 %v1735
      %v1784 = vunpack.c.l.b16 %v1736
      %v1785 = vpack.c.b16 %v1770, %v1769
      %v1786 = vpack.c.b16 %v1772, %v1771
      %v1787 = vpack.c.b16 %v1774, %v1773
      %v1788 = vpack.c.b16 %v1776, %v1775
      %v1789 = vpack.c.b16 %v1778, %v1777
      %v1790 = vpack.c.b16 %v1780, %v1779
      %v1791 = vpack.c.b16 %v1782, %v1781
      %v1792 = vpack.c.b16 %v1784, %v1783
      %1801 = vmatpush.bf16.msra.mxu0 %v1792
      %1802 = vmatpush.bf16.msra.mxu0 %v1791
      %1803 = vmatpush.bf16.msra.mxu0 %v1790
      %1804 = vmatpush.bf16.msra.mxu0 %v1789
      %1805 = vmatpush.bf16.msra.mxu0 %v1788
      %1806 = vmatpush.bf16.msra.mxu0 %v1787
      %1807 = vmatpush.bf16.msra.mxu0 %v1786
      %1808 = vmatpush.bf16.msra.mxu0 %v1785
      %1809 = vmatmul.bf16.gmra.mxu0 %v1745
      %v1810 = vpop.f32.mrf.mxu0
      %v1811 = vadd.f32 0.0, %v1810
      %v1812 = vpop.f32.mrf.mxu0
      %v1813 = vadd.f32 0.0, %v1812
      %1814 = vmatmul.bf16.gmra.mxu0 %v1746
      %v1815 = vpop.f32.mrf.mxu0
      %v1816 = vadd.f32 0.0, %v1815
      %v1817 = vpop.f32.mrf.mxu0
      %v1818 = vadd.f32 0.0, %v1817
      %1819 = vmatmul.bf16.gmra.mxu0 %v1747
      %v1820 = vpop.f32.mrf.mxu0
      %v1821 = vadd.f32 0.0, %v1820
      %v1822 = vpop.f32.mrf.mxu0
      %v1823 = vadd.f32 0.0, %v1822
      %1824 = vmatmul.bf16.gmra.mxu0 %v1748
      %v1825 = vpop.f32.mrf.mxu0
      %v1826 = vadd.f32 0.0, %v1825
      %v1827 = vpop.f32.mrf.mxu0
      %v1828 = vadd.f32 0.0, %v1827
      %1829 = vdwg.mxu0
      %v1838 = vunpack.c.l.b16 %v1576
      %v1839 = vunpack.c.l.b16 %v1577
      %v1840 = vunpack.c.l.b16 %v1578
      %v1841 = vunpack.c.l.b16 %v1579
      %v1842 = vunpack.c.l.b16 %v1580
      %v1843 = vunpack.c.l.b16 %v1581
      %v1844 = vunpack.c.l.b16 %v1582
      %v1845 = vunpack.c.l.b16 %v1583
      %v1846 = vpack.c.b16 %v1839, %v1838
      %v1847 = vpack.c.b16 %v1841, %v1840
      %v1848 = vpack.c.b16 %v1843, %v1842
      %v1849 = vpack.c.b16 %v1845, %v1844
      %v1870 = vunpack.c.l.b16 %v1584
      %v1871 = vunpack.c.l.b16 %v1585
      %v1872 = vunpack.c.l.b16 %v1586
      %v1873 = vunpack.c.l.b16 %v1587
      %v1874 = vunpack.c.l.b16 %v1588
      %v1875 = vunpack.c.l.b16 %v1589
      %v1876 = vunpack.c.l.b16 %v1590
      %v1877 = vunpack.c.l.b16 %v1591
      %v1878 = vunpack.c.l.b16 %v1592
      %v1879 = vunpack.c.l.b16 %v1593
      %v1880 = vunpack.c.l.b16 %v1594
      %v1881 = vunpack.c.l.b16 %v1595
      %v1882 = vunpack.c.l.b16 %v1596
      %v1883 = vunpack.c.l.b16 %v1597
      %v1884 = vunpack.c.l.b16 %v1598
      %v1885 = vunpack.c.l.b16 %v1599
      %v1886 = vpack.c.b16 %v1871, %v1870
      %v1887 = vpack.c.b16 %v1873, %v1872
      %v1888 = vpack.c.b16 %v1875, %v1874
      %v1889 = vpack.c.b16 %v1877, %v1876
      %v1890 = vpack.c.b16 %v1879, %v1878
      %v1891 = vpack.c.b16 %v1881, %v1880
      %v1892 = vpack.c.b16 %v1883, %v1882
      %v1893 = vpack.c.b16 %v1885, %v1884
      %1902 = vmatpush.bf16.msra.mxu0 %v1893
      %1903 = vmatpush.bf16.msra.mxu0 %v1892
      %1904 = vmatpush.bf16.msra.mxu0 %v1891
      %1905 = vmatpush.bf16.msra.mxu0 %v1890
      %1906 = vmatpush.bf16.msra.mxu0 %v1889
      %1907 = vmatpush.bf16.msra.mxu0 %v1888
      %1908 = vmatpush.bf16.msra.mxu0 %v1887
      %1909 = vmatpush.bf16.msra.mxu0 %v1886
      %1910 = vmatmul.bf16.gmra.mxu0 %v1846
      %v1911 = vpop.f32.mrf.mxu0
      %v1912 = vadd.f32 %v1811, %v1911
      %v1913 = vpop.f32.mrf.mxu0
      %v1914 = vadd.f32 %v1813, %v1913
      %1915 = vmatmul.bf16.gmra.mxu0 %v1847
      %v1916 = vpop.f32.mrf.mxu0
      %v1917 = vadd.f32 %v1816, %v1916
      %v1918 = vpop.f32.mrf.mxu0
      %v1919 = vadd.f32 %v1818, %v1918
      %1920 = vmatmul.bf16.gmra.mxu0 %v1848
      %v1921 = vpop.f32.mrf.mxu0
      %v1922 = vadd.f32 %v1821, %v1921
      %v1923 = vpop.f32.mrf.mxu0
      %v1924 = vadd.f32 %v1823, %v1923
      %1925 = vmatmul.bf16.gmra.mxu0 %v1849
      %v1926 = vpop.f32.mrf.mxu0
      %v1927 = vadd.f32 %v1826, %v1926
      %v1928 = vpop.f32.mrf.mxu0
      %v1929 = vadd.f32 %v1828, %v1928
      %1930 = vdwg.mxu0
      %v1931 = vld [vmem:[#allocation2] sm:$0xe]
      %v1932 = vld [vmem:[#allocation2 + $0x8] sm:$0xe]
      %v1933 = vld [vmem:[#allocation2 + $0x10] sm:$0xe]
      %v1934 = vld [vmem:[#allocation2 + $0x18] sm:$0xe]
      %v1935 = vld [vmem:[#allocation2 + $0x20] sm:$0xe]
      %v1936 = vld [vmem:[#allocation2 + $0x28] sm:$0xe]
      %v1937 = vld [vmem:[#allocation2 + $0x30] sm:$0xe]
      %v1938 = vld [vmem:[#allocation2 + $0x38] sm:$0xe]
      %vm1955 = vcmask 1042432
      %vm1956 = vcmask 1046532
      %vm1957 = vmor %vm1955, %vm1956
      %v1958 = vrot.slane %v1931, 5
      %v1959 = vrot.slane %v1958, 4
      %v1960 = vrot.slane %v1600, 5
      %v1961 = vsel %vm1957, %v1959, %v1960
      %v1962 = vrot.slane %v1932, 5
      %v1963 = vrot.slane %v1962, 4
      %v1964 = vrot.slane %v1601, 5
      %v1965 = vsel %vm1957, %v1963, %v1964
      %v1966 = vrot.slane %v1933, 5
      %v1967 = vrot.slane %v1966, 4
      %v1968 = vrot.slane %v1602, 5
      %v1969 = vsel %vm1957, %v1967, %v1968
      %v1970 = vrot.slane %v1934, 5
      %v1971 = vrot.slane %v1970, 4
      %v1972 = vrot.slane %v1603, 5
      %v1973 = vsel %vm1957, %v1971, %v1972
      %v1974 = vrot.slane %v1935, 5
      %v1975 = vrot.slane %v1974, 4
      %v1976 = vrot.slane %v1604, 5
      %v1977 = vsel %vm1957, %v1975, %v1976
      %v1978 = vrot.slane %v1936, 5
      %v1979 = vrot.slane %v1978, 4
      %v1980 = vrot.slane %v1605, 5
      %v1981 = vsel %vm1957, %v1979, %v1980
      %v1982 = vrot.slane %v1937, 5
      %v1983 = vrot.slane %v1982, 4
      %v1984 = vrot.slane %v1606, 5
      %v1985 = vsel %vm1957, %v1983, %v1984
      %v1986 = vrot.slane %v1938, 5
      %v1987 = vrot.slane %v1986, 4
      %v1988 = vrot.slane %v1607, 5
      %v1989 = vsel %vm1957, %v1987, %v1988
      %s1990 = scalar_lea.vmem %s3, 128
      %v1991 = vld [vmem:[%s1990] sm:$0xf]
      %v1992 = vld [vmem:[%s1990 + $0x4] sm:$0xf]
      %v1993 = vld [vmem:[%s1990 + $0x8] sm:$0xf]
      %v1994 = vld [vmem:[%s1990 + $0xc] sm:$0xf]
      %v1995 = vld [vmem:[%s1990 + $0x10] sm:$0xf]
      %v1996 = vld [vmem:[%s1990 + $0x14] sm:$0xf]
      %v1997 = vld [vmem:[%s1990 + $0x18] sm:$0xf]
      %v1998 = vld [vmem:[%s1990 + $0x1c] sm:$0xf]
      %v1999 = vld [vmem:[%s1990 + $0x20] sm:$0xf]
      %v2000 = vld [vmem:[%s1990 + $0x24] sm:$0xf]
      %v2001 = vld [vmem:[%s1990 + $0x28] sm:$0xf]
      %v2002 = vld [vmem:[%s1990 + $0x2c] sm:$0xf]
      %v2003 = vld [vmem:[%s1990 + $0x30] sm:$0xf]
      %v2004 = vld [vmem:[%s1990 + $0x34] sm:$0xf]
      %v2005 = vld [vmem:[%s1990 + $0x38] sm:$0xf]
      %v2006 = vld [vmem:[%s1990 + $0x3c] sm:$0xf]
      %v2007 = vunpack.c.l.b16 %v1961
      %v2008 = vunpack.c.l.b16 %v1965
      %v2009 = vunpack.c.l.b16 %v1969
      %v2010 = vunpack.c.l.b16 %v1973
      %v2011 = vunpack.c.l.b16 %v1977
      %v2012 = vunpack.c.l.b16 %v1981
      %v2013 = vunpack.c.l.b16 %v1985
      %v2014 = vunpack.c.l.b16 %v1989
      %v2015 = vpack.c.b16 %v2008, %v2007
      %v2016 = vpack.c.b16 %v2010, %v2009
      %v2017 = vpack.c.b16 %v2012, %v2011
      %v2018 = vpack.c.b16 %v2014, %v2013
      %v2039 = vunpack.c.l.b16 %v1991
      %v2040 = vunpack.c.l.b16 %v1992
      %v2041 = vunpack.c.l.b16 %v1993
      %v2042 = vunpack.c.l.b16 %v1994
      %v2043 = vunpack.c.l.b16 %v1995
      %v2044 = vunpack.c.l.b16 %v1996
      %v2045 = vunpack.c.l.b16 %v1997
      %v2046 = vunpack.c.l.b16 %v1998
      %v2047 = vunpack.c.l.b16 %v1999
      %v2048 = vunpack.c.l.b16 %v2000
      %v2049 = vunpack.c.l.b16 %v2001
      %v2050 = vunpack.c.l.b16 %v2002
      %v2051 = vunpack.c.l.b16 %v2003
      %v2052 = vunpack.c.l.b16 %v2004
      %v2053 = vunpack.c.l.b16 %v2005
      %v2054 = vunpack.c.l.b16 %v2006
      %v2055 = vpack.c.b16 %v2040, %v2039
      %v2056 = vpack.c.b16 %v2042, %v2041
      %v2057 = vpack.c.b16 %v2044, %v2043
      %v2058 = vpack.c.b16 %v2046, %v2045
      %v2059 = vpack.c.b16 %v2048, %v2047
      %v2060 = vpack.c.b16 %v2050, %v2049
      %v2061 = vpack.c.b16 %v2052, %v2051
      %v2062 = vpack.c.b16 %v2054, %v2053
      %2071 = vmatpush.bf16.msra.mxu0 %v2062
      %2072 = vmatpush.bf16.msra.mxu0 %v2061
      %2073 = vmatpush.bf16.msra.mxu0 %v2060
      %2074 = vmatpush.bf16.msra.mxu0 %v2059
      %2075 = vmatpush.bf16.msra.mxu0 %v2058
      %2076 = vmatpush.bf16.msra.mxu0 %v2057
      %2077 = vmatpush.bf16.msra.mxu0 %v2056
      %2078 = vmatpush.bf16.msra.mxu0 %v2055
      %2079 = vmatmul.bf16.gmra.mxu0 %v2015
      %v2080 = vpop.f32.mrf.mxu0
      %v2081 = vadd.f32 0.0, %v2080
      %v2082 = vpop.f32.mrf.mxu0
      %v2083 = vadd.f32 0.0, %v2082
      %2084 = vmatmul.bf16.gmra.mxu0 %v2016
      %v2085 = vpop.f32.mrf.mxu0
      %v2086 = vadd.f32 0.0, %v2085
      %v2087 = vpop.f32.mrf.mxu0
      %v2088 = vadd.f32 0.0, %v2087
      %2089 = vmatmul.bf16.gmra.mxu0 %v2017
      %v2090 = vpop.f32.mrf.mxu0
      %v2091 = vadd.f32 0.0, %v2090
      %v2092 = vpop.f32.mrf.mxu0
      %v2093 = vadd.f32 0.0, %v2092
      %2094 = vmatmul.bf16.gmra.mxu0 %v2018
      %v2095 = vpop.f32.mrf.mxu0
      %v2096 = vadd.f32 0.0, %v2095
      %v2097 = vpop.f32.mrf.mxu0
      %v2098 = vadd.f32 0.0, %v2097
      %2099 = vdwg.mxu0
      %v2100 = vadd.f32 %v1912, %v2081
      %v2101 = vadd.f32 %v1914, %v2083
      %v2102 = vadd.f32 %v1917, %v2086
      %v2103 = vadd.f32 %v1919, %v2088
      %v2104 = vadd.f32 %v1922, %v2091
      %v2105 = vadd.f32 %v1924, %v2093
      %v2106 = vadd.f32 %v1927, %v2096
      %v2107 = vadd.f32 %v1929, %v2098
      %v2108 = vld [vmem:[%s1525] sm:$0xf]
      %v2109 = vld [vmem:[%s1525 + $0x8] sm:$0xf]
      %v2110 = vld [vmem:[%s1525 + $0x10] sm:$0xf]
      %v2111 = vld [vmem:[%s1525 + $0x18] sm:$0xf]
      %v2112 = vld [vmem:[%s1525 + $0x20] sm:$0xf]
      %v2113 = vld [vmem:[%s1525 + $0x28] sm:$0xf]
      %v2114 = vld [vmem:[%s1525 + $0x30] sm:$0xf]
      %v2115 = vld [vmem:[%s1525 + $0x38] sm:$0xf]
      %s2116 = scalar_lea.vmem %s3, 192
      %v2117 = vld [vmem:[%s2116] sm:$0xf]
      %v2118 = vld [vmem:[%s2116 + $0x4] sm:$0xf]
      %v2119 = vld [vmem:[%s2116 + $0x8] sm:$0xf]
      %v2120 = vld [vmem:[%s2116 + $0xc] sm:$0xf]
      %v2121 = vld [vmem:[%s2116 + $0x10] sm:$0xf]
      %v2122 = vld [vmem:[%s2116 + $0x14] sm:$0xf]
      %v2123 = vld [vmem:[%s2116 + $0x18] sm:$0xf]
      %v2124 = vld [vmem:[%s2116 + $0x1c] sm:$0xf]
      %v2125 = vld [vmem:[%s2116 + $0x20] sm:$0xf]
      %v2126 = vld [vmem:[%s2116 + $0x24] sm:$0xf]
      %v2127 = vld [vmem:[%s2116 + $0x28] sm:$0xf]
      %v2128 = vld [vmem:[%s2116 + $0x2c] sm:$0xf]
      %v2129 = vld [vmem:[%s2116 + $0x30] sm:$0xf]
      %v2130 = vld [vmem:[%s2116 + $0x34] sm:$0xf]
      %v2131 = vld [vmem:[%s2116 + $0x38] sm:$0xf]
      %v2132 = vld [vmem:[%s2116 + $0x3c] sm:$0xf]
      %v2141 = vunpack.c.l.b16 %v2108
      %v2142 = vunpack.c.l.b16 %v2109
      %v2143 = vunpack.c.l.b16 %v2110
      %v2144 = vunpack.c.l.b16 %v2111
      %v2145 = vunpack.c.l.b16 %v2112
      %v2146 = vunpack.c.l.b16 %v2113
      %v2147 = vunpack.c.l.b16 %v2114
      %v2148 = vunpack.c.l.b16 %v2115
      %v2149 = vpack.c.b16 %v2142, %v2141
      %v2150 = vpack.c.b16 %v2144, %v2143
      %v2151 = vpack.c.b16 %v2146, %v2145
      %v2152 = vpack.c.b16 %v2148, %v2147
      %v2173 = vunpack.c.l.b16 %v2117
      %v2174 = vunpack.c.l.b16 %v2118
      %v2175 = vunpack.c.l.b16 %v2119
      %v2176 = vunpack.c.l.b16 %v2120
      %v2177 = vunpack.c.l.b16 %v2121
      %v2178 = vunpack.c.l.b16 %v2122
      %v2179 = vunpack.c.l.b16 %v2123
      %v2180 = vunpack.c.l.b16 %v2124
      %v2181 = vunpack.c.l.b16 %v2125
      %v2182 = vunpack.c.l.b16 %v2126
      %v2183 = vunpack.c.l.b16 %v2127
      %v2184 = vunpack.c.l.b16 %v2128
      %v2185 = vunpack.c.l.b16 %v2129
      %v2186 = vunpack.c.l.b16 %v2130
      %v2187 = vunpack.c.l.b16 %v2131
      %v2188 = vunpack.c.l.b16 %v2132
      %v2189 = vpack.c.b16 %v2174, %v2173
      %v2190 = vpack.c.b16 %v2176, %v2175
      %v2191 = vpack.c.b16 %v2178, %v2177
      %v2192 = vpack.c.b16 %v2180, %v2179
      %v2193 = vpack.c.b16 %v2182, %v2181
      %v2194 = vpack.c.b16 %v2184, %v2183
      %v2195 = vpack.c.b16 %v2186, %v2185
      %v2196 = vpack.c.b16 %v2188, %v2187
      %2205 = vmatpush.bf16.msra.mxu0 %v2196
      %2206 = vmatpush.bf16.msra.mxu0 %v2195
      %2207 = vmatpush.bf16.msra.mxu0 %v2194
      %2208 = vmatpush.bf16.msra.mxu0 %v2193
      %2209 = vmatpush.bf16.msra.mxu0 %v2192
      %2210 = vmatpush.bf16.msra.mxu0 %v2191
      %2211 = vmatpush.bf16.msra.mxu0 %v2190
      %2212 = vmatpush.bf16.msra.mxu0 %v2189
      %2213 = vmatmul.bf16.gmra.mxu0 %v2149
      %v2214 = vpop.f32.mrf.mxu0
      %v2215 = vadd.f32 0.0, %v2214
      %v2216 = vpop.f32.mrf.mxu0
      %v2217 = vadd.f32 0.0, %v2216
      %2218 = vmatmul.bf16.gmra.mxu0 %v2150
      %v2219 = vpop.f32.mrf.mxu0
      %v2220 = vadd.f32 0.0, %v2219
      %v2221 = vpop.f32.mrf.mxu0
      %v2222 = vadd.f32 0.0, %v2221
      %2223 = vmatmul.bf16.gmra.mxu0 %v2151
      %v2224 = vpop.f32.mrf.mxu0
      %v2225 = vadd.f32 0.0, %v2224
      %v2226 = vpop.f32.mrf.mxu0
      %v2227 = vadd.f32 0.0, %v2226
      %2228 = vmatmul.bf16.gmra.mxu0 %v2152
      %v2229 = vpop.f32.mrf.mxu0
      %v2230 = vadd.f32 0.0, %v2229
      %v2231 = vpop.f32.mrf.mxu0
      %v2232 = vadd.f32 0.0, %v2231
      %2233 = vdwg.mxu0
      %v2234 = vadd.f32 %v2100, %v2215
      %v2235 = vadd.f32 %v2101, %v2217
      %v2236 = vadd.f32 %v2102, %v2220
      %v2237 = vadd.f32 %v2103, %v2222
      %v2238 = vadd.f32 %v2104, %v2225
      %v2239 = vadd.f32 %v2105, %v2227
      %v2240 = vadd.f32 %v2106, %v2230
      %v2241 = vadd.f32 %v2107, %v2232
      %v2242 = vld [vmem:[%s1525] sm:$0xf]
      %v2243 = vld [vmem:[%s1525 + $0x4] sm:$0x1]
      %v2244 = vld [vmem:[%s1525 + $0x8] sm:$0xf]
      %v2245 = vld [vmem:[%s1525 + $0xc] sm:$0x1]
      %v2246 = vld [vmem:[%s1525 + $0x10] sm:$0xf]
      %v2247 = vld [vmem:[%s1525 + $0x14] sm:$0x1]
      %v2248 = vld [vmem:[%s1525 + $0x18] sm:$0xf]
      %v2249 = vld [vmem:[%s1525 + $0x1c] sm:$0x1]
      %v2250 = vld [vmem:[%s1525 + $0x20] sm:$0xf]
      %v2251 = vld [vmem:[%s1525 + $0x24] sm:$0x1]
      %v2252 = vld [vmem:[%s1525 + $0x28] sm:$0xf]
      %v2253 = vld [vmem:[%s1525 + $0x2c] sm:$0x1]
      %v2254 = vld [vmem:[%s1525 + $0x30] sm:$0xf]
      %v2255 = vld [vmem:[%s1525 + $0x34] sm:$0x1]
      %v2256 = vld [vmem:[%s1525 + $0x38] sm:$0xf]
      %v2257 = vld [vmem:[%s1525 + $0x3c] sm:$0x1]
      %v2259 = vshrl.u32 %v2242, 16
      %v2261 = vrot.slane %v2259, 4
      %v2262 = vshll.u32 %v2242, 16
      %v2264 = vrot.slane %v2262, 5
      %v2265 = vor.u32 %v2261, %v2264
      %v2266 = vrot.slane %v2265, 4
      %v2268 = vshll.u32 %v2243, 16
      %v2270 = vrot.slane %v2268, 5
      %v2271 = vsel %vm448, %v2266, %v2270
      %v2273 = vshrl.u32 %v2244, 16
      %v2275 = vrot.slane %v2273, 4
      %v2276 = vshll.u32 %v2244, 16
      %v2278 = vrot.slane %v2276, 5
      %v2279 = vor.u32 %v2275, %v2278
      %v2280 = vrot.slane %v2279, 4
      %v2282 = vshll.u32 %v2245, 16
      %v2284 = vrot.slane %v2282, 5
      %v2285 = vsel %vm448, %v2280, %v2284
      %v2287 = vshrl.u32 %v2246, 16
      %v2289 = vrot.slane %v2287, 4
      %v2290 = vshll.u32 %v2246, 16
      %v2292 = vrot.slane %v2290, 5
      %v2293 = vor.u32 %v2289, %v2292
      %v2294 = vrot.slane %v2293, 4
      %v2296 = vshll.u32 %v2247, 16
      %v2298 = vrot.slane %v2296, 5
      %v2299 = vsel %vm448, %v2294, %v2298
      %v2301 = vshrl.u32 %v2248, 16
      %v2303 = vrot.slane %v2301, 4
      %v2304 = vshll.u32 %v2248, 16
      %v2306 = vrot.slane %v2304, 5
      %v2307 = vor.u32 %v2303, %v2306
      %v2308 = vrot.slane %v2307, 4
      %v2310 = vshll.u32 %v2249, 16
      %v2312 = vrot.slane %v2310, 5
      %v2313 = vsel %vm448, %v2308, %v2312
      %v2315 = vshrl.u32 %v2250, 16
      %v2317 = vrot.slane %v2315, 4
      %v2318 = vshll.u32 %v2250, 16
      %v2320 = vrot.slane %v2318, 5
      %v2321 = vor.u32 %v2317, %v2320
      %v2322 = vrot.slane %v2321, 4
      %v2324 = vshll.u32 %v2251, 16
      %v2326 = vrot.slane %v2324, 5
      %v2327 = vsel %vm448, %v2322, %v2326
      %v2329 = vshrl.u32 %v2252, 16
      %v2331 = vrot.slane %v2329, 4
      %v2332 = vshll.u32 %v2252, 16
      %v2334 = vrot.slane %v2332, 5
      %v2335 = vor.u32 %v2331, %v2334
      %v2336 = vrot.slane %v2335, 4
      %v2338 = vshll.u32 %v2253, 16
      %v2340 = vrot.slane %v2338, 5
      %v2341 = vsel %vm448, %v2336, %v2340
      %v2343 = vshrl.u32 %v2254, 16
      %v2345 = vrot.slane %v2343, 4
      %v2346 = vshll.u32 %v2254, 16
      %v2348 = vrot.slane %v2346, 5
      %v2349 = vor.u32 %v2345, %v2348
      %v2350 = vrot.slane %v2349, 4
      %v2352 = vshll.u32 %v2255, 16
      %v2354 = vrot.slane %v2352, 5
      %v2355 = vsel %vm448, %v2350, %v2354
      %v2357 = vshrl.u32 %v2256, 16
      %v2359 = vrot.slane %v2357, 4
      %v2360 = vshll.u32 %v2256, 16
      %v2362 = vrot.slane %v2360, 5
      %v2363 = vor.u32 %v2359, %v2362
      %v2364 = vrot.slane %v2363, 4
      %v2366 = vshll.u32 %v2257, 16
      %v2368 = vrot.slane %v2366, 5
      %v2369 = vsel %vm448, %v2364, %v2368
      %s2370 = scalar_lea.vmem %s3, 256
      %v2371 = vld [vmem:[%s2370] sm:$0xf]
      %v2372 = vld [vmem:[%s2370 + $0x4] sm:$0xf]
      %v2373 = vld [vmem:[%s2370 + $0x8] sm:$0xf]
      %v2374 = vld [vmem:[%s2370 + $0xc] sm:$0xf]
      %v2375 = vld [vmem:[%s2370 + $0x10] sm:$0xf]
      %v2376 = vld [vmem:[%s2370 + $0x14] sm:$0xf]
      %v2377 = vld [vmem:[%s2370 + $0x18] sm:$0xf]
      %v2378 = vld [vmem:[%s2370 + $0x1c] sm:$0xf]
      %v2379 = vld [vmem:[%s2370 + $0x20] sm:$0xf]
      %v2380 = vld [vmem:[%s2370 + $0x24] sm:$0xf]
      %v2381 = vld [vmem:[%s2370 + $0x28] sm:$0xf]
      %v2382 = vld [vmem:[%s2370 + $0x2c] sm:$0xf]
      %v2383 = vld [vmem:[%s2370 + $0x30] sm:$0xf]
      %v2384 = vld [vmem:[%s2370 + $0x34] sm:$0xf]
      %v2385 = vld [vmem:[%s2370 + $0x38] sm:$0xf]
      %v2386 = vld [vmem:[%s2370 + $0x3c] sm:$0xf]
      %v2387 = vunpack.c.l.b16 %v2271
      %v2388 = vunpack.c.l.b16 %v2285
      %v2389 = vunpack.c.l.b16 %v2299
      %v2390 = vunpack.c.l.b16 %v2313
      %v2391 = vunpack.c.l.b16 %v2327
      %v2392 = vunpack.c.l.b16 %v2341
      %v2393 = vunpack.c.l.b16 %v2355
      %v2394 = vunpack.c.l.b16 %v2369
      %v2395 = vpack.c.b16 %v2388, %v2387
      %v2396 = vpack.c.b16 %v2390, %v2389
      %v2397 = vpack.c.b16 %v2392, %v2391
      %v2398 = vpack.c.b16 %v2394, %v2393
      %v2419 = vunpack.c.l.b16 %v2371
      %v2420 = vunpack.c.l.b16 %v2372
      %v2421 = vunpack.c.l.b16 %v2373
      %v2422 = vunpack.c.l.b16 %v2374
      %v2423 = vunpack.c.l.b16 %v2375
      %v2424 = vunpack.c.l.b16 %v2376
      %v2425 = vunpack.c.l.b16 %v2377
      %v2426 = vunpack.c.l.b16 %v2378
      %v2427 = vunpack.c.l.b16 %v2379
      %v2428 = vunpack.c.l.b16 %v2380
      %v2429 = vunpack.c.l.b16 %v2381
      %v2430 = vunpack.c.l.b16 %v2382
      %v2431 = vunpack.c.l.b16 %v2383
      %v2432 = vunpack.c.l.b16 %v2384
      %v2433 = vunpack.c.l.b16 %v2385
      %v2434 = vunpack.c.l.b16 %v2386
      %v2435 = vpack.c.b16 %v2420, %v2419
      %v2436 = vpack.c.b16 %v2422, %v2421
      %v2437 = vpack.c.b16 %v2424, %v2423
      %v2438 = vpack.c.b16 %v2426, %v2425
      %v2439 = vpack.c.b16 %v2428, %v2427
      %v2440 = vpack.c.b16 %v2430, %v2429
      %v2441 = vpack.c.b16 %v2432, %v2431
      %v2442 = vpack.c.b16 %v2434, %v2433
      %2451 = vmatpush.bf16.msra.mxu0 %v2442
      %2452 = vmatpush.bf16.msra.mxu0 %v2441
      %2453 = vmatpush.bf16.msra.mxu0 %v2440
      %2454 = vmatpush.bf16.msra.mxu0 %v2439
      %2455 = vmatpush.bf16.msra.mxu0 %v2438
      %2456 = vmatpush.bf16.msra.mxu0 %v2437
      %2457 = vmatpush.bf16.msra.mxu0 %v2436
      %2458 = vmatpush.bf16.msra.mxu0 %v2435
      %2459 = vmatmul.bf16.gmra.mxu0 %v2395
      %v2460 = vpop.f32.mrf.mxu0
      %v2461 = vadd.f32 0.0, %v2460
      %v2462 = vpop.f32.mrf.mxu0
      %v2463 = vadd.f32 0.0, %v2462
      %2464 = vmatmul.bf16.gmra.mxu0 %v2396
      %v2465 = vpop.f32.mrf.mxu0
      %v2466 = vadd.f32 0.0, %v2465
      %v2467 = vpop.f32.mrf.mxu0
      %v2468 = vadd.f32 0.0, %v2467
      %2469 = vmatmul.bf16.gmra.mxu0 %v2397
      %v2470 = vpop.f32.mrf.mxu0
      %v2471 = vadd.f32 0.0, %v2470
      %v2472 = vpop.f32.mrf.mxu0
      %v2473 = vadd.f32 0.0, %v2472
      %2474 = vmatmul.bf16.gmra.mxu0 %v2398
      %v2475 = vpop.f32.mrf.mxu0
      %v2476 = vadd.f32 0.0, %v2475
      %v2477 = vpop.f32.mrf.mxu0
      %v2478 = vadd.f32 0.0, %v2477
      %2479 = vdwg.mxu0
      %v2480 = vadd.f32 %v2234, %v2461
      %v2481 = vadd.f32 %v2235, %v2463
      %v2482 = vadd.f32 %v2236, %v2466
      %v2483 = vadd.f32 %v2237, %v2468
      %v2484 = vadd.f32 %v2238, %v2471
      %v2485 = vadd.f32 %v2239, %v2473
      %v2486 = vadd.f32 %v2240, %v2476
      %v2487 = vadd.f32 %v2241, %v2478
      %v2488 = vld [vmem:[%s1525] sm:$0xe]
      %v2489 = vld [vmem:[%s1525 + $0x8] sm:$0xe]
      %v2490 = vld [vmem:[%s1525 + $0x10] sm:$0xe]
      %v2491 = vld [vmem:[%s1525 + $0x18] sm:$0xe]
      %v2492 = vld [vmem:[%s1525 + $0x20] sm:$0xe]
      %v2493 = vld [vmem:[%s1525 + $0x28] sm:$0xe]
      %v2494 = vld [vmem:[%s1525 + $0x30] sm:$0xe]
      %v2495 = vld [vmem:[%s1525 + $0x38] sm:$0xe]
      %v2512 = vrot.slane %v2488, 5
      %v2513 = vrot.slane %v2512, 4
      %v2514 = vrot.slane %v2243, 5
      %v2515 = vsel %vm1957, %v2513, %v2514
      %v2516 = vrot.slane %v2489, 5
      %v2517 = vrot.slane %v2516, 4
      %v2518 = vrot.slane %v2245, 5
      %v2519 = vsel %vm1957, %v2517, %v2518
      %v2520 = vrot.slane %v2490, 5
      %v2521 = vrot.slane %v2520, 4
      %v2522 = vrot.slane %v2247, 5
      %v2523 = vsel %vm1957, %v2521, %v2522
      %v2524 = vrot.slane %v2491, 5
      %v2525 = vrot.slane %v2524, 4
      %v2526 = vrot.slane %v2249, 5
      %v2527 = vsel %vm1957, %v2525, %v2526
      %v2528 = vrot.slane %v2492, 5
      %v2529 = vrot.slane %v2528, 4
      %v2530 = vrot.slane %v2251, 5
      %v2531 = vsel %vm1957, %v2529, %v2530
      %v2532 = vrot.slane %v2493, 5
      %v2533 = vrot.slane %v2532, 4
      %v2534 = vrot.slane %v2253, 5
      %v2535 = vsel %vm1957, %v2533, %v2534
      %v2536 = vrot.slane %v2494, 5
      %v2537 = vrot.slane %v2536, 4
      %v2538 = vrot.slane %v2255, 5
      %v2539 = vsel %vm1957, %v2537, %v2538
      %v2540 = vrot.slane %v2495, 5
      %v2541 = vrot.slane %v2540, 4
      %v2542 = vrot.slane %v2257, 5
      %v2543 = vsel %vm1957, %v2541, %v2542
      %s2544 = scalar_lea.vmem %s3, 320
      %v2545 = vld [vmem:[%s2544] sm:$0xf]
      %v2546 = vld [vmem:[%s2544 + $0x4] sm:$0xf]
      %v2547 = vld [vmem:[%s2544 + $0x8] sm:$0xf]
      %v2548 = vld [vmem:[%s2544 + $0xc] sm:$0xf]
      %v2549 = vld [vmem:[%s2544 + $0x10] sm:$0xf]
      %v2550 = vld [vmem:[%s2544 + $0x14] sm:$0xf]
      %v2551 = vld [vmem:[%s2544 + $0x18] sm:$0xf]
      %v2552 = vld [vmem:[%s2544 + $0x1c] sm:$0xf]
      %v2553 = vld [vmem:[%s2544 + $0x20] sm:$0xf]
      %v2554 = vld [vmem:[%s2544 + $0x24] sm:$0xf]
      %v2555 = vld [vmem:[%s2544 + $0x28] sm:$0xf]
      %v2556 = vld [vmem:[%s2544 + $0x2c] sm:$0xf]
      %v2557 = vld [vmem:[%s2544 + $0x30] sm:$0xf]
      %v2558 = vld [vmem:[%s2544 + $0x34] sm:$0xf]
      %v2559 = vld [vmem:[%s2544 + $0x38] sm:$0xf]
      %v2560 = vld [vmem:[%s2544 + $0x3c] sm:$0xf]
      %v2561 = vunpack.c.l.b16 %v2515
      %v2562 = vunpack.c.l.b16 %v2519
      %v2563 = vunpack.c.l.b16 %v2523
      %v2564 = vunpack.c.l.b16 %v2527
      %v2565 = vunpack.c.l.b16 %v2531
      %v2566 = vunpack.c.l.b16 %v2535
      %v2567 = vunpack.c.l.b16 %v2539
      %v2568 = vunpack.c.l.b16 %v2543
      %v2569 = vpack.c.b16 %v2562, %v2561
      %v2570 = vpack.c.b16 %v2564, %v2563
      %v2571 = vpack.c.b16 %v2566, %v2565
      %v2572 = vpack.c.b16 %v2568, %v2567
      %v2593 = vunpack.c.l.b16 %v2545
      %v2594 = vunpack.c.l.b16 %v2546
      %v2595 = vunpack.c.l.b16 %v2547
      %v2596 = vunpack.c.l.b16 %v2548
      %v2597 = vunpack.c.l.b16 %v2549
      %v2598 = vunpack.c.l.b16 %v2550
      %v2599 = vunpack.c.l.b16 %v2551
      %v2600 = vunpack.c.l.b16 %v2552
      %v2601 = vunpack.c.l.b16 %v2553
      %v2602 = vunpack.c.l.b16 %v2554
      %v2603 = vunpack.c.l.b16 %v2555
      %v2604 = vunpack.c.l.b16 %v2556
      %v2605 = vunpack.c.l.b16 %v2557
      %v2606 = vunpack.c.l.b16 %v2558
      %v2607 = vunpack.c.l.b16 %v2559
      %v2608 = vunpack.c.l.b16 %v2560
      %v2609 = vpack.c.b16 %v2594, %v2593
      %v2610 = vpack.c.b16 %v2596, %v2595
      %v2611 = vpack.c.b16 %v2598, %v2597
      %v2612 = vpack.c.b16 %v2600, %v2599
      %v2613 = vpack.c.b16 %v2602, %v2601
      %v2614 = vpack.c.b16 %v2604, %v2603
      %v2615 = vpack.c.b16 %v2606, %v2605
      %v2616 = vpack.c.b16 %v2608, %v2607
      %2625 = vmatpush.bf16.msra.mxu0 %v2616
      %2626 = vmatpush.bf16.msra.mxu0 %v2615
      %2627 = vmatpush.bf16.msra.mxu0 %v2614
      %2628 = vmatpush.bf16.msra.mxu0 %v2613
      %2629 = vmatpush.bf16.msra.mxu0 %v2612
      %2630 = vmatpush.bf16.msra.mxu0 %v2611
      %2631 = vmatpush.bf16.msra.mxu0 %v2610
      %2632 = vmatpush.bf16.msra.mxu0 %v2609
      %2633 = vmatmul.bf16.gmra.mxu0 %v2569
      %v2634 = vpop.f32.mrf.mxu0
      %v2635 = vadd.f32 0.0, %v2634
      %v2636 = vpop.f32.mrf.mxu0
      %v2637 = vadd.f32 0.0, %v2636
      %2638 = vmatmul.bf16.gmra.mxu0 %v2570
      %v2639 = vpop.f32.mrf.mxu0
      %v2640 = vadd.f32 0.0, %v2639
      %v2641 = vpop.f32.mrf.mxu0
      %v2642 = vadd.f32 0.0, %v2641
      %2643 = vmatmul.bf16.gmra.mxu0 %v2571
      %v2644 = vpop.f32.mrf.mxu0
      %v2645 = vadd.f32 0.0, %v2644
      %v2646 = vpop.f32.mrf.mxu0
      %v2647 = vadd.f32 0.0, %v2646
      %2648 = vmatmul.bf16.gmra.mxu0 %v2572
      %v2649 = vpop.f32.mrf.mxu0
      %v2650 = vadd.f32 0.0, %v2649
      %v2651 = vpop.f32.mrf.mxu0
      %v2652 = vadd.f32 0.0, %v2651
      %2653 = vdwg.mxu0
      %v2654 = vadd.f32 %v2480, %v2635
      %v2655 = vadd.f32 %v2481, %v2637
      %v2656 = vadd.f32 %v2482, %v2640
      %v2657 = vadd.f32 %v2483, %v2642
      %v2658 = vadd.f32 %v2484, %v2645
      %v2659 = vadd.f32 %v2485, %v2647
      %v2660 = vadd.f32 %v2486, %v2650
      %v2661 = vadd.f32 %v2487, %v2652
      %s2662 = scalar_lea.vmem [#allocation2], 16
      %v2663 = vld [vmem:[%s2662] sm:$0xf]
      %v2664 = vld [vmem:[%s2662 + $0x8] sm:$0xf]
      %v2665 = vld [vmem:[%s2662 + $0x10] sm:$0xf]
      %v2666 = vld [vmem:[%s2662 + $0x18] sm:$0xf]
      %v2667 = vld [vmem:[%s2662 + $0x20] sm:$0xf]
      %v2668 = vld [vmem:[%s2662 + $0x28] sm:$0xf]
      %v2669 = vld [vmem:[%s2662 + $0x30] sm:$0xf]
      %v2670 = vld [vmem:[%s2662 + $0x38] sm:$0xf]
      %s2671 = scalar_lea.vmem %s3, 384
      %v2672 = vld [vmem:[%s2671] sm:$0xf]
      %v2673 = vld [vmem:[%s2671 + $0x4] sm:$0xf]
      %v2674 = vld [vmem:[%s2671 + $0x8] sm:$0xf]
      %v2675 = vld [vmem:[%s2671 + $0xc] sm:$0xf]
      %v2676 = vld [vmem:[%s2671 + $0x10] sm:$0xf]
      %v2677 = vld [vmem:[%s2671 + $0x14] sm:$0xf]
      %v2678 = vld [vmem:[%s2671 + $0x18] sm:$0xf]
      %v2679 = vld [vmem:[%s2671 + $0x1c] sm:$0xf]
      %v2680 = vld [vmem:[%s2671 + $0x20] sm:$0xf]
      %v2681 = vld [vmem:[%s2671 + $0x24] sm:$0xf]
      %v2682 = vld [vmem:[%s2671 + $0x28] sm:$0xf]
      %v2683 = vld [vmem:[%s2671 + $0x2c] sm:$0xf]
      %v2684 = vld [vmem:[%s2671 + $0x30] sm:$0xf]
      %v2685 = vld [vmem:[%s2671 + $0x34] sm:$0xf]
      %v2686 = vld [vmem:[%s2671 + $0x38] sm:$0xf]
      %v2687 = vld [vmem:[%s2671 + $0x3c] sm:$0xf]
      %v2696 = vunpack.c.l.b16 %v2663
      %v2697 = vunpack.c.l.b16 %v2664
      %v2698 = vunpack.c.l.b16 %v2665
      %v2699 = vunpack.c.l.b16 %v2666
      %v2700 = vunpack.c.l.b16 %v2667
      %v2701 = vunpack.c.l.b16 %v2668
      %v2702 = vunpack.c.l.b16 %v2669
      %v2703 = vunpack.c.l.b16 %v2670
      %v2704 = vpack.c.b16 %v2697, %v2696
      %v2705 = vpack.c.b16 %v2699, %v2698
      %v2706 = vpack.c.b16 %v2701, %v2700
      %v2707 = vpack.c.b16 %v2703, %v2702
      %v2728 = vunpack.c.l.b16 %v2672
      %v2729 = vunpack.c.l.b16 %v2673
      %v2730 = vunpack.c.l.b16 %v2674
      %v2731 = vunpack.c.l.b16 %v2675
      %v2732 = vunpack.c.l.b16 %v2676
      %v2733 = vunpack.c.l.b16 %v2677
      %v2734 = vunpack.c.l.b16 %v2678
      %v2735 = vunpack.c.l.b16 %v2679
      %v2736 = vunpack.c.l.b16 %v2680
      %v2737 = vunpack.c.l.b16 %v2681
      %v2738 = vunpack.c.l.b16 %v2682
      %v2739 = vunpack.c.l.b16 %v2683
      %v2740 = vunpack.c.l.b16 %v2684
      %v2741 = vunpack.c.l.b16 %v2685
      %v2742 = vunpack.c.l.b16 %v2686
      %v2743 = vunpack.c.l.b16 %v2687
      %v2744 = vpack.c.b16 %v2729, %v2728
      %v2745 = vpack.c.b16 %v2731, %v2730
      %v2746 = vpack.c.b16 %v2733, %v2732
      %v2747 = vpack.c.b16 %v2735, %v2734
      %v2748 = vpack.c.b16 %v2737, %v2736
      %v2749 = vpack.c.b16 %v2739, %v2738
      %v2750 = vpack.c.b16 %v2741, %v2740
      %v2751 = vpack.c.b16 %v2743, %v2742
      %2760 = vmatpush.bf16.msra.mxu0 %v2751
      %2761 = vmatpush.bf16.msra.mxu0 %v2750
      %2762 = vmatpush.bf16.msra.mxu0 %v2749
      %2763 = vmatpush.bf16.msra.mxu0 %v2748
      %2764 = vmatpush.bf16.msra.mxu0 %v2747
      %2765 = vmatpush.bf16.msra.mxu0 %v2746
      %2766 = vmatpush.bf16.msra.mxu0 %v2745
      %2767 = vmatpush.bf16.msra.mxu0 %v2744
      %2768 = vmatmul.bf16.gmra.mxu0 %v2704
      %v2769 = vpop.f32.mrf.mxu0
      %v2770 = vadd.f32 0.0, %v2769
      %v2771 = vpop.f32.mrf.mxu0
      %v2772 = vadd.f32 0.0, %v2771
      %2773 = vmatmul.bf16.gmra.mxu0 %v2705
      %v2774 = vpop.f32.mrf.mxu0
      %v2775 = vadd.f32 0.0, %v2774
      %v2776 = vpop.f32.mrf.mxu0
      %v2777 = vadd.f32 0.0, %v2776
      %2778 = vmatmul.bf16.gmra.mxu0 %v2706
      %v2779 = vpop.f32.mrf.mxu0
      %v2780 = vadd.f32 0.0, %v2779
      %v2781 = vpop.f32.mrf.mxu0
      %v2782 = vadd.f32 0.0, %v2781
      %2783 = vmatmul.bf16.gmra.mxu0 %v2707
      %v2784 = vpop.f32.mrf.mxu0
      %v2785 = vadd.f32 0.0, %v2784
      %v2786 = vpop.f32.mrf.mxu0
      %v2787 = vadd.f32 0.0, %v2786
      %2788 = vdwg.mxu0
      %v2789 = vadd.f32 %v2654, %v2770
      %v2790 = vadd.f32 %v2655, %v2772
      %v2791 = vadd.f32 %v2656, %v2775
      %v2792 = vadd.f32 %v2657, %v2777
      %v2793 = vadd.f32 %v2658, %v2780
      %v2794 = vadd.f32 %v2659, %v2782
      %v2795 = vadd.f32 %v2660, %v2785
      %v2796 = vadd.f32 %v2661, %v2787
      %v2797 = vld [vmem:[%s2662] sm:$0xf]
      %v2798 = vld [vmem:[%s2662 + $0x4] sm:$0x1]
      %v2799 = vld [vmem:[%s2662 + $0x8] sm:$0xf]
      %v2800 = vld [vmem:[%s2662 + $0xc] sm:$0x1]
      %v2801 = vld [vmem:[%s2662 + $0x10] sm:$0xf]
      %v2802 = vld [vmem:[%s2662 + $0x14] sm:$0x1]
      %v2803 = vld [vmem:[%s2662 + $0x18] sm:$0xf]
      %v2804 = vld [vmem:[%s2662 + $0x1c] sm:$0x1]
      %v2805 = vld [vmem:[%s2662 + $0x20] sm:$0xf]
      %v2806 = vld [vmem:[%s2662 + $0x24] sm:$0x1]
      %v2807 = vld [vmem:[%s2662 + $0x28] sm:$0xf]
      %v2808 = vld [vmem:[%s2662 + $0x2c] sm:$0x1]
      %v2809 = vld [vmem:[%s2662 + $0x30] sm:$0xf]
      %v2810 = vld [vmem:[%s2662 + $0x34] sm:$0x1]
      %v2811 = vld [vmem:[%s2662 + $0x38] sm:$0xf]
      %v2812 = vld [vmem:[%s2662 + $0x3c] sm:$0x1]
      %v2814 = vshrl.u32 %v2797, 16
      %v2816 = vrot.slane %v2814, 4
      %v2817 = vshll.u32 %v2797, 16
      %v2819 = vrot.slane %v2817, 5
      %v2820 = vor.u32 %v2816, %v2819
      %v2821 = vrot.slane %v2820, 4
      %v2823 = vshll.u32 %v2798, 16
      %v2825 = vrot.slane %v2823, 5
      %v2826 = vsel %vm448, %v2821, %v2825
      %v2828 = vshrl.u32 %v2799, 16
      %v2830 = vrot.slane %v2828, 4
      %v2831 = vshll.u32 %v2799, 16
      %v2833 = vrot.slane %v2831, 5
      %v2834 = vor.u32 %v2830, %v2833
      %v2835 = vrot.slane %v2834, 4
      %v2837 = vshll.u32 %v2800, 16
      %v2839 = vrot.slane %v2837, 5
      %v2840 = vsel %vm448, %v2835, %v2839
      %v2842 = vshrl.u32 %v2801, 16
      %v2844 = vrot.slane %v2842, 4
      %v2845 = vshll.u32 %v2801, 16
      %v2847 = vrot.slane %v2845, 5
      %v2848 = vor.u32 %v2844, %v2847
      %v2849 = vrot.slane %v2848, 4
      %v2851 = vshll.u32 %v2802, 16
      %v2853 = vrot.slane %v2851, 5
      %v2854 = vsel %vm448, %v2849, %v2853
      %v2856 = vshrl.u32 %v2803, 16
      %v2858 = vrot.slane %v2856, 4
      %v2859 = vshll.u32 %v2803, 16
      %v2861 = vrot.slane %v2859, 5
      %v2862 = vor.u32 %v2858, %v2861
      %v2863 = vrot.slane %v2862, 4
      %v2865 = vshll.u32 %v2804, 16
      %v2867 = vrot.slane %v2865, 5
      %v2868 = vsel %vm448, %v2863, %v2867
      %v2870 = vshrl.u32 %v2805, 16
      %v2872 = vrot.slane %v2870, 4
      %v2873 = vshll.u32 %v2805, 16
      %v2875 = vrot.slane %v2873, 5
      %v2876 = vor.u32 %v2872, %v2875
      %v2877 = vrot.slane %v2876, 4
      %v2879 = vshll.u32 %v2806, 16
      %v2881 = vrot.slane %v2879, 5
      %v2882 = vsel %vm448, %v2877, %v2881
      %v2884 = vshrl.u32 %v2807, 16
      %v2886 = vrot.slane %v2884, 4
      %v2887 = vshll.u32 %v2807, 16
      %v2889 = vrot.slane %v2887, 5
      %v2890 = vor.u32 %v2886, %v2889
      %v2891 = vrot.slane %v2890, 4
      %v2893 = vshll.u32 %v2808, 16
      %v2895 = vrot.slane %v2893, 5
      %v2896 = vsel %vm448, %v2891, %v2895
      %v2898 = vshrl.u32 %v2809, 16
      %v2900 = vrot.slane %v2898, 4
      %v2901 = vshll.u32 %v2809, 16
      %v2903 = vrot.slane %v2901, 5
      %v2904 = vor.u32 %v2900, %v2903
      %v2905 = vrot.slane %v2904, 4
      %v2907 = vshll.u32 %v2810, 16
      %v2909 = vrot.slane %v2907, 5
      %v2910 = vsel %vm448, %v2905, %v2909
      %v2912 = vshrl.u32 %v2811, 16
      %v2914 = vrot.slane %v2912, 4
      %v2915 = vshll.u32 %v2811, 16
      %v2917 = vrot.slane %v2915, 5
      %v2918 = vor.u32 %v2914, %v2917
      %v2919 = vrot.slane %v2918, 4
      %v2921 = vshll.u32 %v2812, 16
      %v2923 = vrot.slane %v2921, 5
      %v2924 = vsel %vm448, %v2919, %v2923
      %s2925 = scalar_lea.vmem %s3, 448
      %v2926 = vld [vmem:[%s2925] sm:$0xf]
      %v2927 = vld [vmem:[%s2925 + $0x4] sm:$0xf]
      %v2928 = vld [vmem:[%s2925 + $0x8] sm:$0xf]
      %v2929 = vld [vmem:[%s2925 + $0xc] sm:$0xf]
      %v2930 = vld [vmem:[%s2925 + $0x10] sm:$0xf]
      %v2931 = vld [vmem:[%s2925 + $0x14] sm:$0xf]
      %v2932 = vld [vmem:[%s2925 + $0x18] sm:$0xf]
      %v2933 = vld [vmem:[%s2925 + $0x1c] sm:$0xf]
      %v2934 = vld [vmem:[%s2925 + $0x20] sm:$0xf]
      %v2935 = vld [vmem:[%s2925 + $0x24] sm:$0xf]
      %v2936 = vld [vmem:[%s2925 + $0x28] sm:$0xf]
      %v2937 = vld [vmem:[%s2925 + $0x2c] sm:$0xf]
      %v2938 = vld [vmem:[%s2925 + $0x30] sm:$0xf]
      %v2939 = vld [vmem:[%s2925 + $0x34] sm:$0xf]
      %v2940 = vld [vmem:[%s2925 + $0x38] sm:$0xf]
      %v2941 = vld [vmem:[%s2925 + $0x3c] sm:$0xf]
      %v2942 = vunpack.c.l.b16 %v2826
      %v2943 = vunpack.c.l.b16 %v2840
      %v2944 = vunpack.c.l.b16 %v2854
      %v2945 = vunpack.c.l.b16 %v2868
      %v2946 = vunpack.c.l.b16 %v2882
      %v2947 = vunpack.c.l.b16 %v2896
      %v2948 = vunpack.c.l.b16 %v2910
      %v2949 = vunpack.c.l.b16 %v2924
      %v2950 = vpack.c.b16 %v2943, %v2942
      %v2951 = vpack.c.b16 %v2945, %v2944
      %v2952 = vpack.c.b16 %v2947, %v2946
      %v2953 = vpack.c.b16 %v2949, %v2948
      %v2974 = vunpack.c.l.b16 %v2926
      %v2975 = vunpack.c.l.b16 %v2927
      %v2976 = vunpack.c.l.b16 %v2928
      %v2977 = vunpack.c.l.b16 %v2929
      %v2978 = vunpack.c.l.b16 %v2930
      %v2979 = vunpack.c.l.b16 %v2931
      %v2980 = vunpack.c.l.b16 %v2932
      %v2981 = vunpack.c.l.b16 %v2933
      %v2982 = vunpack.c.l.b16 %v2934
      %v2983 = vunpack.c.l.b16 %v2935
      %v2984 = vunpack.c.l.b16 %v2936
      %v2985 = vunpack.c.l.b16 %v2937
      %v2986 = vunpack.c.l.b16 %v2938
      %v2987 = vunpack.c.l.b16 %v2939
      %v2988 = vunpack.c.l.b16 %v2940
      %v2989 = vunpack.c.l.b16 %v2941
      %v2990 = vpack.c.b16 %v2975, %v2974
      %v2991 = vpack.c.b16 %v2977, %v2976
      %v2992 = vpack.c.b16 %v2979, %v2978
      %v2993 = vpack.c.b16 %v2981, %v2980
      %v2994 = vpack.c.b16 %v2983, %v2982
      %v2995 = vpack.c.b16 %v2985, %v2984
      %v2996 = vpack.c.b16 %v2987, %v2986
      %v2997 = vpack.c.b16 %v2989, %v2988
      %3006 = vmatpush.bf16.msra.mxu0 %v2997
      %3007 = vmatpush.bf16.msra.mxu0 %v2996
      %3008 = vmatpush.bf16.msra.mxu0 %v2995
      %3009 = vmatpush.bf16.msra.mxu0 %v2994
      %3010 = vmatpush.bf16.msra.mxu0 %v2993
      %3011 = vmatpush.bf16.msra.mxu0 %v2992
      %3012 = vmatpush.bf16.msra.mxu0 %v2991
      %3013 = vmatpush.bf16.msra.mxu0 %v2990
      %3014 = vmatmul.bf16.gmra.mxu0 %v2950
      %v3015 = vpop.f32.mrf.mxu0
      %v3016 = vadd.f32 0.0, %v3015
      %v3017 = vpop.f32.mrf.mxu0
      %v3018 = vadd.f32 0.0, %v3017
      %3019 = vmatmul.bf16.gmra.mxu0 %v2951
      %v3020 = vpop.f32.mrf.mxu0
      %v3021 = vadd.f32 0.0, %v3020
      %v3022 = vpop.f32.mrf.mxu0
      %v3023 = vadd.f32 0.0, %v3022
      %3024 = vmatmul.bf16.gmra.mxu0 %v2952
      %v3025 = vpop.f32.mrf.mxu0
      %v3026 = vadd.f32 0.0, %v3025
      %v3027 = vpop.f32.mrf.mxu0
      %v3028 = vadd.f32 0.0, %v3027
      %3029 = vmatmul.bf16.gmra.mxu0 %v2953
      %v3030 = vpop.f32.mrf.mxu0
      %v3031 = vadd.f32 0.0, %v3030
      %v3032 = vpop.f32.mrf.mxu0
      %v3033 = vadd.f32 0.0, %v3032
      %3034 = vdwg.mxu0
      %v3035 = vadd.f32 %v2789, %v3016
      %v3036 = vadd.f32 %v2790, %v3018
      %v3037 = vadd.f32 %v2791, %v3021
      %v3038 = vadd.f32 %v2792, %v3023
      %v3039 = vadd.f32 %v2793, %v3026
      %v3040 = vadd.f32 %v2794, %v3028
      %v3041 = vadd.f32 %v2795, %v3031
      %v3042 = vadd.f32 %v2796, %v3033
      %v3043 = vld [vmem:[%s2662] sm:$0xe]
      %v3044 = vld [vmem:[%s2662 + $0x8] sm:$0xe]
      %v3045 = vld [vmem:[%s2662 + $0x10] sm:$0xe]
      %v3046 = vld [vmem:[%s2662 + $0x18] sm:$0xe]
      %v3047 = vld [vmem:[%s2662 + $0x20] sm:$0xe]
      %v3048 = vld [vmem:[%s2662 + $0x28] sm:$0xe]
      %v3049 = vld [vmem:[%s2662 + $0x30] sm:$0xe]
      %v3050 = vld [vmem:[%s2662 + $0x38] sm:$0xe]
      %v3067 = vrot.slane %v3043, 5
      %v3068 = vrot.slane %v3067, 4
      %v3069 = vrot.slane %v2798, 5
      %v3070 = vsel %vm1957, %v3068, %v3069
      %v3071 = vrot.slane %v3044, 5
      %v3072 = vrot.slane %v3071, 4
      %v3073 = vrot.slane %v2800, 5
      %v3074 = vsel %vm1957, %v3072, %v3073
      %v3075 = vrot.slane %v3045, 5
      %v3076 = vrot.slane %v3075, 4
      %v3077 = vrot.slane %v2802, 5
      %v3078 = vsel %vm1957, %v3076, %v3077
      %v3079 = vrot.slane %v3046, 5
      %v3080 = vrot.slane %v3079, 4
      %v3081 = vrot.slane %v2804, 5
      %v3082 = vsel %vm1957, %v3080, %v3081
      %v3083 = vrot.slane %v3047, 5
      %v3084 = vrot.slane %v3083, 4
      %v3085 = vrot.slane %v2806, 5
      %v3086 = vsel %vm1957, %v3084, %v3085
      %v3087 = vrot.slane %v3048, 5
      %v3088 = vrot.slane %v3087, 4
      %v3089 = vrot.slane %v2808, 5
      %v3090 = vsel %vm1957, %v3088, %v3089
      %v3091 = vrot.slane %v3049, 5
      %v3092 = vrot.slane %v3091, 4
      %v3093 = vrot.slane %v2810, 5
      %v3094 = vsel %vm1957, %v3092, %v3093
      %v3095 = vrot.slane %v3050, 5
      %v3096 = vrot.slane %v3095, 4
      %v3097 = vrot.slane %v2812, 5
      %v3098 = vsel %vm1957, %v3096, %v3097
      %s3099 = scalar_lea.vmem %s3, 512
      %v3100 = vld [vmem:[%s3099] sm:$0xf]
      %v3101 = vld [vmem:[%s3099 + $0x4] sm:$0xf]
      %v3102 = vld [vmem:[%s3099 + $0x8] sm:$0xf]
      %v3103 = vld [vmem:[%s3099 + $0xc] sm:$0xf]
      %v3104 = vld [vmem:[%s3099 + $0x10] sm:$0xf]
      %v3105 = vld [vmem:[%s3099 + $0x14] sm:$0xf]
      %v3106 = vld [vmem:[%s3099 + $0x18] sm:$0xf]
      %v3107 = vld [vmem:[%s3099 + $0x1c] sm:$0xf]
      %v3108 = vld [vmem:[%s3099 + $0x20] sm:$0xf]
      %v3109 = vld [vmem:[%s3099 + $0x24] sm:$0xf]
      %v3110 = vld [vmem:[%s3099 + $0x28] sm:$0xf]
      %v3111 = vld [vmem:[%s3099 + $0x2c] sm:$0xf]
      %v3112 = vld [vmem:[%s3099 + $0x30] sm:$0xf]
      %v3113 = vld [vmem:[%s3099 + $0x34] sm:$0xf]
      %v3114 = vld [vmem:[%s3099 + $0x38] sm:$0xf]
      %v3115 = vld [vmem:[%s3099 + $0x3c] sm:$0xf]
      %v3116 = vunpack.c.l.b16 %v3070
      %v3117 = vunpack.c.l.b16 %v3074
      %v3118 = vunpack.c.l.b16 %v3078
      %v3119 = vunpack.c.l.b16 %v3082
      %v3120 = vunpack.c.l.b16 %v3086
      %v3121 = vunpack.c.l.b16 %v3090
      %v3122 = vunpack.c.l.b16 %v3094
      %v3123 = vunpack.c.l.b16 %v3098
      %v3124 = vpack.c.b16 %v3117, %v3116
      %v3125 = vpack.c.b16 %v3119, %v3118
      %v3126 = vpack.c.b16 %v3121, %v3120
      %v3127 = vpack.c.b16 %v3123, %v3122
      %v3148 = vunpack.c.l.b16 %v3100
      %v3149 = vunpack.c.l.b16 %v3101
      %v3150 = vunpack.c.l.b16 %v3102
      %v3151 = vunpack.c.l.b16 %v3103
      %v3152 = vunpack.c.l.b16 %v3104
      %v3153 = vunpack.c.l.b16 %v3105
      %v3154 = vunpack.c.l.b16 %v3106
      %v3155 = vunpack.c.l.b16 %v3107
      %v3156 = vunpack.c.l.b16 %v3108
      %v3157 = vunpack.c.l.b16 %v3109
      %v3158 = vunpack.c.l.b16 %v3110
      %v3159 = vunpack.c.l.b16 %v3111
      %v3160 = vunpack.c.l.b16 %v3112
      %v3161 = vunpack.c.l.b16 %v3113
      %v3162 = vunpack.c.l.b16 %v3114
      %v3163 = vunpack.c.l.b16 %v3115
      %v3164 = vpack.c.b16 %v3149, %v3148
      %v3165 = vpack.c.b16 %v3151, %v3150
      %v3166 = vpack.c.b16 %v3153, %v3152
      %v3167 = vpack.c.b16 %v3155, %v3154
      %v3168 = vpack.c.b16 %v3157, %v3156
      %v3169 = vpack.c.b16 %v3159, %v3158
      %v3170 = vpack.c.b16 %v3161, %v3160
      %v3171 = vpack.c.b16 %v3163, %v3162
      %3180 = vmatpush.bf16.msra.mxu0 %v3171
      %3181 = vmatpush.bf16.msra.mxu0 %v3170
      %3182 = vmatpush.bf16.msra.mxu0 %v3169
      %3183 = vmatpush.bf16.msra.mxu0 %v3168
      %3184 = vmatpush.bf16.msra.mxu0 %v3167
      %3185 = vmatpush.bf16.msra.mxu0 %v3166
      %3186 = vmatpush.bf16.msra.mxu0 %v3165
      %3187 = vmatpush.bf16.msra.mxu0 %v3164
      %3188 = vmatmul.bf16.gmra.mxu0 %v3124
      %v3189 = vpop.f32.mrf.mxu0
      %v3190 = vadd.f32 0.0, %v3189
      %v3191 = vpop.f32.mrf.mxu0
      %v3192 = vadd.f32 0.0, %v3191
      %3193 = vmatmul.bf16.gmra.mxu0 %v3125
      %v3194 = vpop.f32.mrf.mxu0
      %v3195 = vadd.f32 0.0, %v3194
      %v3196 = vpop.f32.mrf.mxu0
      %v3197 = vadd.f32 0.0, %v3196
      %3198 = vmatmul.bf16.gmra.mxu0 %v3126
      %v3199 = vpop.f32.mrf.mxu0
      %v3200 = vadd.f32 0.0, %v3199
      %v3201 = vpop.f32.mrf.mxu0
      %v3202 = vadd.f32 0.0, %v3201
      %3203 = vmatmul.bf16.gmra.mxu0 %v3127
      %v3204 = vpop.f32.mrf.mxu0
      %v3205 = vadd.f32 0.0, %v3204
      %v3206 = vpop.f32.mrf.mxu0
      %v3207 = vadd.f32 0.0, %v3206
      %3208 = vdwg.mxu0
      %v3209 = vadd.f32 %v3035, %v3190
      %v3210 = vadd.f32 %v3036, %v3192
      %v3211 = vadd.f32 %v3037, %v3195
      %v3212 = vadd.f32 %v3038, %v3197
      %v3213 = vadd.f32 %v3039, %v3200
      %v3214 = vadd.f32 %v3040, %v3202
      %v3215 = vadd.f32 %v3041, %v3205
      %v3216 = vadd.f32 %v3042, %v3207
      %v3217 = vld [vmem:[%s4] sm:$0x1]
      %v3219 = vperm.slane %v3217, 0
      %v3221 = vadd.f32 %v3209, %v3219
      %v3222 = vadd.f32 %v3210, %v3219
      %v3223 = vadd.f32 %v3211, %v3219
      %v3224 = vadd.f32 %v3212, %v3219
      %v3225 = vadd.f32 %v3213, %v3219
      %v3226 = vadd.f32 %v3214, %v3219
      %v3227 = vadd.f32 %v3215, %v3219
      %v3228 = vadd.f32 %v3216, %v3219
      %v3229 = vld [vmem:[%s5] sm:$0xf]
      %v3231 = vsel %vm333, %v3229, 0
      %3233 = vmatpush.bf16.msra.mxu0 0
      %3234 = vmatpush.bf16.msra.mxu0 0
      %3235 = vmatpush.bf16.msra.mxu0 0
      %3236 = vmatpush.bf16.msra.mxu0 0
      %3237 = vmatpush.bf16.msra.mxu0 0
      %3238 = vmatpush.bf16.msra.mxu0 0
      %3239 = vmatpush.bf16.msra.mxu0 0
      %3240 = vmatpush.bf16.msra.mxu0 %v3231
      %3241 = vmatmul.bf16.gmra.mxu0 %v742
      %v3242 = vpop.f32.mrf.mxu0
      %v3243 = vadd.f32 0.0, %v3242
      %v3244 = vpop.f32.mrf.mxu0
      %v3245 = vadd.f32 0.0, %v3244
      %3246 = vmatmul.bf16.gmra.mxu0 %v745
      %v3247 = vpop.f32.mrf.mxu0
      %v3248 = vadd.f32 0.0, %v3247
      %v3249 = vpop.f32.mrf.mxu0
      %v3250 = vadd.f32 0.0, %v3249
      %3251 = vmatmul.bf16.gmra.mxu0 %v748
      %v3252 = vpop.f32.mrf.mxu0
      %v3253 = vadd.f32 0.0, %v3252
      %v3254 = vpop.f32.mrf.mxu0
      %v3255 = vadd.f32 0.0, %v3254
      %3256 = vmatmul.bf16.gmra.mxu0 %v751
      %v3257 = vpop.f32.mrf.mxu0
      %v3258 = vadd.f32 0.0, %v3257
      %v3259 = vpop.f32.mrf.mxu0
      %v3260 = vadd.f32 0.0, %v3259
      %3261 = vdwg.mxu0
      %v3262 = vadd.f32 %v3221, %v3243
      %v3263 = vadd.f32 %v3222, %v3245
      %v3264 = vadd.f32 %v3223, %v3248
      %v3265 = vadd.f32 %v3224, %v3250
      %v3266 = vadd.f32 %v3225, %v3253
      %v3267 = vadd.f32 %v3226, %v3255
      %v3268 = vadd.f32 %v3227, %v3258
      %v3269 = vadd.f32 %v3228, %v3260
      %v3270 = vld [vmem:[%s6] sm:$0x1]
      %v3272 = vperm.slane %v3270, 0
      %v3274 = vadd.f32 %v3262, %v3272
      %v3275 = vadd.f32 %v3263, %v3272
      %v3276 = vadd.f32 %v3264, %v3272
      %v3277 = vadd.f32 %v3265, %v3272
      %v3278 = vadd.f32 %v3266, %v3272
      %v3279 = vadd.f32 %v3267, %v3272
      %v3280 = vadd.f32 %v3268, %v3272
      %v3281 = vadd.f32 %v3269, %v3272
      %v3282 = vmax.f32 %v3274, 0.0
      %v3283 = vmax.f32 %v3275, 0.0
      %v3284 = vmax.f32 %v3276, 0.0
      %v3285 = vmax.f32 %v3277, 0.0
      %v3286 = vmax.f32 %v3278, 0.0
      %v3287 = vmax.f32 %v3279, 0.0
      %v3288 = vmax.f32 %v3280, 0.0
      %v3289 = vmax.f32 %v3281, 0.0
      %v3290 = vpack.c.bf16 %v3282, %v3282
      %v3291 = vpack.c.bf16 %v3283, %v3283
      %v3292 = vpack.c.bf16 %v3284, %v3284
      %v3293 = vpack.c.bf16 %v3285, %v3285
      %v3294 = vpack.c.bf16 %v3286, %v3286
      %v3295 = vpack.c.bf16 %v3287, %v3287
      %v3296 = vpack.c.bf16 %v3288, %v3288
      %v3297 = vpack.c.bf16 %v3289, %v3289
      %3298 = vst [vmem:[%s278] sm:$0xf] %v3290
      %3299 = vst [vmem:[%s278 + $0x4] sm:$0xf] %v3291
      %3300 = vst [vmem:[%s278 + $0x8] sm:$0xf] %v3292
      %3301 = vst [vmem:[%s278 + $0xc] sm:$0xf] %v3293
      %3302 = vst [vmem:[%s278 + $0x10] sm:$0xf] %v3294
      %3303 = vst [vmem:[%s278 + $0x14] sm:$0xf] %v3295
      %3304 = vst [vmem:[%s278 + $0x18] sm:$0xf] %v3296
      %3305 = vst [vmem:[%s278 + $0x1c] sm:$0xf] %v3297
      %p3306 = scmp.lt.s32.totalorder %s18, 1
      %s3307 = scalar_select %p3306, %s18, 1
      %s3308 = smul.addr %s3307, 8
      %s3309 = smul.addr %s3308, 4
      %s3310 = scalar_lea.vmem %s7, %s3309
      // Predicated region
      $region49: #{residual_block_forward.1} parent=47 // pred_check
        %p3311 = pneg %p188
      $region50: #{residual_block_forward.1} parent=47 // pred_check_branch
        %3313 = sbr.rel (%p3311) target = $region52
      $region51: #{residual_block_forward.1} parent=47 // pred_region
        _
      $region52: #{residual_block_forward.1} parent=47 // pred_fallthru
        _
    $region48: #{residual_block_forward.1} parent=5 // pred_fallthru
      _
    %p3314 = scmp.le.s32.totalorder 2, %s13
    // Predicated region
    $region53: #{residual_block_forward.1} parent=5 // pred_check
      %p3315 = pneg %p3314
    $region54: #{residual_block_forward.1} parent=5 // pred_check_branch
      %3317 = sbr.rel (%p3315) target = $region56
    $region55: #{residual_block_forward.1} parent=5 // pred_region
      %s3318 = ssub.s32 %s13, 2
      // Predicated region
      $region57: #{residual_block_forward.1} parent=55 // pred_check
        %p3319 = pneg %p194
      $region58: #{residual_block_forward.1} parent=55 // pred_check_branch
        %3321 = sbr.rel (%p3319) target = $region60
      $region59: #{residual_block_forward.1} parent=55 // pred_region
        %p3322 = scmp.lt.s32.totalorder %s19, 1
        %s3323 = scalar_select %p3322, %s19, 1
        %s3324 = smul.addr %s3323, 8
        %s3325 = smul.addr %s3324, 4
        %s3326 = scalar_lea.vmem %s7, %s3325
      $region60: #{residual_block_forward.1} parent=55 // pred_fallthru
        _
    $region56: #{residual_block_forward.1} parent=5 // pred_fallthru
      _
  $region6: #{residual_block_forward.1} parent=0 // loop_footer
    %s17 = sadd.s32 1, %s13
  $region7: #{residual_block_forward.1} parent=0 // loop_footer_branch
    %12 = sbr.rel target = $region3
  $region8: #{residual_block_forward.1} parent=0 // loop_exit
    _

</llo_original>
